<compile_context>
chip_gen: v7x
topology: tpu7x:2x2x1
jax: 0.10.0
libtpu: 0.0.40
codegen_flags: <defaults>
</compile_context>

<pallas_src>
import jax
import jax.numpy as jnp
from jax import lax
from jax.experimental import pallas as pl
from jax.experimental.pallas import tpu as pltpu

# ----------------------------- hyperparameters -----------------------------
B = 2            # batch
S = 8            # sequence length
H = 32           # hidden_dim
NH = 4           # n_head
DH = H // NH     # attention_dim per head
F = 64           # feed_forward_dim
N_LAYER = 2
VOCAB = 100      # input_dim
PAD_IDX = 0
MAX_LEN = 32
EPS = 1e-6
NEG_BIAS = -1e9                      # finite "masked" bias (avoids NaN rows)
INV_SCALE = 1.0 / float(DH) ** 0.5   # folded into q


# ------------------------------ Pallas kernel ------------------------------
def _layer_norm(x, g, b):
    # PyTorch nn.LayerNorm: biased variance, eps inside sqrt.
    mu = jnp.mean(x, axis=-1, keepdims=True)
    xc = x - mu
    var = jnp.mean(xc * xc, axis=-1, keepdims=True)
    return xc * lax.rsqrt(var + EPS) * g + b


def encoder_stack_kernel(x_ref, bias_ref,
                         g_ref, beta_ref,
                         wq_ref, wk_ref, wv_ref, wo_ref,
                         w1_ref, b1_ref, w2_ref, b2_ref,
                         o_ref):
    # x: [B*S, H] activations for the whole batch; everything stays in VMEM.
    x = x_ref[...]
    # additive key-padding bias, hoisted once: [B, 1, S_k]
    kbias = bias_ref[...][:, None, :]

    for l in range(N_LAYER):                       # static unroll over layers
        g = g_ref[l]                               # [H]  (shared LN of layer)
        beta = beta_ref[l]                         # [H]
        wq_l = wq_ref[l]                           # [H, H]
        wk_l = wk_ref[l]
        wv_l = wv_ref[l]
        wo_l = wo_ref[l]
        w1_l = w1_ref[l]                           # [H, F]
        b1_l = b1_ref[l]                           # [F]
        w2_l = w2_ref[l]                           # [F, H]
        b2_l = b2_ref[l]                           # [H]

        # ---- pre-LN + multi-head self-attention ----
        xn = _layer_norm(x, g, beta)                                  # [B*S, H]
        q = jnp.dot(xn, wq_l, preferred_element_type=jnp.float32) * INV_SCALE
        k = jnp.dot(xn, wk_l, preferred_element_type=jnp.float32)
        v = jnp.dot(xn, wv_l, preferred_element_type=jnp.float32)
        q3 = q.reshape(B, S, H)
        k3 = k.reshape(B, S, H)
        v3 = v.reshape(B, S, H)

        attn = jnp.zeros((B * S, H), jnp.float32)
        for h in range(NH):                        # static unroll over heads
            sl = slice(h * DH, (h + 1) * DH)
            qh = q3[:, :, sl]                      # [B, S, DH]
            kh = k3[:, :, sl]
            vh = v3[:, :, sl]
            s = jnp.einsum('bqd,bkd->bqk', qh, kh,
                           preferred_element_type=jnp.float32) + kbias
            s = s - jnp.max(s, axis=-1, keepdims=True)
            p = jnp.exp(s)
            p = p * pl.reciprocal(jnp.sum(p, axis=-1, keepdims=True),
                                  approx=True)     # softmax over keys
            ctx_h = jnp.einsum('bqk,bkd->bqd', p, vh,
                               preferred_element_type=jnp.float32)    # [B,S,DH]
            # fold output projection per head: ctx @ Wo == sum_h ctx_h @ Wo[h]
            attn = attn + jnp.dot(ctx_h.reshape(B * S, DH), wo_l[sl, :],
                                  preferred_element_type=jnp.float32)

        y = x + attn                               # residual 1

        # ---- pre-LN + position-wise FFN (Conv1d k=1 == Linear) ----
        # NOTE: same LayerNorm params as the attention pre-LN (shared module
        # in the reference EncoderLayer).
        yn = _layer_norm(y, g, beta)
        hdn = jnp.dot(yn, w1_l, preferred_element_type=jnp.float32) + b1_l
        hdn = jnp.maximum(hdn, 0.0)                # ReLU
        ffn = jnp.dot(hdn, w2_l, preferred_element_type=jnp.float32) + b2_l
        x = y + ffn                                # residual 2

    # ---- final encoder LayerNorm (stored at index N_LAYER) ----
    o_ref[...] = _layer_norm(x, g_ref[N_LAYER], beta_ref[N_LAYER])


# ------------------------------ Pallas wrapper ------------------------------
def run_encoder_stack(x_flat, key_bias, params):
    (g_all, beta_all, wq, wk, wv, wo, w1, b1, w2, b2) = params
    vmem = pl.BlockSpec(memory_space=pltpu.MemorySpace.VMEM)
    return pl.pallas_call(
        encoder_stack_kernel,
        out_shape=jax.ShapeDtypeStruct((B * S, H), jnp.float32),
        in_specs=[vmem] * 12,
        out_specs=vmem,
    )(x_flat, key_bias, g_all, beta_all, wq, wk, wv, wo, w1, b1, w2, b2)


# ------------------------------ JAX glue (embeddings etc.) ------------------------------
def create_positional_encoding(max_len, hidden_dim):
    pos = jnp.arange(max_len, dtype=jnp.float32)[:, None]
    i = jnp.arange(hidden_dim)[None, :]
    angle = pos / jnp.power(10000.0, (2.0 * (i // 2)) / hidden_dim)
    pe = jnp.where(i % 2 == 0, jnp.sin(angle), jnp.cos(angle))
    pe = pe.at[0].set(0.0)           # position-index 0 is padding
    return pe.astype(jnp.float32)


def create_position_vector(source):
    # pos = index+1 for non-pad tokens, 0 for pad tokens
    idx = jnp.arange(source.shape[1], dtype=jnp.int32)[None, :] + 1
    return jnp.where(source != PAD_IDX, idx, 0)


def init_params(key):
    keys = jax.random.split(key, 1 + 8 * N_LAYER)
    tok_emb = jax.random.normal(keys[0], (VOCAB, H), jnp.float32) * (H ** -0.5)
    tok_emb = tok_emb.at[PAD_IDX].set(0.0)
    pos_emb = create_positional_encoding(MAX_LEN + 1, H)

    wq, wk, wv, wo, w1, b1, w2, b2 = ([] for _ in range(8))
    ki = 1
    for _ in range(N_LAYER):
        wq.append(jax.random.normal(keys[ki + 0], (H, H), jnp.float32) * (H ** -0.5))
        wk.append(jax.random.normal(keys[ki + 1], (H, H), jnp.float32) * (H ** -0.5))
        wv.append(jax.random.normal(keys[ki + 2], (H, H), jnp.float32) * (H ** -0.5))
        wo.append(jax.random.normal(keys[ki + 3], (H, H), jnp.float32) * (H ** -0.5))
        w1.append(jax.random.normal(keys[ki + 4], (H, F), jnp.float32) * (H ** -0.5))
        b1.append(jax.random.normal(keys[ki + 5], (F,), jnp.float32) * 0.01)
        w2.append(jax.random.normal(keys[ki + 6], (F, H), jnp.float32) * (F ** -0.5))
        b2.append(jax.random.normal(keys[ki + 7], (H,), jnp.float32) * 0.01)
        ki += 8

    stack = lambda xs: jnp.stack(xs, axis=0)
    # per-layer shared LN (index 0..N_LAYER-1) + final encoder LN (index N_LAYER)
    g_all = jnp.ones((N_LAYER + 1, H), jnp.float32)
    beta_all = jnp.zeros((N_LAYER + 1, H), jnp.float32)
    stack_params = (g_all, beta_all,
                    stack(wq), stack(wk), stack(wv), stack(wo),
                    stack(w1), stack(b1), stack(w2), stack(b2))
    return tok_emb, pos_emb, stack_params


@jax.jit
def encoder_forward(source, tok_emb, pos_emb, stack_params):
    # additive key-padding bias: 0 for valid keys, NEG_BIAS for PAD keys
    key_bias = jnp.where(source == PAD_IDX, NEG_BIAS, 0.0).astype(jnp.float32)  # [B,S]
    source_pos = create_position_vector(source)                                 # [B,S]
    x = jnp.take(tok_emb, source, axis=0) * (H ** 0.5)        # token embedding
    x = x + jnp.take(pos_emb, source_pos, axis=0)             # + positional
    # TODO(synk): dropout is identity (inference); training-mode dropout not implemented.
    x_flat = x.reshape(B * S, H)
    out = run_encoder_stack(x_flat, key_bias, stack_params)
    return out.reshape(B, S, H)


# ------------------------------ main ------------------------------
if __name__ == "__main__":
    key = jax.random.PRNGKey(0)
    k_src, k_param = jax.random.split(key)

    source = jax.random.randint(k_src, (B, S), 1, VOCAB, dtype=jnp.int32)
    # add some padding at the end of each sequence
    source = source.at[0, 6:].set(PAD_IDX).at[1, 5:].set(PAD_IDX)

    tok_emb, pos_emb, stack_params = init_params(k_param)
    out = encoder_forward(source, tok_emb, pos_emb, stack_params)
    out = jax.block_until_ready(out)

    assert out.shape == (B, S, H)
    assert bool(jnp.all(jnp.isfinite(out)))
    print("KERNEL_OK")
</pallas_src>

<mosaic_0001>
module attributes {stable_mosaic.version = 11 : i64} {
  func.func @encoder_stack_kernel(%arg0: memref<16x32xf32, #tpu.memory_space<vmem>>, %arg1: memref<2x8xf32, #tpu.memory_space<vmem>>, %arg2: memref<3x32xf32, #tpu.memory_space<vmem>>, %arg3: memref<3x32xf32, #tpu.memory_space<vmem>>, %arg4: memref<2x32x32xf32, #tpu.memory_space<vmem>>, %arg5: memref<2x32x32xf32, #tpu.memory_space<vmem>>, %arg6: memref<2x32x32xf32, #tpu.memory_space<vmem>>, %arg7: memref<2x32x32xf32, #tpu.memory_space<vmem>>, %arg8: memref<2x32x64xf32, #tpu.memory_space<vmem>>, %arg9: memref<2x64xf32, #tpu.memory_space<vmem>>, %arg10: memref<2x64x32xf32, #tpu.memory_space<vmem>>, %arg11: memref<2x32xf32, #tpu.memory_space<vmem>>, %arg12: memref<16x32xf32, #tpu.memory_space<vmem>>) attributes {dimension_semantics = [], scalar_prefetch = 0 : i64, scratch_operands = 0 : i64, tpu.core_type = #tpu.core_type<tc>} {
    %c0 = arith.constant 0 : index
    %c0_0 = arith.constant 0 : index
    %0 = vector.load %arg0[%c0, %c0_0] : memref<16x32xf32, #tpu.memory_space<vmem>>, vector<16x32xf32>
    %c0_1 = arith.constant 0 : index
    %c0_2 = arith.constant 0 : index
    %1 = vector.load %arg1[%c0_1, %c0_2] : memref<2x8xf32, #tpu.memory_space<vmem>>, vector<2x8xf32>
    %2 = vector.shape_cast %1 : vector<2x8xf32> to vector<2x1x8xf32>
    %c0_3 = arith.constant 0 : index
    %c0_4 = arith.constant 0 : index
    %3 = vector.load %arg2[%c0_3, %c0_4] : memref<3x32xf32, #tpu.memory_space<vmem>>, vector<1x32xf32>
    %4 = vector.shape_cast %3 : vector<1x32xf32> to vector<32xf32>
    %c0_5 = arith.constant 0 : index
    %c0_6 = arith.constant 0 : index
    %5 = vector.load %arg3[%c0_5, %c0_6] : memref<3x32xf32, #tpu.memory_space<vmem>>, vector<1x32xf32>
    %6 = vector.shape_cast %5 : vector<1x32xf32> to vector<32xf32>
    %c0_7 = arith.constant 0 : index
    %c0_8 = arith.constant 0 : index
    %c0_9 = arith.constant 0 : index
    %7 = vector.load %arg4[%c0_7, %c0_8, %c0_9] : memref<2x32x32xf32, #tpu.memory_space<vmem>>, vector<1x32x32xf32>
    %8 = vector.shape_cast %7 : vector<1x32x32xf32> to vector<32x32xf32>
    %c0_10 = arith.constant 0 : index
    %c0_11 = arith.constant 0 : index
    %c0_12 = arith.constant 0 : index
    %9 = vector.load %arg5[%c0_10, %c0_11, %c0_12] : memref<2x32x32xf32, #tpu.memory_space<vmem>>, vector<1x32x32xf32>
    %10 = vector.shape_cast %9 : vector<1x32x32xf32> to vector<32x32xf32>
    %c0_13 = arith.constant 0 : index
    %c0_14 = arith.constant 0 : index
    %c0_15 = arith.constant 0 : index
    %11 = vector.load %arg6[%c0_13, %c0_14, %c0_15] : memref<2x32x32xf32, #tpu.memory_space<vmem>>, vector<1x32x32xf32>
    %12 = vector.shape_cast %11 : vector<1x32x32xf32> to vector<32x32xf32>
    %c0_16 = arith.constant 0 : index
    %c0_17 = arith.constant 0 : index
    %c0_18 = arith.constant 0 : index
    %13 = vector.load %arg7[%c0_16, %c0_17, %c0_18] : memref<2x32x32xf32, #tpu.memory_space<vmem>>, vector<1x32x32xf32>
    %14 = vector.shape_cast %13 : vector<1x32x32xf32> to vector<32x32xf32>
    %c0_19 = arith.constant 0 : index
    %c0_20 = arith.constant 0 : index
    %c0_21 = arith.constant 0 : index
    %15 = vector.load %arg8[%c0_19, %c0_20, %c0_21] : memref<2x32x64xf32, #tpu.memory_space<vmem>>, vector<1x32x64xf32>
    %16 = vector.shape_cast %15 : vector<1x32x64xf32> to vector<32x64xf32>
    %c0_22 = arith.constant 0 : index
    %c0_23 = arith.constant 0 : index
    %17 = vector.load %arg9[%c0_22, %c0_23] : memref<2x64xf32, #tpu.memory_space<vmem>>, vector<1x64xf32>
    %18 = vector.shape_cast %17 : vector<1x64xf32> to vector<64xf32>
    %c0_24 = arith.constant 0 : index
    %c0_25 = arith.constant 0 : index
    %c0_26 = arith.constant 0 : index
    %19 = vector.load %arg10[%c0_24, %c0_25, %c0_26] : memref<2x64x32xf32, #tpu.memory_space<vmem>>, vector<1x64x32xf32>
    %20 = vector.shape_cast %19 : vector<1x64x32xf32> to vector<64x32xf32>
    %c0_27 = arith.constant 0 : index
    %c0_28 = arith.constant 0 : index
    %21 = vector.load %arg11[%c0_27, %c0_28] : memref<2x32xf32, #tpu.memory_space<vmem>>, vector<1x32xf32>
    %22 = vector.shape_cast %21 : vector<1x32xf32> to vector<32xf32>
    %cst = arith.constant dense<0.000000e+00> : vector<16xf32>
    %23 = vector.multi_reduction <add>, %0, %cst [1] : vector<16x32xf32> to vector<16xf32>
    %24 = vector.shape_cast %23 : vector<16xf32> to vector<16x1xf32>
    %cst_29 = arith.constant 3.200000e+01 : f32
    %25 = vector.broadcast %cst_29 : f32 to vector<16x1xf32>
    %26 = arith.divf %24, %25 : vector<16x1xf32>
    %27 = vector.broadcast %26 : vector<16x1xf32> to vector<16x32xf32>
    %28 = arith.subf %0, %27 : vector<16x32xf32>
    %29 = arith.mulf %28, %28 : vector<16x32xf32>
    %cst_30 = arith.constant dense<0.000000e+00> : vector<16xf32>
    %30 = vector.multi_reduction <add>, %29, %cst_30 [1] : vector<16x32xf32> to vector<16xf32>
    %31 = vector.shape_cast %30 : vector<16xf32> to vector<16x1xf32>
    %cst_31 = arith.constant 3.200000e+01 : f32
    %32 = vector.broadcast %cst_31 : f32 to vector<16x1xf32>
    %33 = arith.divf %31, %32 : vector<16x1xf32>
    %cst_32 = arith.constant 9.99999997E-7 : f32
    %34 = vector.broadcast %cst_32 : f32 to vector<16x1xf32>
    %35 = arith.addf %33, %34 : vector<16x1xf32>
    %36 = math.rsqrt %35 : vector<16x1xf32>
    %37 = vector.broadcast %36 : vector<16x1xf32> to vector<16x32xf32>
    %38 = arith.mulf %28, %37 : vector<16x32xf32>
    %39 = vector.shape_cast %4 : vector<32xf32> to vector<1x32xf32>
    %40 = vector.broadcast %39 : vector<1x32xf32> to vector<16x32xf32>
    %41 = arith.mulf %38, %40 : vector<16x32xf32>
    %42 = vector.shape_cast %6 : vector<32xf32> to vector<1x32xf32>
    %43 = vector.broadcast %42 : vector<1x32xf32> to vector<16x32xf32>
    %44 = arith.addf %41, %43 : vector<16x32xf32>
    %cst_33 = arith.constant dense<0.000000e+00> : vector<16x32xf32>
    %45 = tpu.matmul %44, %8, %cst_33 {dimension_numbers = #tpu.dot_dimension_numbers<[1], [0], [0], [1], [0, 0, 1, 1], [], []>} : vector<16x32xf32>, vector<32x32xf32>, vector<16x32xf32> -> vector<16x32xf32>
    %cst_34 = arith.constant 0.353553385 : f32
    %46 = vector.broadcast %cst_34 : f32 to vector<16x32xf32>
    %47 = arith.mulf %45, %46 : vector<16x32xf32>
    %cst_35 = arith.constant dense<0.000000e+00> : vector<16x32xf32>
    %48 = tpu.matmul %44, %10, %cst_35 {dimension_numbers = #tpu.dot_dimension_numbers<[1], [0], [0], [1], [0, 0, 1, 1], [], []>} : vector<16x32xf32>, vector<32x32xf32>, vector<16x32xf32> -> vector<16x32xf32>
    %cst_36 = arith.constant dense<0.000000e+00> : vector<16x32xf32>
    %49 = tpu.matmul %44, %12, %cst_36 {dimension_numbers = #tpu.dot_dimension_numbers<[1], [0], [0], [1], [0, 0, 1, 1], [], []>} : vector<16x32xf32>, vector<32x32xf32>, vector<16x32xf32> -> vector<16x32xf32>
    %50 = vector.shape_cast %47 : vector<16x32xf32> to vector<2x8x32xf32>
    %51 = vector.shape_cast %48 : vector<16x32xf32> to vector<2x8x32xf32>
    %52 = vector.shape_cast %49 : vector<16x32xf32> to vector<2x8x32xf32>
    %cst_37 = arith.constant 0.000000e+00 : f32
    %53 = vector.broadcast %cst_37 : f32 to vector<16x32xf32>
    %54 = vector.extract_strided_slice %50 {offsets = [0, 0, 0], sizes = [2, 8, 8], strides = [1, 1, 1]} : vector<2x8x32xf32> to vector<2x8x8xf32>
    %55 = vector.extract_strided_slice %51 {offsets = [0, 0, 0], sizes = [2, 8, 8], strides = [1, 1, 1]} : vector<2x8x32xf32> to vector<2x8x8xf32>
    %56 = vector.extract_strided_slice %52 {offsets = [0, 0, 0], sizes = [2, 8, 8], strides = [1, 1, 1]} : vector<2x8x32xf32> to vector<2x8x8xf32>
    "tpu.trace_start"() <{level = 10 : i32, message = "bqd,bkd->bqk"}> : () -> ()
    %cst_38 = arith.constant dense<0.000000e+00> : vector<2x8x8xf32>
    %57 = tpu.matmul %54, %55, %cst_38 {dimension_numbers = #tpu.dot_dimension_numbers<[2], [2], [1], [1], [0, 0, 0, 1, 1, 1], [0], [0]>} : vector<2x8x8xf32>, vector<2x8x8xf32>, vector<2x8x8xf32> -> vector<2x8x8xf32>
    "tpu.trace_stop"() : () -> ()
    %58 = vector.broadcast %2 : vector<2x1x8xf32> to vector<2x8x8xf32>
    %59 = arith.addf %57, %58 : vector<2x8x8xf32>
    %cst_39 = arith.constant dense<0xFF800000> : vector<2x8xf32>
    %60 = vector.multi_reduction <maximumf>, %59, %cst_39 [2] : vector<2x8x8xf32> to vector<2x8xf32>
    %61 = vector.shape_cast %60 : vector<2x8xf32> to vector<2x8x1xf32>
    %62 = vector.broadcast %61 : vector<2x8x1xf32> to vector<2x8x8xf32>
    %63 = arith.subf %59, %62 : vector<2x8x8xf32>
    %64 = math.exp %63 : vector<2x8x8xf32>
    %cst_40 = arith.constant dense<0.000000e+00> : vector<2x8xf32>
    %65 = vector.multi_reduction <add>, %64, %cst_40 [2] : vector<2x8x8xf32> to vector<2x8xf32>
    %66 = vector.shape_cast %65 : vector<2x8xf32> to vector<2x8x1xf32>
    %67 = tpu.reciprocal %66 {approx = true} : vector<2x8x1xf32> -> vector<2x8x1xf32>
    %68 = vector.broadcast %67 : vector<2x8x1xf32> to vector<2x8x8xf32>
    %69 = arith.mulf %64, %68 : vector<2x8x8xf32>
    "tpu.trace_start"() <{level = 10 : i32, message = "bqk,bkd->bqd"}> : () -> ()
    %cst_41 = arith.constant dense<0.000000e+00> : vector<2x8x8xf32>
    %70 = tpu.matmul %69, %56, %cst_41 {dimension_numbers = #tpu.dot_dimension_numbers<[2], [1], [1], [2], [0, 0, 0, 1, 1, 2], [0], [0]>} : vector<2x8x8xf32>, vector<2x8x8xf32>, vector<2x8x8xf32> -> vector<2x8x8xf32>
    "tpu.trace_stop"() : () -> ()
    %71 = vector.shape_cast %70 : vector<2x8x8xf32> to vector<16x8xf32>
    %72 = vector.extract_strided_slice %14 {offsets = [0, 0], sizes = [8, 32], strides = [1, 1]} : vector<32x32xf32> to vector<8x32xf32>
    %cst_42 = arith.constant dense<0.000000e+00> : vector<16x32xf32>
    %73 = tpu.matmul %71, %72, %cst_42 {dimension_numbers = #tpu.dot_dimension_numbers<[1], [0], [0], [1], [0, 0, 1, 1], [], []>} : vector<16x8xf32>, vector<8x32xf32>, vector<16x32xf32> -> vector<16x32xf32>
    %74 = arith.addf %53, %73 : vector<16x32xf32>
    %75 = vector.extract_strided_slice %50 {offsets = [0, 0, 8], sizes = [2, 8, 8], strides = [1, 1, 1]} : vector<2x8x32xf32> to vector<2x8x8xf32>
    %76 = vector.extract_strided_slice %51 {offsets = [0, 0, 8], sizes = [2, 8, 8], strides = [1, 1, 1]} : vector<2x8x32xf32> to vector<2x8x8xf32>
    %77 = vector.extract_strided_slice %52 {offsets = [0, 0, 8], sizes = [2, 8, 8], strides = [1, 1, 1]} : vector<2x8x32xf32> to vector<2x8x8xf32>
    "tpu.trace_start"() <{level = 10 : i32, message = "bqd,bkd->bqk"}> : () -> ()
    %cst_43 = arith.constant dense<0.000000e+00> : vector<2x8x8xf32>
    %78 = tpu.matmul %75, %76, %cst_43 {dimension_numbers = #tpu.dot_dimension_numbers<[2], [2], [1], [1], [0, 0, 0, 1, 1, 1], [0], [0]>} : vector<2x8x8xf32>, vector<2x8x8xf32>, vector<2x8x8xf32> -> vector<2x8x8xf32>
    "tpu.trace_stop"() : () -> ()
    %79 = vector.broadcast %2 : vector<2x1x8xf32> to vector<2x8x8xf32>
    %80 = arith.addf %78, %79 : vector<2x8x8xf32>
    %cst_44 = arith.constant dense<0xFF800000> : vector<2x8xf32>
    %81 = vector.multi_reduction <maximumf>, %80, %cst_44 [2] : vector<2x8x8xf32> to vector<2x8xf32>
    %82 = vector.shape_cast %81 : vector<2x8xf32> to vector<2x8x1xf32>
    %83 = vector.broadcast %82 : vector<2x8x1xf32> to vector<2x8x8xf32>
    %84 = arith.subf %80, %83 : vector<2x8x8xf32>
    %85 = math.exp %84 : vector<2x8x8xf32>
    %cst_45 = arith.constant dense<0.000000e+00> : vector<2x8xf32>
    %86 = vector.multi_reduction <add>, %85, %cst_45 [2] : vector<2x8x8xf32> to vector<2x8xf32>
    %87 = vector.shape_cast %86 : vector<2x8xf32> to vector<2x8x1xf32>
    %88 = tpu.reciprocal %87 {approx = true} : vector<2x8x1xf32> -> vector<2x8x1xf32>
    %89 = vector.broadcast %88 : vector<2x8x1xf32> to vector<2x8x8xf32>
    %90 = arith.mulf %85, %89 : vector<2x8x8xf32>
    "tpu.trace_start"() <{level = 10 : i32, message = "bqk,bkd->bqd"}> : () -> ()
    %cst_46 = arith.constant dense<0.000000e+00> : vector<2x8x8xf32>
    %91 = tpu.matmul %90, %77, %cst_46 {dimension_numbers = #tpu.dot_dimension_numbers<[2], [1], [1], [2], [0, 0, 0, 1, 1, 2], [0], [0]>} : vector<2x8x8xf32>, vector<2x8x8xf32>, vector<2x8x8xf32> -> vector<2x8x8xf32>
    "tpu.trace_stop"() : () -> ()
    %92 = vector.shape_cast %91 : vector<2x8x8xf32> to vector<16x8xf32>
    %93 = vector.extract_strided_slice %14 {offsets = [8, 0], sizes = [8, 32], strides = [1, 1]} : vector<32x32xf32> to vector<8x32xf32>
    %cst_47 = arith.constant dense<0.000000e+00> : vector<16x32xf32>
    %94 = tpu.matmul %92, %93, %cst_47 {dimension_numbers = #tpu.dot_dimension_numbers<[1], [0], [0], [1], [0, 0, 1, 1], [], []>} : vector<16x8xf32>, vector<8x32xf32>, vector<16x32xf32> -> vector<16x32xf32>
    %95 = arith.addf %74, %94 : vector<16x32xf32>
    %96 = vector.extract_strided_slice %50 {offsets = [0, 0, 16], sizes = [2, 8, 8], strides = [1, 1, 1]} : vector<2x8x32xf32> to vector<2x8x8xf32>
    %97 = vector.extract_strided_slice %51 {offsets = [0, 0, 16], sizes = [2, 8, 8], strides = [1, 1, 1]} : vector<2x8x32xf32> to vector<2x8x8xf32>
    %98 = vector.extract_strided_slice %52 {offsets = [0, 0, 16], sizes = [2, 8, 8], strides = [1, 1, 1]} : vector<2x8x32xf32> to vector<2x8x8xf32>
    "tpu.trace_start"() <{level = 10 : i32, message = "bqd,bkd->bqk"}> : () -> ()
    %cst_48 = arith.constant dense<0.000000e+00> : vector<2x8x8xf32>
    %99 = tpu.matmul %96, %97, %cst_48 {dimension_numbers = #tpu.dot_dimension_numbers<[2], [2], [1], [1], [0, 0, 0, 1, 1, 1], [0], [0]>} : vector<2x8x8xf32>, vector<2x8x8xf32>, vector<2x8x8xf32> -> vector<2x8x8xf32>
    "tpu.trace_stop"() : () -> ()
    %100 = vector.broadcast %2 : vector<2x1x8xf32> to vector<2x8x8xf32>
    %101 = arith.addf %99, %100 : vector<2x8x8xf32>
    %cst_49 = arith.constant dense<0xFF800000> : vector<2x8xf32>
    %102 = vector.multi_reduction <maximumf>, %101, %cst_49 [2] : vector<2x8x8xf32> to vector<2x8xf32>
    %103 = vector.shape_cast %102 : vector<2x8xf32> to vector<2x8x1xf32>
    %104 = vector.broadcast %103 : vector<2x8x1xf32> to vector<2x8x8xf32>
    %105 = arith.subf %101, %104 : vector<2x8x8xf32>
    %106 = math.exp %105 : vector<2x8x8xf32>
    %cst_50 = arith.constant dense<0.000000e+00> : vector<2x8xf32>
    %107 = vector.multi_reduction <add>, %106, %cst_50 [2] : vector<2x8x8xf32> to vector<2x8xf32>
    %108 = vector.shape_cast %107 : vector<2x8xf32> to vector<2x8x1xf32>
    %109 = tpu.reciprocal %108 {approx = true} : vector<2x8x1xf32> -> vector<2x8x1xf32>
    %110 = vector.broadcast %109 : vector<2x8x1xf32> to vector<2x8x8xf32>
    %111 = arith.mulf %106, %110 : vector<2x8x8xf32>
    "tpu.trace_start"() <{level = 10 : i32, message = "bqk,bkd->bqd"}> : () -> ()
    %cst_51 = arith.constant dense<0.000000e+00> : vector<2x8x8xf32>
    %112 = tpu.matmul %111, %98, %cst_51 {dimension_numbers = #tpu.dot_dimension_numbers<[2], [1], [1], [2], [0, 0, 0, 1, 1, 2], [0], [0]>} : vector<2x8x8xf32>, vector<2x8x8xf32>, vector<2x8x8xf32> -> vector<2x8x8xf32>
    "tpu.trace_stop"() : () -> ()
    %113 = vector.shape_cast %112 : vector<2x8x8xf32> to vector<16x8xf32>
    %114 = vector.extract_strided_slice %14 {offsets = [16, 0], sizes = [8, 32], strides = [1, 1]} : vector<32x32xf32> to vector<8x32xf32>
    %cst_52 = arith.constant dense<0.000000e+00> : vector<16x32xf32>
    %115 = tpu.matmul %113, %114, %cst_52 {dimension_numbers = #tpu.dot_dimension_numbers<[1], [0], [0], [1], [0, 0, 1, 1], [], []>} : vector<16x8xf32>, vector<8x32xf32>, vector<16x32xf32> -> vector<16x32xf32>
    %116 = arith.addf %95, %115 : vector<16x32xf32>
    %117 = vector.extract_strided_slice %50 {offsets = [0, 0, 24], sizes = [2, 8, 8], strides = [1, 1, 1]} : vector<2x8x32xf32> to vector<2x8x8xf32>
    %118 = vector.extract_strided_slice %51 {offsets = [0, 0, 24], sizes = [2, 8, 8], strides = [1, 1, 1]} : vector<2x8x32xf32> to vector<2x8x8xf32>
    %119 = vector.extract_strided_slice %52 {offsets = [0, 0, 24], sizes = [2, 8, 8], strides = [1, 1, 1]} : vector<2x8x32xf32> to vector<2x8x8xf32>
    "tpu.trace_start"() <{level = 10 : i32, message = "bqd,bkd->bqk"}> : () -> ()
    %cst_53 = arith.constant dense<0.000000e+00> : vector<2x8x8xf32>
    %120 = tpu.matmul %117, %118, %cst_53 {dimension_numbers = #tpu.dot_dimension_numbers<[2], [2], [1], [1], [0, 0, 0, 1, 1, 1], [0], [0]>} : vector<2x8x8xf32>, vector<2x8x8xf32>, vector<2x8x8xf32> -> vector<2x8x8xf32>
    "tpu.trace_stop"() : () -> ()
    %121 = vector.broadcast %2 : vector<2x1x8xf32> to vector<2x8x8xf32>
    %122 = arith.addf %120, %121 : vector<2x8x8xf32>
    %cst_54 = arith.constant dense<0xFF800000> : vector<2x8xf32>
    %123 = vector.multi_reduction <maximumf>, %122, %cst_54 [2] : vector<2x8x8xf32> to vector<2x8xf32>
    %124 = vector.shape_cast %123 : vector<2x8xf32> to vector<2x8x1xf32>
    %125 = vector.broadcast %124 : vector<2x8x1xf32> to vector<2x8x8xf32>
    %126 = arith.subf %122, %125 : vector<2x8x8xf32>
    %127 = math.exp %126 : vector<2x8x8xf32>
    %cst_55 = arith.constant dense<0.000000e+00> : vector<2x8xf32>
    %128 = vector.multi_reduction <add>, %127, %cst_55 [2] : vector<2x8x8xf32> to vector<2x8xf32>
    %129 = vector.shape_cast %128 : vector<2x8xf32> to vector<2x8x1xf32>
    %130 = tpu.reciprocal %129 {approx = true} : vector<2x8x1xf32> -> vector<2x8x1xf32>
    %131 = vector.broadcast %130 : vector<2x8x1xf32> to vector<2x8x8xf32>
    %132 = arith.mulf %127, %131 : vector<2x8x8xf32>
    "tpu.trace_start"() <{level = 10 : i32, message = "bqk,bkd->bqd"}> : () -> ()
    %cst_56 = arith.constant dense<0.000000e+00> : vector<2x8x8xf32>
    %133 = tpu.matmul %132, %119, %cst_56 {dimension_numbers = #tpu.dot_dimension_numbers<[2], [1], [1], [2], [0, 0, 0, 1, 1, 2], [0], [0]>} : vector<2x8x8xf32>, vector<2x8x8xf32>, vector<2x8x8xf32> -> vector<2x8x8xf32>
    "tpu.trace_stop"() : () -> ()
    %134 = vector.shape_cast %133 : vector<2x8x8xf32> to vector<16x8xf32>
    %135 = vector.extract_strided_slice %14 {offsets = [24, 0], sizes = [8, 32], strides = [1, 1]} : vector<32x32xf32> to vector<8x32xf32>
    %cst_57 = arith.constant dense<0.000000e+00> : vector<16x32xf32>
    %136 = tpu.matmul %134, %135, %cst_57 {dimension_numbers = #tpu.dot_dimension_numbers<[1], [0], [0], [1], [0, 0, 1, 1], [], []>} : vector<16x8xf32>, vector<8x32xf32>, vector<16x32xf32> -> vector<16x32xf32>
    %137 = arith.addf %116, %136 : vector<16x32xf32>
    %138 = arith.addf %0, %137 : vector<16x32xf32>
    %cst_58 = arith.constant dense<0.000000e+00> : vector<16xf32>
    %139 = vector.multi_reduction <add>, %138, %cst_58 [1] : vector<16x32xf32> to vector<16xf32>
    %140 = vector.shape_cast %139 : vector<16xf32> to vector<16x1xf32>
    %cst_59 = arith.constant 3.200000e+01 : f32
    %141 = vector.broadcast %cst_59 : f32 to vector<16x1xf32>
    %142 = arith.divf %140, %141 : vector<16x1xf32>
    %143 = vector.broadcast %142 : vector<16x1xf32> to vector<16x32xf32>
    %144 = arith.subf %138, %143 : vector<16x32xf32>
    %145 = arith.mulf %144, %144 : vector<16x32xf32>
    %cst_60 = arith.constant dense<0.000000e+00> : vector<16xf32>
    %146 = vector.multi_reduction <add>, %145, %cst_60 [1] : vector<16x32xf32> to vector<16xf32>
    %147 = vector.shape_cast %146 : vector<16xf32> to vector<16x1xf32>
    %cst_61 = arith.constant 3.200000e+01 : f32
    %148 = vector.broadcast %cst_61 : f32 to vector<16x1xf32>
    %149 = arith.divf %147, %148 : vector<16x1xf32>
    %cst_62 = arith.constant 9.99999997E-7 : f32
    %150 = vector.broadcast %cst_62 : f32 to vector<16x1xf32>
    %151 = arith.addf %149, %150 : vector<16x1xf32>
    %152 = math.rsqrt %151 : vector<16x1xf32>
    %153 = vector.broadcast %152 : vector<16x1xf32> to vector<16x32xf32>
    %154 = arith.mulf %144, %153 : vector<16x32xf32>
    %155 = vector.shape_cast %4 : vector<32xf32> to vector<1x32xf32>
    %156 = vector.broadcast %155 : vector<1x32xf32> to vector<16x32xf32>
    %157 = arith.mulf %154, %156 : vector<16x32xf32>
    %158 = vector.shape_cast %6 : vector<32xf32> to vector<1x32xf32>
    %159 = vector.broadcast %158 : vector<1x32xf32> to vector<16x32xf32>
    %160 = arith.addf %157, %159 : vector<16x32xf32>
    %cst_63 = arith.constant dense<0.000000e+00> : vector<16x64xf32>
    %161 = tpu.matmul %160, %16, %cst_63 {dimension_numbers = #tpu.dot_dimension_numbers<[1], [0], [0], [1], [0, 0, 1, 1], [], []>} : vector<16x32xf32>, vector<32x64xf32>, vector<16x64xf32> -> vector<16x64xf32>
    %162 = vector.shape_cast %18 : vector<64xf32> to vector<1x64xf32>
    %163 = vector.broadcast %162 : vector<1x64xf32> to vector<16x64xf32>
    %164 = arith.addf %161, %163 : vector<16x64xf32>
    %cst_64 = arith.constant 0.000000e+00 : f32
    %165 = vector.broadcast %cst_64 : f32 to vector<16x64xf32>
    %166 = arith.maximumf %164, %165 : vector<16x64xf32>
    %cst_65 = arith.constant dense<0.000000e+00> : vector<16x32xf32>
    %167 = tpu.matmul %166, %20, %cst_65 {dimension_numbers = #tpu.dot_dimension_numbers<[1], [0], [0], [1], [0, 0, 1, 1], [], []>} : vector<16x64xf32>, vector<64x32xf32>, vector<16x32xf32> -> vector<16x32xf32>
    %168 = vector.shape_cast %22 : vector<32xf32> to vector<1x32xf32>
    %169 = vector.broadcast %168 : vector<1x32xf32> to vector<16x32xf32>
    %170 = arith.addf %167, %169 : vector<16x32xf32>
    %171 = arith.addf %138, %170 : vector<16x32xf32>
    %c1 = arith.constant 1 : index
    %c0_66 = arith.constant 0 : index
    %172 = vector.load %arg2[%c1, %c0_66] : memref<3x32xf32, #tpu.memory_space<vmem>>, vector<1x32xf32>
    %173 = vector.shape_cast %172 : vector<1x32xf32> to vector<32xf32>
    %c1_67 = arith.constant 1 : index
    %c0_68 = arith.constant 0 : index
    %174 = vector.load %arg3[%c1_67, %c0_68] : memref<3x32xf32, #tpu.memory_space<vmem>>, vector<1x32xf32>
    %175 = vector.shape_cast %174 : vector<1x32xf32> to vector<32xf32>
    %c1_69 = arith.constant 1 : index
    %c0_70 = arith.constant 0 : index
    %c0_71 = arith.constant 0 : index
    %176 = vector.load %arg4[%c1_69, %c0_70, %c0_71] : memref<2x32x32xf32, #tpu.memory_space<vmem>>, vector<1x32x32xf32>
    %177 = vector.shape_cast %176 : vector<1x32x32xf32> to vector<32x32xf32>
    %c1_72 = arith.constant 1 : index
    %c0_73 = arith.constant 0 : index
    %c0_74 = arith.constant 0 : index
    %178 = vector.load %arg5[%c1_72, %c0_73, %c0_74] : memref<2x32x32xf32, #tpu.memory_space<vmem>>, vector<1x32x32xf32>
    %179 = vector.shape_cast %178 : vector<1x32x32xf32> to vector<32x32xf32>
    %c1_75 = arith.constant 1 : index
    %c0_76 = arith.constant 0 : index
    %c0_77 = arith.constant 0 : index
    %180 = vector.load %arg6[%c1_75, %c0_76, %c0_77] : memref<2x32x32xf32, #tpu.memory_space<vmem>>, vector<1x32x32xf32>
    %181 = vector.shape_cast %180 : vector<1x32x32xf32> to vector<32x32xf32>
    %c1_78 = arith.constant 1 : index
    %c0_79 = arith.constant 0 : index
    %c0_80 = arith.constant 0 : index
    %182 = vector.load %arg7[%c1_78, %c0_79, %c0_80] : memref<2x32x32xf32, #tpu.memory_space<vmem>>, vector<1x32x32xf32>
    %183 = vector.shape_cast %182 : vector<1x32x32xf32> to vector<32x32xf32>
    %c1_81 = arith.constant 1 : index
    %c0_82 = arith.constant 0 : index
    %c0_83 = arith.constant 0 : index
    %184 = vector.load %arg8[%c1_81, %c0_82, %c0_83] : memref<2x32x64xf32, #tpu.memory_space<vmem>>, vector<1x32x64xf32>
    %185 = vector.shape_cast %184 : vector<1x32x64xf32> to vector<32x64xf32>
    %c1_84 = arith.constant 1 : index
    %c0_85 = arith.constant 0 : index
    %186 = vector.load %arg9[%c1_84, %c0_85] : memref<2x64xf32, #tpu.memory_space<vmem>>, vector<1x64xf32>
    %187 = vector.shape_cast %186 : vector<1x64xf32> to vector<64xf32>
    %c1_86 = arith.constant 1 : index
    %c0_87 = arith.constant 0 : index
    %c0_88 = arith.constant 0 : index
    %188 = vector.load %arg10[%c1_86, %c0_87, %c0_88] : memref<2x64x32xf32, #tpu.memory_space<vmem>>, vector<1x64x32xf32>
    %189 = vector.shape_cast %188 : vector<1x64x32xf32> to vector<64x32xf32>
    %c1_89 = arith.constant 1 : index
    %c0_90 = arith.constant 0 : index
    %190 = vector.load %arg11[%c1_89, %c0_90] : memref<2x32xf32, #tpu.memory_space<vmem>>, vector<1x32xf32>
    %191 = vector.shape_cast %190 : vector<1x32xf32> to vector<32xf32>
    %cst_91 = arith.constant dense<0.000000e+00> : vector<16xf32>
    %192 = vector.multi_reduction <add>, %171, %cst_91 [1] : vector<16x32xf32> to vector<16xf32>
    %193 = vector.shape_cast %192 : vector<16xf32> to vector<16x1xf32>
    %cst_92 = arith.constant 3.200000e+01 : f32
    %194 = vector.broadcast %cst_92 : f32 to vector<16x1xf32>
    %195 = arith.divf %193, %194 : vector<16x1xf32>
    %196 = vector.broadcast %195 : vector<16x1xf32> to vector<16x32xf32>
    %197 = arith.subf %171, %196 : vector<16x32xf32>
    %198 = arith.mulf %197, %197 : vector<16x32xf32>
    %cst_93 = arith.constant dense<0.000000e+00> : vector<16xf32>
    %199 = vector.multi_reduction <add>, %198, %cst_93 [1] : vector<16x32xf32> to vector<16xf32>
    %200 = vector.shape_cast %199 : vector<16xf32> to vector<16x1xf32>
    %cst_94 = arith.constant 3.200000e+01 : f32
    %201 = vector.broadcast %cst_94 : f32 to vector<16x1xf32>
    %202 = arith.divf %200, %201 : vector<16x1xf32>
    %cst_95 = arith.constant 9.99999997E-7 : f32
    %203 = vector.broadcast %cst_95 : f32 to vector<16x1xf32>
    %204 = arith.addf %202, %203 : vector<16x1xf32>
    %205 = math.rsqrt %204 : vector<16x1xf32>
    %206 = vector.broadcast %205 : vector<16x1xf32> to vector<16x32xf32>
    %207 = arith.mulf %197, %206 : vector<16x32xf32>
    %208 = vector.shape_cast %173 : vector<32xf32> to vector<1x32xf32>
    %209 = vector.broadcast %208 : vector<1x32xf32> to vector<16x32xf32>
    %210 = arith.mulf %207, %209 : vector<16x32xf32>
    %211 = vector.shape_cast %175 : vector<32xf32> to vector<1x32xf32>
    %212 = vector.broadcast %211 : vector<1x32xf32> to vector<16x32xf32>
    %213 = arith.addf %210, %212 : vector<16x32xf32>
    %cst_96 = arith.constant dense<0.000000e+00> : vector<16x32xf32>
    %214 = tpu.matmul %213, %177, %cst_96 {dimension_numbers = #tpu.dot_dimension_numbers<[1], [0], [0], [1], [0, 0, 1, 1], [], []>} : vector<16x32xf32>, vector<32x32xf32>, vector<16x32xf32> -> vector<16x32xf32>
    %cst_97 = arith.constant 0.353553385 : f32
    %215 = vector.broadcast %cst_97 : f32 to vector<16x32xf32>
    %216 = arith.mulf %214, %215 : vector<16x32xf32>
    %cst_98 = arith.constant dense<0.000000e+00> : vector<16x32xf32>
    %217 = tpu.matmul %213, %179, %cst_98 {dimension_numbers = #tpu.dot_dimension_numbers<[1], [0], [0], [1], [0, 0, 1, 1], [], []>} : vector<16x32xf32>, vector<32x32xf32>, vector<16x32xf32> -> vector<16x32xf32>
    %cst_99 = arith.constant dense<0.000000e+00> : vector<16x32xf32>
    %218 = tpu.matmul %213, %181, %cst_99 {dimension_numbers = #tpu.dot_dimension_numbers<[1], [0], [0], [1], [0, 0, 1, 1], [], []>} : vector<16x32xf32>, vector<32x32xf32>, vector<16x32xf32> -> vector<16x32xf32>
    %219 = vector.shape_cast %216 : vector<16x32xf32> to vector<2x8x32xf32>
    %220 = vector.shape_cast %217 : vector<16x32xf32> to vector<2x8x32xf32>
    %221 = vector.shape_cast %218 : vector<16x32xf32> to vector<2x8x32xf32>
    %cst_100 = arith.constant 0.000000e+00 : f32
    %222 = vector.broadcast %cst_100 : f32 to vector<16x32xf32>
    %223 = vector.extract_strided_slice %219 {offsets = [0, 0, 0], sizes = [2, 8, 8], strides = [1, 1, 1]} : vector<2x8x32xf32> to vector<2x8x8xf32>
    %224 = vector.extract_strided_slice %220 {offsets = [0, 0, 0], sizes = [2, 8, 8], strides = [1, 1, 1]} : vector<2x8x32xf32> to vector<2x8x8xf32>
    %225 = vector.extract_strided_slice %221 {offsets = [0, 0, 0], sizes = [2, 8, 8], strides = [1, 1, 1]} : vector<2x8x32xf32> to vector<2x8x8xf32>
    "tpu.trace_start"() <{level = 10 : i32, message = "bqd,bkd->bqk"}> : () -> ()
    %cst_101 = arith.constant dense<0.000000e+00> : vector<2x8x8xf32>
    %226 = tpu.matmul %223, %224, %cst_101 {dimension_numbers = #tpu.dot_dimension_numbers<[2], [2], [1], [1], [0, 0, 0, 1, 1, 1], [0], [0]>} : vector<2x8x8xf32>, vector<2x8x8xf32>, vector<2x8x8xf32> -> vector<2x8x8xf32>
    "tpu.trace_stop"() : () -> ()
    %227 = vector.broadcast %2 : vector<2x1x8xf32> to vector<2x8x8xf32>
    %228 = arith.addf %226, %227 : vector<2x8x8xf32>
    %cst_102 = arith.constant dense<0xFF800000> : vector<2x8xf32>
    %229 = vector.multi_reduction <maximumf>, %228, %cst_102 [2] : vector<2x8x8xf32> to vector<2x8xf32>
    %230 = vector.shape_cast %229 : vector<2x8xf32> to vector<2x8x1xf32>
    %231 = vector.broadcast %230 : vector<2x8x1xf32> to vector<2x8x8xf32>
    %232 = arith.subf %228, %231 : vector<2x8x8xf32>
    %233 = math.exp %232 : vector<2x8x8xf32>
    %cst_103 = arith.constant dense<0.000000e+00> : vector<2x8xf32>
    %234 = vector.multi_reduction <add>, %233, %cst_103 [2] : vector<2x8x8xf32> to vector<2x8xf32>
    %235 = vector.shape_cast %234 : vector<2x8xf32> to vector<2x8x1xf32>
    %236 = tpu.reciprocal %235 {approx = true} : vector<2x8x1xf32> -> vector<2x8x1xf32>
    %237 = vector.broadcast %236 : vector<2x8x1xf32> to vector<2x8x8xf32>
    %238 = arith.mulf %233, %237 : vector<2x8x8xf32>
    "tpu.trace_start"() <{level = 10 : i32, message = "bqk,bkd->bqd"}> : () -> ()
    %cst_104 = arith.constant dense<0.000000e+00> : vector<2x8x8xf32>
    %239 = tpu.matmul %238, %225, %cst_104 {dimension_numbers = #tpu.dot_dimension_numbers<[2], [1], [1], [2], [0, 0, 0, 1, 1, 2], [0], [0]>} : vector<2x8x8xf32>, vector<2x8x8xf32>, vector<2x8x8xf32> -> vector<2x8x8xf32>
    "tpu.trace_stop"() : () -> ()
    %240 = vector.shape_cast %239 : vector<2x8x8xf32> to vector<16x8xf32>
    %241 = vector.extract_strided_slice %183 {offsets = [0, 0], sizes = [8, 32], strides = [1, 1]} : vector<32x32xf32> to vector<8x32xf32>
    %cst_105 = arith.constant dense<0.000000e+00> : vector<16x32xf32>
    %242 = tpu.matmul %240, %241, %cst_105 {dimension_numbers = #tpu.dot_dimension_numbers<[1], [0], [0], [1], [0, 0, 1, 1], [], []>} : vector<16x8xf32>, vector<8x32xf32>, vector<16x32xf32> -> vector<16x32xf32>
    %243 = arith.addf %222, %242 : vector<16x32xf32>
    %244 = vector.extract_strided_slice %219 {offsets = [0, 0, 8], sizes = [2, 8, 8], strides = [1, 1, 1]} : vector<2x8x32xf32> to vector<2x8x8xf32>
    %245 = vector.extract_strided_slice %220 {offsets = [0, 0, 8], sizes = [2, 8, 8], strides = [1, 1, 1]} : vector<2x8x32xf32> to vector<2x8x8xf32>
    %246 = vector.extract_strided_slice %221 {offsets = [0, 0, 8], sizes = [2, 8, 8], strides = [1, 1, 1]} : vector<2x8x32xf32> to vector<2x8x8xf32>
    "tpu.trace_start"() <{level = 10 : i32, message = "bqd,bkd->bqk"}> : () -> ()
    %cst_106 = arith.constant dense<0.000000e+00> : vector<2x8x8xf32>
    %247 = tpu.matmul %244, %245, %cst_106 {dimension_numbers = #tpu.dot_dimension_numbers<[2], [2], [1], [1], [0, 0, 0, 1, 1, 1], [0], [0]>} : vector<2x8x8xf32>, vector<2x8x8xf32>, vector<2x8x8xf32> -> vector<2x8x8xf32>
    "tpu.trace_stop"() : () -> ()
    %248 = vector.broadcast %2 : vector<2x1x8xf32> to vector<2x8x8xf32>
    %249 = arith.addf %247, %248 : vector<2x8x8xf32>
    %cst_107 = arith.constant dense<0xFF800000> : vector<2x8xf32>
    %250 = vector.multi_reduction <maximumf>, %249, %cst_107 [2] : vector<2x8x8xf32> to vector<2x8xf32>
    %251 = vector.shape_cast %250 : vector<2x8xf32> to vector<2x8x1xf32>
    %252 = vector.broadcast %251 : vector<2x8x1xf32> to vector<2x8x8xf32>
    %253 = arith.subf %249, %252 : vector<2x8x8xf32>
    %254 = math.exp %253 : vector<2x8x8xf32>
    %cst_108 = arith.constant dense<0.000000e+00> : vector<2x8xf32>
    %255 = vector.multi_reduction <add>, %254, %cst_108 [2] : vector<2x8x8xf32> to vector<2x8xf32>
    %256 = vector.shape_cast %255 : vector<2x8xf32> to vector<2x8x1xf32>
    %257 = tpu.reciprocal %256 {approx = true} : vector<2x8x1xf32> -> vector<2x8x1xf32>
    %258 = vector.broadcast %257 : vector<2x8x1xf32> to vector<2x8x8xf32>
    %259 = arith.mulf %254, %258 : vector<2x8x8xf32>
    "tpu.trace_start"() <{level = 10 : i32, message = "bqk,bkd->bqd"}> : () -> ()
    %cst_109 = arith.constant dense<0.000000e+00> : vector<2x8x8xf32>
    %260 = tpu.matmul %259, %246, %cst_109 {dimension_numbers = #tpu.dot_dimension_numbers<[2], [1], [1], [2], [0, 0, 0, 1, 1, 2], [0], [0]>} : vector<2x8x8xf32>, vector<2x8x8xf32>, vector<2x8x8xf32> -> vector<2x8x8xf32>
    "tpu.trace_stop"() : () -> ()
    %261 = vector.shape_cast %260 : vector<2x8x8xf32> to vector<16x8xf32>
    %262 = vector.extract_strided_slice %183 {offsets = [8, 0], sizes = [8, 32], strides = [1, 1]} : vector<32x32xf32> to vector<8x32xf32>
    %cst_110 = arith.constant dense<0.000000e+00> : vector<16x32xf32>
    %263 = tpu.matmul %261, %262, %cst_110 {dimension_numbers = #tpu.dot_dimension_numbers<[1], [0], [0], [1], [0, 0, 1, 1], [], []>} : vector<16x8xf32>, vector<8x32xf32>, vector<16x32xf32> -> vector<16x32xf32>
    %264 = arith.addf %243, %263 : vector<16x32xf32>
    %265 = vector.extract_strided_slice %219 {offsets = [0, 0, 16], sizes = [2, 8, 8], strides = [1, 1, 1]} : vector<2x8x32xf32> to vector<2x8x8xf32>
    %266 = vector.extract_strided_slice %220 {offsets = [0, 0, 16], sizes = [2, 8, 8], strides = [1, 1, 1]} : vector<2x8x32xf32> to vector<2x8x8xf32>
    %267 = vector.extract_strided_slice %221 {offsets = [0, 0, 16], sizes = [2, 8, 8], strides = [1, 1, 1]} : vector<2x8x32xf32> to vector<2x8x8xf32>
    "tpu.trace_start"() <{level = 10 : i32, message = "bqd,bkd->bqk"}> : () -> ()
    %cst_111 = arith.constant dense<0.000000e+00> : vector<2x8x8xf32>
    %268 = tpu.matmul %265, %266, %cst_111 {dimension_numbers = #tpu.dot_dimension_numbers<[2], [2], [1], [1], [0, 0, 0, 1, 1, 1], [0], [0]>} : vector<2x8x8xf32>, vector<2x8x8xf32>, vector<2x8x8xf32> -> vector<2x8x8xf32>
    "tpu.trace_stop"() : () -> ()
    %269 = vector.broadcast %2 : vector<2x1x8xf32> to vector<2x8x8xf32>
    %270 = arith.addf %268, %269 : vector<2x8x8xf32>
    %cst_112 = arith.constant dense<0xFF800000> : vector<2x8xf32>
    %271 = vector.multi_reduction <maximumf>, %270, %cst_112 [2] : vector<2x8x8xf32> to vector<2x8xf32>
    %272 = vector.shape_cast %271 : vector<2x8xf32> to vector<2x8x1xf32>
    %273 = vector.broadcast %272 : vector<2x8x1xf32> to vector<2x8x8xf32>
    %274 = arith.subf %270, %273 : vector<2x8x8xf32>
    %275 = math.exp %274 : vector<2x8x8xf32>
    %cst_113 = arith.constant dense<0.000000e+00> : vector<2x8xf32>
    %276 = vector.multi_reduction <add>, %275, %cst_113 [2] : vector<2x8x8xf32> to vector<2x8xf32>
    %277 = vector.shape_cast %276 : vector<2x8xf32> to vector<2x8x1xf32>
    %278 = tpu.reciprocal %277 {approx = true} : vector<2x8x1xf32> -> vector<2x8x1xf32>
    %279 = vector.broadcast %278 : vector<2x8x1xf32> to vector<2x8x8xf32>
    %280 = arith.mulf %275, %279 : vector<2x8x8xf32>
    "tpu.trace_start"() <{level = 10 : i32, message = "bqk,bkd->bqd"}> : () -> ()
    %cst_114 = arith.constant dense<0.000000e+00> : vector<2x8x8xf32>
    %281 = tpu.matmul %280, %267, %cst_114 {dimension_numbers = #tpu.dot_dimension_numbers<[2], [1], [1], [2], [0, 0, 0, 1, 1, 2], [0], [0]>} : vector<2x8x8xf32>, vector<2x8x8xf32>, vector<2x8x8xf32> -> vector<2x8x8xf32>
    "tpu.trace_stop"() : () -> ()
    %282 = vector.shape_cast %281 : vector<2x8x8xf32> to vector<16x8xf32>
    %283 = vector.extract_strided_slice %183 {offsets = [16, 0], sizes = [8, 32], strides = [1, 1]} : vector<32x32xf32> to vector<8x32xf32>
    %cst_115 = arith.constant dense<0.000000e+00> : vector<16x32xf32>
    %284 = tpu.matmul %282, %283, %cst_115 {dimension_numbers = #tpu.dot_dimension_numbers<[1], [0], [0], [1], [0, 0, 1, 1], [], []>} : vector<16x8xf32>, vector<8x32xf32>, vector<16x32xf32> -> vector<16x32xf32>
    %285 = arith.addf %264, %284 : vector<16x32xf32>
    %286 = vector.extract_strided_slice %219 {offsets = [0, 0, 24], sizes = [2, 8, 8], strides = [1, 1, 1]} : vector<2x8x32xf32> to vector<2x8x8xf32>
    %287 = vector.extract_strided_slice %220 {offsets = [0, 0, 24], sizes = [2, 8, 8], strides = [1, 1, 1]} : vector<2x8x32xf32> to vector<2x8x8xf32>
    %288 = vector.extract_strided_slice %221 {offsets = [0, 0, 24], sizes = [2, 8, 8], strides = [1, 1, 1]} : vector<2x8x32xf32> to vector<2x8x8xf32>
    "tpu.trace_start"() <{level = 10 : i32, message = "bqd,bkd->bqk"}> : () -> ()
    %cst_116 = arith.constant dense<0.000000e+00> : vector<2x8x8xf32>
    %289 = tpu.matmul %286, %287, %cst_116 {dimension_numbers = #tpu.dot_dimension_numbers<[2], [2], [1], [1], [0, 0, 0, 1, 1, 1], [0], [0]>} : vector<2x8x8xf32>, vector<2x8x8xf32>, vector<2x8x8xf32> -> vector<2x8x8xf32>
    "tpu.trace_stop"() : () -> ()
    %290 = vector.broadcast %2 : vector<2x1x8xf32> to vector<2x8x8xf32>
    %291 = arith.addf %289, %290 : vector<2x8x8xf32>
    %cst_117 = arith.constant dense<0xFF800000> : vector<2x8xf32>
    %292 = vector.multi_reduction <maximumf>, %291, %cst_117 [2] : vector<2x8x8xf32> to vector<2x8xf32>
    %293 = vector.shape_cast %292 : vector<2x8xf32> to vector<2x8x1xf32>
    %294 = vector.broadcast %293 : vector<2x8x1xf32> to vector<2x8x8xf32>
    %295 = arith.subf %291, %294 : vector<2x8x8xf32>
    %296 = math.exp %295 : vector<2x8x8xf32>
    %cst_118 = arith.constant dense<0.000000e+00> : vector<2x8xf32>
    %297 = vector.multi_reduction <add>, %296, %cst_118 [2] : vector<2x8x8xf32> to vector<2x8xf32>
    %298 = vector.shape_cast %297 : vector<2x8xf32> to vector<2x8x1xf32>
    %299 = tpu.reciprocal %298 {approx = true} : vector<2x8x1xf32> -> vector<2x8x1xf32>
    %300 = vector.broadcast %299 : vector<2x8x1xf32> to vector<2x8x8xf32>
    %301 = arith.mulf %296, %300 : vector<2x8x8xf32>
    "tpu.trace_start"() <{level = 10 : i32, message = "bqk,bkd->bqd"}> : () -> ()
    %cst_119 = arith.constant dense<0.000000e+00> : vector<2x8x8xf32>
    %302 = tpu.matmul %301, %288, %cst_119 {dimension_numbers = #tpu.dot_dimension_numbers<[2], [1], [1], [2], [0, 0, 0, 1, 1, 2], [0], [0]>} : vector<2x8x8xf32>, vector<2x8x8xf32>, vector<2x8x8xf32> -> vector<2x8x8xf32>
    "tpu.trace_stop"() : () -> ()
    %303 = vector.shape_cast %302 : vector<2x8x8xf32> to vector<16x8xf32>
    %304 = vector.extract_strided_slice %183 {offsets = [24, 0], sizes = [8, 32], strides = [1, 1]} : vector<32x32xf32> to vector<8x32xf32>
    %cst_120 = arith.constant dense<0.000000e+00> : vector<16x32xf32>
    %305 = tpu.matmul %303, %304, %cst_120 {dimension_numbers = #tpu.dot_dimension_numbers<[1], [0], [0], [1], [0, 0, 1, 1], [], []>} : vector<16x8xf32>, vector<8x32xf32>, vector<16x32xf32> -> vector<16x32xf32>
    %306 = arith.addf %285, %305 : vector<16x32xf32>
    %307 = arith.addf %171, %306 : vector<16x32xf32>
    %cst_121 = arith.constant dense<0.000000e+00> : vector<16xf32>
    %308 = vector.multi_reduction <add>, %307, %cst_121 [1] : vector<16x32xf32> to vector<16xf32>
    %309 = vector.shape_cast %308 : vector<16xf32> to vector<16x1xf32>
    %cst_122 = arith.constant 3.200000e+01 : f32
    %310 = vector.broadcast %cst_122 : f32 to vector<16x1xf32>
    %311 = arith.divf %309, %310 : vector<16x1xf32>
    %312 = vector.broadcast %311 : vector<16x1xf32> to vector<16x32xf32>
    %313 = arith.subf %307, %312 : vector<16x32xf32>
    %314 = arith.mulf %313, %313 : vector<16x32xf32>
    %cst_123 = arith.constant dense<0.000000e+00> : vector<16xf32>
    %315 = vector.multi_reduction <add>, %314, %cst_123 [1] : vector<16x32xf32> to vector<16xf32>
    %316 = vector.shape_cast %315 : vector<16xf32> to vector<16x1xf32>
    %cst_124 = arith.constant 3.200000e+01 : f32
    %317 = vector.broadcast %cst_124 : f32 to vector<16x1xf32>
    %318 = arith.divf %316, %317 : vector<16x1xf32>
    %cst_125 = arith.constant 9.99999997E-7 : f32
    %319 = vector.broadcast %cst_125 : f32 to vector<16x1xf32>
    %320 = arith.addf %318, %319 : vector<16x1xf32>
    %321 = math.rsqrt %320 : vector<16x1xf32>
    %322 = vector.broadcast %321 : vector<16x1xf32> to vector<16x32xf32>
    %323 = arith.mulf %313, %322 : vector<16x32xf32>
    %324 = vector.shape_cast %173 : vector<32xf32> to vector<1x32xf32>
    %325 = vector.broadcast %324 : vector<1x32xf32> to vector<16x32xf32>
    %326 = arith.mulf %323, %325 : vector<16x32xf32>
    %327 = vector.shape_cast %175 : vector<32xf32> to vector<1x32xf32>
    %328 = vector.broadcast %327 : vector<1x32xf32> to vector<16x32xf32>
    %329 = arith.addf %326, %328 : vector<16x32xf32>
    %cst_126 = arith.constant dense<0.000000e+00> : vector<16x64xf32>
    %330 = tpu.matmul %329, %185, %cst_126 {dimension_numbers = #tpu.dot_dimension_numbers<[1], [0], [0], [1], [0, 0, 1, 1], [], []>} : vector<16x32xf32>, vector<32x64xf32>, vector<16x64xf32> -> vector<16x64xf32>
    %331 = vector.shape_cast %187 : vector<64xf32> to vector<1x64xf32>
    %332 = vector.broadcast %331 : vector<1x64xf32> to vector<16x64xf32>
    %333 = arith.addf %330, %332 : vector<16x64xf32>
    %cst_127 = arith.constant 0.000000e+00 : f32
    %334 = vector.broadcast %cst_127 : f32 to vector<16x64xf32>
    %335 = arith.maximumf %333, %334 : vector<16x64xf32>
    %cst_128 = arith.constant dense<0.000000e+00> : vector<16x32xf32>
    %336 = tpu.matmul %335, %189, %cst_128 {dimension_numbers = #tpu.dot_dimension_numbers<[1], [0], [0], [1], [0, 0, 1, 1], [], []>} : vector<16x64xf32>, vector<64x32xf32>, vector<16x32xf32> -> vector<16x32xf32>
    %337 = vector.shape_cast %191 : vector<32xf32> to vector<1x32xf32>
    %338 = vector.broadcast %337 : vector<1x32xf32> to vector<16x32xf32>
    %339 = arith.addf %336, %338 : vector<16x32xf32>
    %340 = arith.addf %307, %339 : vector<16x32xf32>
    %c2 = arith.constant 2 : index
    %c0_129 = arith.constant 0 : index
    %341 = vector.load %arg2[%c2, %c0_129] : memref<3x32xf32, #tpu.memory_space<vmem>>, vector<1x32xf32>
    %342 = vector.shape_cast %341 : vector<1x32xf32> to vector<32xf32>
    %c2_130 = arith.constant 2 : index
    %c0_131 = arith.constant 0 : index
    %343 = vector.load %arg3[%c2_130, %c0_131] : memref<3x32xf32, #tpu.memory_space<vmem>>, vector<1x32xf32>
    %344 = vector.shape_cast %343 : vector<1x32xf32> to vector<32xf32>
    %cst_132 = arith.constant dense<0.000000e+00> : vector<16xf32>
    %345 = vector.multi_reduction <add>, %340, %cst_132 [1] : vector<16x32xf32> to vector<16xf32>
    %346 = vector.shape_cast %345 : vector<16xf32> to vector<16x1xf32>
    %cst_133 = arith.constant 3.200000e+01 : f32
    %347 = vector.broadcast %cst_133 : f32 to vector<16x1xf32>
    %348 = arith.divf %346, %347 : vector<16x1xf32>
    %349 = vector.broadcast %348 : vector<16x1xf32> to vector<16x32xf32>
    %350 = arith.subf %340, %349 : vector<16x32xf32>
    %351 = arith.mulf %350, %350 : vector<16x32xf32>
    %cst_134 = arith.constant dense<0.000000e+00> : vector<16xf32>
    %352 = vector.multi_reduction <add>, %351, %cst_134 [1] : vector<16x32xf32> to vector<16xf32>
    %353 = vector.shape_cast %352 : vector<16xf32> to vector<16x1xf32>
    %cst_135 = arith.constant 3.200000e+01 : f32
    %354 = vector.broadcast %cst_135 : f32 to vector<16x1xf32>
    %355 = arith.divf %353, %354 : vector<16x1xf32>
    %cst_136 = arith.constant 9.99999997E-7 : f32
    %356 = vector.broadcast %cst_136 : f32 to vector<16x1xf32>
    %357 = arith.addf %355, %356 : vector<16x1xf32>
    %358 = math.rsqrt %357 : vector<16x1xf32>
    %359 = vector.broadcast %358 : vector<16x1xf32> to vector<16x32xf32>
    %360 = arith.mulf %350, %359 : vector<16x32xf32>
    %361 = vector.shape_cast %342 : vector<32xf32> to vector<1x32xf32>
    %362 = vector.broadcast %361 : vector<1x32xf32> to vector<16x32xf32>
    %363 = arith.mulf %360, %362 : vector<16x32xf32>
    %364 = vector.shape_cast %344 : vector<32xf32> to vector<1x32xf32>
    %365 = vector.broadcast %364 : vector<1x32xf32> to vector<16x32xf32>
    %366 = arith.addf %363, %365 : vector<16x32xf32>
    %c0_137 = arith.constant 0 : index
    %c0_138 = arith.constant 0 : index
    %367 = vector.load %arg12[%c0_137, %c0_138] : memref<16x32xf32, #tpu.memory_space<vmem>>, vector<16x32xf32>
    tpu.vector_store %arg12[%c0_137, %c0_138], %366 {strides = array<i32>} : memref<16x32xf32, #tpu.memory_space<vmem>>, vector<16x32xf32>,
    return
  }
}

</mosaic_0001>

<llo_original>
// kernel: encoder_forward.1
$region0: #{encoder_forward.1}
  #allocation0 [shape = 'u32[]', space=smem, size = 0x4, offset = 0x4, fixed_abs, tag = 'smem constant byte address 0x4 - core index']
  #allocation1 [shape = 'u32[144,128]{1,0:T(1,128)}', space=vmem, size = 0x12000, scoped, tag = 'internal scratch']
  %s0 = inlined_call_operand.vmem [shape: f32[16,32], index: 0, kind: input, shape index: {}]
  %s1 = inlined_call_operand.vmem [shape: f32[2,8], index: 1, kind: input, shape index: {}]
  %s2 = inlined_call_operand.vmem [shape: f32[3,32], index: 2, kind: input, shape index: {}]
  %s3 = inlined_call_operand.vmem [shape: f32[3,32], index: 3, kind: input, shape index: {}]
  %s4 = inlined_call_operand.vmem [shape: f32[2,32,32], index: 4, kind: input, shape index: {}]
  %s5 = inlined_call_operand.vmem [shape: f32[2,32,32], index: 5, kind: input, shape index: {}]
  %s6 = inlined_call_operand.vmem [shape: f32[2,32,32], index: 6, kind: input, shape index: {}]
  %s7 = inlined_call_operand.vmem [shape: f32[2,32,32], index: 7, kind: input, shape index: {}]
  %s8 = inlined_call_operand.vmem [shape: f32[2,32,64], index: 8, kind: input, shape index: {}]
  %s9 = inlined_call_operand.vmem [shape: f32[2,64], index: 9, kind: input, shape index: {}]
  %s10 = inlined_call_operand.vmem [shape: f32[2,64,32], index: 10, kind: input, shape index: {}]
  %s11 = inlined_call_operand.vmem [shape: f32[2,32], index: 11, kind: input, shape index: {}]
  %s12 = inlined_call_operand.hbm [shape: f32[16,32], index: 12, kind: output, shape index: {}]
  %s13 = sld [smem:[#allocation0]]
  $region58: #{encoder_forward.1} parent=0
    _
  %s15 = ssub.s32 1, %s13
  %s16 = scalar_select 0, %s15, %s13
  $region1: #{encoder_forward.1} parent=0
    #allocation2 [shape = 'u8[8192]{0}', space=vmem, size = 0x2000, scoped, tag = 'output window, operand 0, single buffered']
    #allocation3 [shape = 's32[1]{0}', space=sflag, size = 0x4, scoped, tag = 'scoped memory for encoder_forward.1']
    %17 = vsyncpa [#allocation3], 0
    // Predicated region
    $region2: #{encoder_forward.1} parent=1 // pred_check
      _
    $region3: #{encoder_forward.1} parent=1 // pred_check_branch
      %19 = sbr.rel (0) target = $region5
    $region4: #{encoder_forward.1} parent=1 // pred_region
      _
    $region5: #{encoder_forward.1} parent=1 // pred_fallthru
      _
    // Predicated region
    $region6: #{encoder_forward.1} parent=1 // pred_check
      _
    $region7: #{encoder_forward.1} parent=1 // pred_check_branch
      %21 = sbr.rel (0) target = $region9
    $region8: #{encoder_forward.1} parent=1 // pred_region
      _
    $region9: #{encoder_forward.1} parent=1 // pred_fallthru
      _
    // Predicated region
    $region10: #{encoder_forward.1} parent=1 // pred_check
      _
    $region11: #{encoder_forward.1} parent=1 // pred_check_branch
      %23 = sbr.rel (0) target = $region13
    $region12: #{encoder_forward.1} parent=1 // pred_region
      _
    $region13: #{encoder_forward.1} parent=1 // pred_fallthru
      _
    // Predicated region
    $region14: #{encoder_forward.1} parent=1 // pred_check
      _
    $region15: #{encoder_forward.1} parent=1 // pred_check_branch
      %25 = sbr.rel (0) target = $region17
    $region16: #{encoder_forward.1} parent=1 // pred_region
      _
    $region17: #{encoder_forward.1} parent=1 // pred_fallthru
      _
    // Predicated region
    $region18: #{encoder_forward.1} parent=1 // pred_check
      _
    $region19: #{encoder_forward.1} parent=1 // pred_check_branch
      %27 = sbr.rel (0) target = $region21
    $region20: #{encoder_forward.1} parent=1 // pred_region
      _
    $region21: #{encoder_forward.1} parent=1 // pred_fallthru
      _
    // Predicated region
    $region22: #{encoder_forward.1} parent=1 // pred_check
      _
    $region23: #{encoder_forward.1} parent=1 // pred_check_branch
      %29 = sbr.rel (0) target = $region25
    $region24: #{encoder_forward.1} parent=1 // pred_region
      _
    $region25: #{encoder_forward.1} parent=1 // pred_fallthru
      _
    // Predicated region
    $region26: #{encoder_forward.1} parent=1 // pred_check
      _
    $region27: #{encoder_forward.1} parent=1 // pred_check_branch
      %31 = sbr.rel (0) target = $region29
    $region28: #{encoder_forward.1} parent=1 // pred_region
      _
    $region29: #{encoder_forward.1} parent=1 // pred_fallthru
      _
    // Predicated region
    $region30: #{encoder_forward.1} parent=1 // pred_check
      _
    $region31: #{encoder_forward.1} parent=1 // pred_check_branch
      %33 = sbr.rel (0) target = $region33
    $region32: #{encoder_forward.1} parent=1 // pred_region
      _
    $region33: #{encoder_forward.1} parent=1 // pred_fallthru
      _
    // Predicated region
    $region34: #{encoder_forward.1} parent=1 // pred_check
      _
    $region35: #{encoder_forward.1} parent=1 // pred_check_branch
      %35 = sbr.rel (0) target = $region37
    $region36: #{encoder_forward.1} parent=1 // pred_region
      _
    $region37: #{encoder_forward.1} parent=1 // pred_fallthru
      _
    // Predicated region
    $region38: #{encoder_forward.1} parent=1 // pred_check
      _
    $region39: #{encoder_forward.1} parent=1 // pred_check_branch
      %37 = sbr.rel (0) target = $region41
    $region40: #{encoder_forward.1} parent=1 // pred_region
      _
    $region41: #{encoder_forward.1} parent=1 // pred_fallthru
      _
    // Predicated region
    $region42: #{encoder_forward.1} parent=1 // pred_check
      _
    $region43: #{encoder_forward.1} parent=1 // pred_check_branch
      %39 = sbr.rel (0) target = $region45
    $region44: #{encoder_forward.1} parent=1 // pred_region
      _
    $region45: #{encoder_forward.1} parent=1 // pred_fallthru
      _
    // Predicated region
    $region46: #{encoder_forward.1} parent=1 // pred_check
      _
    $region47: #{encoder_forward.1} parent=1 // pred_check_branch
      %41 = sbr.rel (0) target = $region49
    $region48: #{encoder_forward.1} parent=1 // pred_region
      _
    $region49: #{encoder_forward.1} parent=1 // pred_fallthru
      _
    %v42 = vld [vmem:[%s0] sm:$0xff]
    %v43 = vld [vmem:[%s0 + $0x8] sm:$0xff]
    %v44 = vld [vmem:[%s1] sm:$0x3]
    %v47 = vunpack.c.l.s4 1966171168
    %v48 = vunpack.c.0.s8 %v47
    %v49 = vlaneseq
    %v50 = vshrl.u32 %v49, 7
    %v51 = vsub.s32 %v48, %v50
    %v52 = vrot.slane %v44, %v51
    %v53 = vcombine.high %v52, %v52
    %v55 = vunpack.c.l.s4 1966171168
    %v56 = vunpack.c.0.s8 %v55
    %v57 = vlaneseq
    %v58 = vshrl.u32 %v57, 7
    %v59 = vsub.s32 %v56, %v58
    %v60 = vrot.slane %v52, %v59
    %v62 = vunpack.c.l.s4 1966171168
    %v63 = vunpack.c.0.s8 %v62
    %v64 = vlaneseq
    %v65 = vshrl.u32 %v64, 7
    %v66 = vsub.s32 %v63, %v65
    %v67 = vrot.slane %v53, %v66
    %v68 = vld [vmem:[%s2] sm:$0x1]
    %v69 = vld [vmem:[%s3] sm:$0x1]
    %v70 = vld [vmem:[%s4] sm:$0xff]
    %v71 = vld [vmem:[%s4 + $0x8] sm:$0xff]
    %v72 = vld [vmem:[%s4 + $0x10] sm:$0xff]
    %v73 = vld [vmem:[%s4 + $0x18] sm:$0xff]
    %v74 = vld [vmem:[%s5] sm:$0xff]
    %v75 = vld [vmem:[%s5 + $0x8] sm:$0xff]
    %v76 = vld [vmem:[%s5 + $0x10] sm:$0xff]
    %v77 = vld [vmem:[%s5 + $0x18] sm:$0xff]
    %v78 = vld [vmem:[%s6] sm:$0xff]
    %v79 = vld [vmem:[%s6 + $0x8] sm:$0xff]
    %v80 = vld [vmem:[%s6 + $0x10] sm:$0xff]
    %v81 = vld [vmem:[%s6 + $0x18] sm:$0xff]
    %v82 = vld [vmem:[%s7] sm:$0xff]
    %v83 = vld [vmem:[%s7 + $0x8] sm:$0xff]
    %v84 = vld [vmem:[%s7 + $0x10] sm:$0xff]
    %v85 = vld [vmem:[%s7 + $0x18] sm:$0xff]
    %v86 = vld [vmem:[%s8] sm:$0xff]
    %v87 = vld [vmem:[%s8 + $0x8] sm:$0xff]
    %v88 = vld [vmem:[%s8 + $0x10] sm:$0xff]
    %v89 = vld [vmem:[%s8 + $0x18] sm:$0xff]
    %v90 = vld [vmem:[%s9] sm:$0x1]
    %v91 = vld [vmem:[%s10] sm:$0xff]
    %v92 = vld [vmem:[%s10 + $0x8] sm:$0xff]
    %v93 = vld [vmem:[%s10 + $0x10] sm:$0xff]
    %v94 = vld [vmem:[%s10 + $0x18] sm:$0xff]
    %v95 = vld [vmem:[%s10 + $0x20] sm:$0xff]
    %v96 = vld [vmem:[%s10 + $0x28] sm:$0xff]
    %v97 = vld [vmem:[%s10 + $0x30] sm:$0xff]
    %v98 = vld [vmem:[%s10 + $0x38] sm:$0xff]
    %v99 = vld [vmem:[%s11] sm:$0x1]
    %vm100 = vcmask 261120
    %v101 = vsel %vm100, %v42, 0.0
    %102 = vadd.xlane.f32.xlu0 %v101
    %v103 = vpop.xlane.xlu0 %102
    %v104 = vsel %vm100, %v43, 0.0
    %105 = vadd.xlane.f32.xlu0 %v104
    %v106 = vpop.xlane.xlu0 %105
    %v107 = vrcp.pop 32.0
    %v108 = vmul.f32 %v103, %v107
    %v109 = vmul.f32 %v106, %v107
    %v110 = vsub.f32 %v42, %v108
    %v111 = vsub.f32 %v43, %v109
    %v112 = vmul.f32 %v110, %v110
    %v113 = vmul.f32 %v111, %v111
    %v114 = vsel %vm100, %v112, 0.0
    %115 = vadd.xlane.f32.xlu0 %v114
    %v116 = vpop.xlane.xlu0 %115
    %v117 = vsel %vm100, %v113, 0.0
    %118 = vadd.xlane.f32.xlu0 %v117
    %v119 = vpop.xlane.xlu0 %118
    %v120 = vmul.f32 %v116, %v107
    %v121 = vmul.f32 %v119, %v107
    %v122 = vadd.f32 %v120, 1e-06
    %v123 = vadd.f32 %v121, 1e-06
    %v124 = vrsqrt.pop %v122
    %v125 = vrsqrt.pop %v123
    %v126 = vmul.f32 %v110, %v124
    %v127 = vmul.f32 %v111, %v125
    %v128 = vlaneseq
    %v129 = vshrl.u32 %v128, 7
    %v130 = vsub.s32 0, %v129
    %v131 = vrot.slane %v68, %v130
    %v132 = vmul.f32 %v126, %v131
    %v133 = vmul.f32 %v127, %v131
    %v134 = vlaneseq
    %v135 = vshrl.u32 %v134, 7
    %v136 = vsub.s32 0, %v135
    %v137 = vrot.slane %v69, %v136
    %v138 = vadd.f32 %v132, %v137
    %v139 = vadd.f32 %v133, %v137
    %v141 = vsel %vm100, %v138, 0
    %v144 = vsel %vm100, %v139, 0
    %146 = vmatprep.subr.mxu0 0.0
    %147 = vmatpush1.msra.mxu0 %v70
    %148 = vmatprep.subr.mxu0 0.0
    %149 = vmatpush1.msra.mxu0 %v71
    %150 = vmatprep.subr.mxu0 0.0
    %151 = vmatpush1.msra.mxu0 %v72
    %152 = vmatprep.subr.mxu0 0.0
    %153 = vmatpush1.msra.mxu0 %v73
    %154 = vmatprep.subr.mxu0 0.0
    %155 = vmatpush1.msra.mxu0 0.0
    %156 = vmatprep.subr.mxu0 0.0
    %157 = vmatpush1.msra.mxu0 0.0
    %158 = vmatprep.subr.mxu0 0.0
    %159 = vmatpush1.msra.mxu0 0.0
    %160 = vmatprep.subr.mxu0 0.0
    %161 = vmatpush1.msra.mxu0 0.0
    %162 = vmatprep.subr.mxu0 0.0
    %163 = vmatpush1.msra.mxu0 0.0
    %164 = vmatprep.subr.mxu0 0.0
    %165 = vmatpush1.msra.mxu0 0.0
    %166 = vmatprep.subr.mxu0 0.0
    %167 = vmatpush1.msra.mxu0 0.0
    %168 = vmatprep.subr.mxu0 0.0
    %169 = vmatpush1.msra.mxu0 0.0
    %170 = vmatprep.subr.mxu0 0.0
    %171 = vmatpush1.msra.mxu0 0.0
    %172 = vmatprep.subr.mxu0 0.0
    %173 = vmatpush1.msra.mxu0 0.0
    %174 = vmatprep.subr.mxu0 0.0
    %175 = vmatpush1.msra.mxu0 0.0
    %176 = vmatprep.subr.mxu0 0.0
    %177 = vmatpush1.msra.mxu0 0.0
    %178 = vmatprep.subr.mxu0 0.0
    %179 = vmatpush1.msra.mxu0 0.0
    %180 = vmatprep.subr.mxu0 0.0
    %181 = vmatpush1.msra.mxu0 0.0
    %182 = vmatprep.subr.mxu0 0.0
    %183 = vmatpush1.msra.mxu0 0.0
    %184 = vmatprep.subr.mxu0 0.0
    %185 = vmatpush1.msra.mxu0 0.0
    %186 = vmatprep.subr.mxu0 0.0
    %187 = vmatpush1.msra.mxu0 0.0
    %188 = vmatprep.subr.mxu0 0.0
    %189 = vmatpush1.msra.mxu0 0.0
    %190 = vmatprep.subr.mxu0 0.0
    %191 = vmatpush1.msra.mxu0 0.0
    %192 = vmatprep.subr.mxu0 0.0
    %193 = vmatpush1.msra.mxu0 0.0
    %194 = vmatprep.subr.mxu0 0.0
    %195 = vmatpush1.msra.mxu0 0.0
    %196 = vmatprep.subr.mxu0 0.0
    %197 = vmatpush1.msra.mxu0 0.0
    %198 = vmatprep.subr.mxu0 0.0
    %199 = vmatpush1.msra.mxu0 0.0
    %200 = vmatprep.subr.mxu0 0.0
    %201 = vmatpush1.msra.mxu0 0.0
    %202 = vmatprep.subr.mxu0 0.0
    %203 = vmatpush1.msra.mxu0 0.0
    %204 = vmatprep.subr.mxu0 0.0
    %205 = vmatpush1.msra.mxu0 0.0
    %206 = vmatprep.subr.mxu0 0.0
    %207 = vmatpush1.msra.mxu0 0.0
    %208 = vmatprep.subr.mxu0 0.0
    %209 = vmatpush1.msra.mxu0 0.0
    %210 = vmatprep.mubr.f32.mxu0 0.0
    %211 = vmatmul.mubr.f32.gmra.mrb[0].mxu0 %v141
    %v212 = vpop.f32.mrb[0].mxu0
    %v213 = vadd.f32 0.0, %v212
    %v214 = vpop.f32.mrb[0].mxu0
    %215 = vmatprep.mubr.f32.mxu0 0.0
    %216 = vmatmul.mubr.f32.gmra.mrb[0].mxu0 %v144
    %v217 = vpop.f32.mrb[0].mxu0
    %v218 = vadd.f32 0.0, %v217
    %v219 = vpop.f32.mrb[0].mxu0
    %220 = vdwg.mxu0
    %v221 = vmul.f32 %v213, 0.35355338
    %v222 = vmul.f32 %v218, 0.35355338
    %223 = vmatprep.subr.mxu0 0.0
    %224 = vmatpush1.msra.mxu0 %v74
    %225 = vmatprep.subr.mxu0 0.0
    %226 = vmatpush1.msra.mxu0 %v75
    %227 = vmatprep.subr.mxu0 0.0
    %228 = vmatpush1.msra.mxu0 %v76
    %229 = vmatprep.subr.mxu0 0.0
    %230 = vmatpush1.msra.mxu0 %v77
    %231 = vmatprep.subr.mxu0 0.0
    %232 = vmatpush1.msra.mxu0 0.0
    %233 = vmatprep.subr.mxu0 0.0
    %234 = vmatpush1.msra.mxu0 0.0
    %235 = vmatprep.subr.mxu0 0.0
    %236 = vmatpush1.msra.mxu0 0.0
    %237 = vmatprep.subr.mxu0 0.0
    %238 = vmatpush1.msra.mxu0 0.0
    %239 = vmatprep.subr.mxu0 0.0
    %240 = vmatpush1.msra.mxu0 0.0
    %241 = vmatprep.subr.mxu0 0.0
    %242 = vmatpush1.msra.mxu0 0.0
    %243 = vmatprep.subr.mxu0 0.0
    %244 = vmatpush1.msra.mxu0 0.0
    %245 = vmatprep.subr.mxu0 0.0
    %246 = vmatpush1.msra.mxu0 0.0
    %247 = vmatprep.subr.mxu0 0.0
    %248 = vmatpush1.msra.mxu0 0.0
    %249 = vmatprep.subr.mxu0 0.0
    %250 = vmatpush1.msra.mxu0 0.0
    %251 = vmatprep.subr.mxu0 0.0
    %252 = vmatpush1.msra.mxu0 0.0
    %253 = vmatprep.subr.mxu0 0.0
    %254 = vmatpush1.msra.mxu0 0.0
    %255 = vmatprep.subr.mxu0 0.0
    %256 = vmatpush1.msra.mxu0 0.0
    %257 = vmatprep.subr.mxu0 0.0
    %258 = vmatpush1.msra.mxu0 0.0
    %259 = vmatprep.subr.mxu0 0.0
    %260 = vmatpush1.msra.mxu0 0.0
    %261 = vmatprep.subr.mxu0 0.0
    %262 = vmatpush1.msra.mxu0 0.0
    %263 = vmatprep.subr.mxu0 0.0
    %264 = vmatpush1.msra.mxu0 0.0
    %265 = vmatprep.subr.mxu0 0.0
    %266 = vmatpush1.msra.mxu0 0.0
    %267 = vmatprep.subr.mxu0 0.0
    %268 = vmatpush1.msra.mxu0 0.0
    %269 = vmatprep.subr.mxu0 0.0
    %270 = vmatpush1.msra.mxu0 0.0
    %271 = vmatprep.subr.mxu0 0.0
    %272 = vmatpush1.msra.mxu0 0.0
    %273 = vmatprep.subr.mxu0 0.0
    %274 = vmatpush1.msra.mxu0 0.0
    %275 = vmatprep.subr.mxu0 0.0
    %276 = vmatpush1.msra.mxu0 0.0
    %277 = vmatprep.subr.mxu0 0.0
    %278 = vmatpush1.msra.mxu0 0.0
    %279 = vmatprep.subr.mxu0 0.0
    %280 = vmatpush1.msra.mxu0 0.0
    %281 = vmatprep.subr.mxu0 0.0
    %282 = vmatpush1.msra.mxu0 0.0
    %283 = vmatprep.subr.mxu0 0.0
    %284 = vmatpush1.msra.mxu0 0.0
    %285 = vmatprep.subr.mxu0 0.0
    %286 = vmatpush1.msra.mxu0 0.0
    %287 = vmatprep.mubr.f32.mxu0 0.0
    %288 = vmatmul.mubr.f32.gmra.mrb[0].mxu0 %v141
    %v289 = vpop.f32.mrb[0].mxu0
    %v290 = vadd.f32 0.0, %v289
    %v291 = vpop.f32.mrb[0].mxu0
    %292 = vmatprep.mubr.f32.mxu0 0.0
    %293 = vmatmul.mubr.f32.gmra.mrb[0].mxu0 %v144
    %v294 = vpop.f32.mrb[0].mxu0
    %v295 = vadd.f32 0.0, %v294
    %v296 = vpop.f32.mrb[0].mxu0
    %297 = vdwg.mxu0
    %298 = vmatprep.subr.mxu0 0.0
    %299 = vmatpush1.msra.mxu0 %v78
    %300 = vmatprep.subr.mxu0 0.0
    %301 = vmatpush1.msra.mxu0 %v79
    %302 = vmatprep.subr.mxu0 0.0
    %303 = vmatpush1.msra.mxu0 %v80
    %304 = vmatprep.subr.mxu0 0.0
    %305 = vmatpush1.msra.mxu0 %v81
    %306 = vmatprep.subr.mxu0 0.0
    %307 = vmatpush1.msra.mxu0 0.0
    %308 = vmatprep.subr.mxu0 0.0
    %309 = vmatpush1.msra.mxu0 0.0
    %310 = vmatprep.subr.mxu0 0.0
    %311 = vmatpush1.msra.mxu0 0.0
    %312 = vmatprep.subr.mxu0 0.0
    %313 = vmatpush1.msra.mxu0 0.0
    %314 = vmatprep.subr.mxu0 0.0
    %315 = vmatpush1.msra.mxu0 0.0
    %316 = vmatprep.subr.mxu0 0.0
    %317 = vmatpush1.msra.mxu0 0.0
    %318 = vmatprep.subr.mxu0 0.0
    %319 = vmatpush1.msra.mxu0 0.0
    %320 = vmatprep.subr.mxu0 0.0
    %321 = vmatpush1.msra.mxu0 0.0
    %322 = vmatprep.subr.mxu0 0.0
    %323 = vmatpush1.msra.mxu0 0.0
    %324 = vmatprep.subr.mxu0 0.0
    %325 = vmatpush1.msra.mxu0 0.0
    %326 = vmatprep.subr.mxu0 0.0
    %327 = vmatpush1.msra.mxu0 0.0
    %328 = vmatprep.subr.mxu0 0.0
    %329 = vmatpush1.msra.mxu0 0.0
    %330 = vmatprep.subr.mxu0 0.0
    %331 = vmatpush1.msra.mxu0 0.0
    %332 = vmatprep.subr.mxu0 0.0
    %333 = vmatpush1.msra.mxu0 0.0
    %334 = vmatprep.subr.mxu0 0.0
    %335 = vmatpush1.msra.mxu0 0.0
    %336 = vmatprep.subr.mxu0 0.0
    %337 = vmatpush1.msra.mxu0 0.0
    %338 = vmatprep.subr.mxu0 0.0
    %339 = vmatpush1.msra.mxu0 0.0
    %340 = vmatprep.subr.mxu0 0.0
    %341 = vmatpush1.msra.mxu0 0.0
    %342 = vmatprep.subr.mxu0 0.0
    %343 = vmatpush1.msra.mxu0 0.0
    %344 = vmatprep.subr.mxu0 0.0
    %345 = vmatpush1.msra.mxu0 0.0
    %346 = vmatprep.subr.mxu0 0.0
    %347 = vmatpush1.msra.mxu0 0.0
    %348 = vmatprep.subr.mxu0 0.0
    %349 = vmatpush1.msra.mxu0 0.0
    %350 = vmatprep.subr.mxu0 0.0
    %351 = vmatpush1.msra.mxu0 0.0
    %352 = vmatprep.subr.mxu0 0.0
    %353 = vmatpush1.msra.mxu0 0.0
    %354 = vmatprep.subr.mxu0 0.0
    %355 = vmatpush1.msra.mxu0 0.0
    %356 = vmatprep.subr.mxu0 0.0
    %357 = vmatpush1.msra.mxu0 0.0
    %358 = vmatprep.subr.mxu0 0.0
    %359 = vmatpush1.msra.mxu0 0.0
    %360 = vmatprep.subr.mxu0 0.0
    %361 = vmatpush1.msra.mxu0 0.0
    %362 = vmatprep.mubr.f32.mxu0 0.0
    %363 = vmatmul.mubr.f32.gmra.mrb[0].mxu0 %v141
    %v364 = vpop.f32.mrb[0].mxu0
    %v365 = vadd.f32 0.0, %v364
    %v366 = vpop.f32.mrb[0].mxu0
    %367 = vmatprep.mubr.f32.mxu0 0.0
    %368 = vmatmul.mubr.f32.gmra.mrb[0].mxu0 %v144
    %v369 = vpop.f32.mrb[0].mxu0
    %v370 = vadd.f32 0.0, %v369
    %v371 = vpop.f32.mrb[0].mxu0
    %372 = vdwg.mxu0
    %v373 = vlaneseq
    %v374 = vshrl.u32 %v373, 7
    %v375 = vsub.s32 0, %v374
    %v376 = vrot.slane %v60, %v375
    %v377 = vlaneseq
    %v378 = vshrl.u32 %v377, 7
    %v379 = vsub.s32 0, %v378
    %v380 = vrot.slane %v67, %v379
    %vm383 = vcmask 64512
    %v385 = vsel %vm383, %v221, 0
    %v388 = vsel %vm383, %v290, 0
    %390 = vmatprep.subr.mxu0 0.0
    %391 = vmatpush1.xpose.msra.mxu0 %v388
    %392 = vmatprep.subr.mxu0 0.0
    %393 = vmatpush1.xpose.msra.mxu0 0.0
    %394 = vmatprep.subr.mxu0 0.0
    %395 = vmatpush1.xpose.msra.mxu0 0.0
    %396 = vmatprep.subr.mxu0 0.0
    %397 = vmatpush1.xpose.msra.mxu0 0.0
    %398 = vmatprep.subr.mxu0 0.0
    %399 = vmatpush1.xpose.msra.mxu0 0.0
    %400 = vmatprep.subr.mxu0 0.0
    %401 = vmatpush1.xpose.msra.mxu0 0.0
    %402 = vmatprep.subr.mxu0 0.0
    %403 = vmatpush1.xpose.msra.mxu0 0.0
    %404 = vmatprep.subr.mxu0 0.0
    %405 = vmatpush1.xpose.msra.mxu0 0.0
    %406 = vmatprep.subr.mxu0 0.0
    %407 = vmatpush1.xpose.msra.mxu0 0.0
    %408 = vmatprep.subr.mxu0 0.0
    %409 = vmatpush1.xpose.msra.mxu0 0.0
    %410 = vmatprep.subr.mxu0 0.0
    %411 = vmatpush1.xpose.msra.mxu0 0.0
    %412 = vmatprep.subr.mxu0 0.0
    %413 = vmatpush1.xpose.msra.mxu0 0.0
    %414 = vmatprep.subr.mxu0 0.0
    %415 = vmatpush1.xpose.msra.mxu0 0.0
    %416 = vmatprep.subr.mxu0 0.0
    %417 = vmatpush1.xpose.msra.mxu0 0.0
    %418 = vmatprep.subr.mxu0 0.0
    %419 = vmatpush1.xpose.msra.mxu0 0.0
    %420 = vmatprep.subr.mxu0 0.0
    %421 = vmatpush1.xpose.msra.mxu0 0.0
    %422 = vmatprep.subr.mxu0 0.0
    %423 = vmatpush1.xpose.msra.mxu0 0.0
    %424 = vmatprep.subr.mxu0 0.0
    %425 = vmatpush1.xpose.msra.mxu0 0.0
    %426 = vmatprep.subr.mxu0 0.0
    %427 = vmatpush1.xpose.msra.mxu0 0.0
    %428 = vmatprep.subr.mxu0 0.0
    %429 = vmatpush1.xpose.msra.mxu0 0.0
    %430 = vmatprep.subr.mxu0 0.0
    %431 = vmatpush1.xpose.msra.mxu0 0.0
    %432 = vmatprep.subr.mxu0 0.0
    %433 = vmatpush1.xpose.msra.mxu0 0.0
    %434 = vmatprep.subr.mxu0 0.0
    %435 = vmatpush1.xpose.msra.mxu0 0.0
    %436 = vmatprep.subr.mxu0 0.0
    %437 = vmatpush1.xpose.msra.mxu0 0.0
    %438 = vmatprep.subr.mxu0 0.0
    %439 = vmatpush1.xpose.msra.mxu0 0.0
    %440 = vmatprep.subr.mxu0 0.0
    %441 = vmatpush1.xpose.msra.mxu0 0.0
    %442 = vmatprep.subr.mxu0 0.0
    %443 = vmatpush1.xpose.msra.mxu0 0.0
    %444 = vmatprep.subr.mxu0 0.0
    %445 = vmatpush1.xpose.msra.mxu0 0.0
    %446 = vmatprep.subr.mxu0 0.0
    %447 = vmatpush1.xpose.msra.mxu0 0.0
    %448 = vmatprep.subr.mxu0 0.0
    %449 = vmatpush1.xpose.msra.mxu0 0.0
    %450 = vmatprep.subr.mxu0 0.0
    %451 = vmatpush1.xpose.msra.mxu0 0.0
    %452 = vmatprep.subr.mxu0 0.0
    %453 = vmatpush1.xpose.msra.mxu0 0.0
    %454 = vmatprep.mubr.f32.mxu0 0.0
    %455 = vmatmul.mubr.f32.gmra.mrb[0].mxu0 %v385
    %v456 = vpop.f32.mrb[0].mxu0
    %v457 = vadd.f32 %v376, %v456
    %v458 = vpop.f32.mrb[0].mxu0
    %459 = vdwg.mxu0
    %v461 = vsel %vm383, %v222, 0
    %v464 = vsel %vm383, %v295, 0
    %466 = vmatprep.subr.mxu0 0.0
    %467 = vmatpush1.xpose.msra.mxu0 %v464
    %468 = vmatprep.subr.mxu0 0.0
    %469 = vmatpush1.xpose.msra.mxu0 0.0
    %470 = vmatprep.subr.mxu0 0.0
    %471 = vmatpush1.xpose.msra.mxu0 0.0
    %472 = vmatprep.subr.mxu0 0.0
    %473 = vmatpush1.xpose.msra.mxu0 0.0
    %474 = vmatprep.subr.mxu0 0.0
    %475 = vmatpush1.xpose.msra.mxu0 0.0
    %476 = vmatprep.subr.mxu0 0.0
    %477 = vmatpush1.xpose.msra.mxu0 0.0
    %478 = vmatprep.subr.mxu0 0.0
    %479 = vmatpush1.xpose.msra.mxu0 0.0
    %480 = vmatprep.subr.mxu0 0.0
    %481 = vmatpush1.xpose.msra.mxu0 0.0
    %482 = vmatprep.subr.mxu0 0.0
    %483 = vmatpush1.xpose.msra.mxu0 0.0
    %484 = vmatprep.subr.mxu0 0.0
    %485 = vmatpush1.xpose.msra.mxu0 0.0
    %486 = vmatprep.subr.mxu0 0.0
    %487 = vmatpush1.xpose.msra.mxu0 0.0
    %488 = vmatprep.subr.mxu0 0.0
    %489 = vmatpush1.xpose.msra.mxu0 0.0
    %490 = vmatprep.subr.mxu0 0.0
    %491 = vmatpush1.xpose.msra.mxu0 0.0
    %492 = vmatprep.subr.mxu0 0.0
    %493 = vmatpush1.xpose.msra.mxu0 0.0
    %494 = vmatprep.subr.mxu0 0.0
    %495 = vmatpush1.xpose.msra.mxu0 0.0
    %496 = vmatprep.subr.mxu0 0.0
    %497 = vmatpush1.xpose.msra.mxu0 0.0
    %498 = vmatprep.subr.mxu0 0.0
    %499 = vmatpush1.xpose.msra.mxu0 0.0
    %500 = vmatprep.subr.mxu0 0.0
    %501 = vmatpush1.xpose.msra.mxu0 0.0
    %502 = vmatprep.subr.mxu0 0.0
    %503 = vmatpush1.xpose.msra.mxu0 0.0
    %504 = vmatprep.subr.mxu0 0.0
    %505 = vmatpush1.xpose.msra.mxu0 0.0
    %506 = vmatprep.subr.mxu0 0.0
    %507 = vmatpush1.xpose.msra.mxu0 0.0
    %508 = vmatprep.subr.mxu0 0.0
    %509 = vmatpush1.xpose.msra.mxu0 0.0
    %510 = vmatprep.subr.mxu0 0.0
    %511 = vmatpush1.xpose.msra.mxu0 0.0
    %512 = vmatprep.subr.mxu0 0.0
    %513 = vmatpush1.xpose.msra.mxu0 0.0
    %514 = vmatprep.subr.mxu0 0.0
    %515 = vmatpush1.xpose.msra.mxu0 0.0
    %516 = vmatprep.subr.mxu0 0.0
    %517 = vmatpush1.xpose.msra.mxu0 0.0
    %518 = vmatprep.subr.mxu0 0.0
    %519 = vmatpush1.xpose.msra.mxu0 0.0
    %520 = vmatprep.subr.mxu0 0.0
    %521 = vmatpush1.xpose.msra.mxu0 0.0
    %522 = vmatprep.subr.mxu0 0.0
    %523 = vmatpush1.xpose.msra.mxu0 0.0
    %524 = vmatprep.subr.mxu0 0.0
    %525 = vmatpush1.xpose.msra.mxu0 0.0
    %526 = vmatprep.subr.mxu0 0.0
    %527 = vmatpush1.xpose.msra.mxu0 0.0
    %528 = vmatprep.subr.mxu0 0.0
    %529 = vmatpush1.xpose.msra.mxu0 0.0
    %530 = vmatprep.mubr.f32.mxu0 0.0
    %531 = vmatmul.mubr.f32.gmra.mrb[0].mxu0 %v461
    %v532 = vpop.f32.mrb[0].mxu0
    %v533 = vadd.f32 %v380, %v532
    %v534 = vpop.f32.mrb[0].mxu0
    %535 = vdwg.mxu0
    %v536 = vsel %vm383, %v457, -inf
    %537 = vmax.xlane.f32.xlu0 %v536
    %v538 = vpop.xlane.xlu0 %537
    %v539 = vsel %vm383, %v533, -inf
    %540 = vmax.xlane.f32.xlu0 %v539
    %v541 = vpop.xlane.xlu0 %540
    %v542 = vsub.f32 %v457, %v538
    %v543 = vsub.f32 %v533, %v541
    %v544 = vmul.f32 %v542, 1.442695
    %v545 = vpow.pop %v544
    %v546 = vmul.f32 %v543, 1.442695
    %v547 = vpow.pop %v546
    %v548 = vsel %vm383, %v545, 0.0
    %549 = vadd.xlane.f32.xlu0 %v548
    %v550 = vpop.xlane.xlu0 %549
    %v551 = vsel %vm383, %v547, 0.0
    %552 = vadd.xlane.f32.xlu0 %v551
    %v553 = vpop.xlane.xlu0 %552
    %v554 = vrcp.pop %v550
    %v555 = vrcp.pop %v553
    %v556 = vmul.f32 %v545, %v554
    %v557 = vmul.f32 %v547, %v555
    %v559 = vsel %vm383, %v556, 0
    %561 = vmatprep.subr.mxu0 0.0
    %562 = vmatpush1.msra.mxu0 %v365
    %563 = vmatprep.subr.mxu0 0.0
    %564 = vmatpush1.msra.mxu0 0.0
    %565 = vmatprep.subr.mxu0 0.0
    %566 = vmatpush1.msra.mxu0 0.0
    %567 = vmatprep.subr.mxu0 0.0
    %568 = vmatpush1.msra.mxu0 0.0
    %569 = vmatprep.subr.mxu0 0.0
    %570 = vmatpush1.msra.mxu0 0.0
    %571 = vmatprep.subr.mxu0 0.0
    %572 = vmatpush1.msra.mxu0 0.0
    %573 = vmatprep.subr.mxu0 0.0
    %574 = vmatpush1.msra.mxu0 0.0
    %575 = vmatprep.subr.mxu0 0.0
    %576 = vmatpush1.msra.mxu0 0.0
    %577 = vmatprep.subr.mxu0 0.0
    %578 = vmatpush1.msra.mxu0 0.0
    %579 = vmatprep.subr.mxu0 0.0
    %580 = vmatpush1.msra.mxu0 0.0
    %581 = vmatprep.subr.mxu0 0.0
    %582 = vmatpush1.msra.mxu0 0.0
    %583 = vmatprep.subr.mxu0 0.0
    %584 = vmatpush1.msra.mxu0 0.0
    %585 = vmatprep.subr.mxu0 0.0
    %586 = vmatpush1.msra.mxu0 0.0
    %587 = vmatprep.subr.mxu0 0.0
    %588 = vmatpush1.msra.mxu0 0.0
    %589 = vmatprep.subr.mxu0 0.0
    %590 = vmatpush1.msra.mxu0 0.0
    %591 = vmatprep.subr.mxu0 0.0
    %592 = vmatpush1.msra.mxu0 0.0
    %593 = vmatprep.subr.mxu0 0.0
    %594 = vmatpush1.msra.mxu0 0.0
    %595 = vmatprep.subr.mxu0 0.0
    %596 = vmatpush1.msra.mxu0 0.0
    %597 = vmatprep.subr.mxu0 0.0
    %598 = vmatpush1.msra.mxu0 0.0
    %599 = vmatprep.subr.mxu0 0.0
    %600 = vmatpush1.msra.mxu0 0.0
    %601 = vmatprep.subr.mxu0 0.0
    %602 = vmatpush1.msra.mxu0 0.0
    %603 = vmatprep.subr.mxu0 0.0
    %604 = vmatpush1.msra.mxu0 0.0
    %605 = vmatprep.subr.mxu0 0.0
    %606 = vmatpush1.msra.mxu0 0.0
    %607 = vmatprep.subr.mxu0 0.0
    %608 = vmatpush1.msra.mxu0 0.0
    %609 = vmatprep.subr.mxu0 0.0
    %610 = vmatpush1.msra.mxu0 0.0
    %611 = vmatprep.subr.mxu0 0.0
    %612 = vmatpush1.msra.mxu0 0.0
    %613 = vmatprep.subr.mxu0 0.0
    %614 = vmatpush1.msra.mxu0 0.0
    %615 = vmatprep.subr.mxu0 0.0
    %616 = vmatpush1.msra.mxu0 0.0
    %617 = vmatprep.subr.mxu0 0.0
    %618 = vmatpush1.msra.mxu0 0.0
    %619 = vmatprep.subr.mxu0 0.0
    %620 = vmatpush1.msra.mxu0 0.0
    %621 = vmatprep.subr.mxu0 0.0
    %622 = vmatpush1.msra.mxu0 0.0
    %623 = vmatprep.subr.mxu0 0.0
    %624 = vmatpush1.msra.mxu0 0.0
    %625 = vmatprep.mubr.f32.mxu0 0.0
    %626 = vmatmul.mubr.f32.gmra.mrb[0].mxu0 %v559
    %v627 = vpop.f32.mrb[0].mxu0
    %v628 = vadd.f32 0.0, %v627
    %v629 = vpop.f32.mrb[0].mxu0
    %630 = vdwg.mxu0
    %v632 = vsel %vm383, %v557, 0
    %634 = vmatprep.subr.mxu0 0.0
    %635 = vmatpush1.msra.mxu0 %v370
    %636 = vmatprep.subr.mxu0 0.0
    %637 = vmatpush1.msra.mxu0 0.0
    %638 = vmatprep.subr.mxu0 0.0
    %639 = vmatpush1.msra.mxu0 0.0
    %640 = vmatprep.subr.mxu0 0.0
    %641 = vmatpush1.msra.mxu0 0.0
    %642 = vmatprep.subr.mxu0 0.0
    %643 = vmatpush1.msra.mxu0 0.0
    %644 = vmatprep.subr.mxu0 0.0
    %645 = vmatpush1.msra.mxu0 0.0
    %646 = vmatprep.subr.mxu0 0.0
    %647 = vmatpush1.msra.mxu0 0.0
    %648 = vmatprep.subr.mxu0 0.0
    %649 = vmatpush1.msra.mxu0 0.0
    %650 = vmatprep.subr.mxu0 0.0
    %651 = vmatpush1.msra.mxu0 0.0
    %652 = vmatprep.subr.mxu0 0.0
    %653 = vmatpush1.msra.mxu0 0.0
    %654 = vmatprep.subr.mxu0 0.0
    %655 = vmatpush1.msra.mxu0 0.0
    %656 = vmatprep.subr.mxu0 0.0
    %657 = vmatpush1.msra.mxu0 0.0
    %658 = vmatprep.subr.mxu0 0.0
    %659 = vmatpush1.msra.mxu0 0.0
    %660 = vmatprep.subr.mxu0 0.0
    %661 = vmatpush1.msra.mxu0 0.0
    %662 = vmatprep.subr.mxu0 0.0
    %663 = vmatpush1.msra.mxu0 0.0
    %664 = vmatprep.subr.mxu0 0.0
    %665 = vmatpush1.msra.mxu0 0.0
    %666 = vmatprep.subr.mxu0 0.0
    %667 = vmatpush1.msra.mxu0 0.0
    %668 = vmatprep.subr.mxu0 0.0
    %669 = vmatpush1.msra.mxu0 0.0
    %670 = vmatprep.subr.mxu0 0.0
    %671 = vmatpush1.msra.mxu0 0.0
    %672 = vmatprep.subr.mxu0 0.0
    %673 = vmatpush1.msra.mxu0 0.0
    %674 = vmatprep.subr.mxu0 0.0
    %675 = vmatpush1.msra.mxu0 0.0
    %676 = vmatprep.subr.mxu0 0.0
    %677 = vmatpush1.msra.mxu0 0.0
    %678 = vmatprep.subr.mxu0 0.0
    %679 = vmatpush1.msra.mxu0 0.0
    %680 = vmatprep.subr.mxu0 0.0
    %681 = vmatpush1.msra.mxu0 0.0
    %682 = vmatprep.subr.mxu0 0.0
    %683 = vmatpush1.msra.mxu0 0.0
    %684 = vmatprep.subr.mxu0 0.0
    %685 = vmatpush1.msra.mxu0 0.0
    %686 = vmatprep.subr.mxu0 0.0
    %687 = vmatpush1.msra.mxu0 0.0
    %688 = vmatprep.subr.mxu0 0.0
    %689 = vmatpush1.msra.mxu0 0.0
    %690 = vmatprep.subr.mxu0 0.0
    %691 = vmatpush1.msra.mxu0 0.0
    %692 = vmatprep.subr.mxu0 0.0
    %693 = vmatpush1.msra.mxu0 0.0
    %694 = vmatprep.subr.mxu0 0.0
    %695 = vmatpush1.msra.mxu0 0.0
    %696 = vmatprep.subr.mxu0 0.0
    %697 = vmatpush1.msra.mxu0 0.0
    %698 = vmatprep.mubr.f32.mxu0 0.0
    %699 = vmatmul.mubr.f32.gmra.mrb[0].mxu0 %v632
    %v700 = vpop.f32.mrb[0].mxu0
    %v701 = vadd.f32 0.0, %v700
    %v702 = vpop.f32.mrb[0].mxu0
    %703 = vdwg.mxu0
    %704 = vrot.lane.b32.xlu0 %v221, 120
    %v705 = vpop.permute.xlu0 %704
    %706 = vrot.lane.b32.xlu0 %v290, 120
    %v707 = vpop.permute.xlu0 %706
    %v708 = vsel %vm383, %v705, 0
    %v710 = vsel %vm383, %v707, 0
    %712 = vmatprep.subr.mxu0 0.0
    %713 = vmatpush1.xpose.msra.mxu0 %v710
    %714 = vmatprep.subr.mxu0 0.0
    %715 = vmatpush1.xpose.msra.mxu0 0.0
    %716 = vmatprep.subr.mxu0 0.0
    %717 = vmatpush1.xpose.msra.mxu0 0.0
    %718 = vmatprep.subr.mxu0 0.0
    %719 = vmatpush1.xpose.msra.mxu0 0.0
    %720 = vmatprep.subr.mxu0 0.0
    %721 = vmatpush1.xpose.msra.mxu0 0.0
    %722 = vmatprep.subr.mxu0 0.0
    %723 = vmatpush1.xpose.msra.mxu0 0.0
    %724 = vmatprep.subr.mxu0 0.0
    %725 = vmatpush1.xpose.msra.mxu0 0.0
    %726 = vmatprep.subr.mxu0 0.0
    %727 = vmatpush1.xpose.msra.mxu0 0.0
    %728 = vmatprep.subr.mxu0 0.0
    %729 = vmatpush1.xpose.msra.mxu0 0.0
    %730 = vmatprep.subr.mxu0 0.0
    %731 = vmatpush1.xpose.msra.mxu0 0.0
    %732 = vmatprep.subr.mxu0 0.0
    %733 = vmatpush1.xpose.msra.mxu0 0.0
    %734 = vmatprep.subr.mxu0 0.0
    %735 = vmatpush1.xpose.msra.mxu0 0.0
    %736 = vmatprep.subr.mxu0 0.0
    %737 = vmatpush1.xpose.msra.mxu0 0.0
    %738 = vmatprep.subr.mxu0 0.0
    %739 = vmatpush1.xpose.msra.mxu0 0.0
    %740 = vmatprep.subr.mxu0 0.0
    %741 = vmatpush1.xpose.msra.mxu0 0.0
    %742 = vmatprep.subr.mxu0 0.0
    %743 = vmatpush1.xpose.msra.mxu0 0.0
    %744 = vmatprep.subr.mxu0 0.0
    %745 = vmatpush1.xpose.msra.mxu0 0.0
    %746 = vmatprep.subr.mxu0 0.0
    %747 = vmatpush1.xpose.msra.mxu0 0.0
    %748 = vmatprep.subr.mxu0 0.0
    %749 = vmatpush1.xpose.msra.mxu0 0.0
    %750 = vmatprep.subr.mxu0 0.0
    %751 = vmatpush1.xpose.msra.mxu0 0.0
    %752 = vmatprep.subr.mxu0 0.0
    %753 = vmatpush1.xpose.msra.mxu0 0.0
    %754 = vmatprep.subr.mxu0 0.0
    %755 = vmatpush1.xpose.msra.mxu0 0.0
    %756 = vmatprep.subr.mxu0 0.0
    %757 = vmatpush1.xpose.msra.mxu0 0.0
    %758 = vmatprep.subr.mxu0 0.0
    %759 = vmatpush1.xpose.msra.mxu0 0.0
    %760 = vmatprep.subr.mxu0 0.0
    %761 = vmatpush1.xpose.msra.mxu0 0.0
    %762 = vmatprep.subr.mxu0 0.0
    %763 = vmatpush1.xpose.msra.mxu0 0.0
    %764 = vmatprep.subr.mxu0 0.0
    %765 = vmatpush1.xpose.msra.mxu0 0.0
    %766 = vmatprep.subr.mxu0 0.0
    %767 = vmatpush1.xpose.msra.mxu0 0.0
    %768 = vmatprep.subr.mxu0 0.0
    %769 = vmatpush1.xpose.msra.mxu0 0.0
    %770 = vmatprep.subr.mxu0 0.0
    %771 = vmatpush1.xpose.msra.mxu0 0.0
    %772 = vmatprep.subr.mxu0 0.0
    %773 = vmatpush1.xpose.msra.mxu0 0.0
    %774 = vmatprep.subr.mxu0 0.0
    %775 = vmatpush1.xpose.msra.mxu0 0.0
    %776 = vmatprep.mubr.f32.mxu0 0.0
    %777 = vmatmul.mubr.f32.gmra.mrb[0].mxu0 %v708
    %v778 = vpop.f32.mrb[0].mxu0
    %v779 = vadd.f32 %v376, %v778
    %v780 = vpop.f32.mrb[0].mxu0
    %781 = vdwg.mxu0
    %782 = vrot.lane.b32.xlu0 %v222, 120
    %v783 = vpop.permute.xlu0 %782
    %784 = vrot.lane.b32.xlu0 %v295, 120
    %v785 = vpop.permute.xlu0 %784
    %v786 = vsel %vm383, %v783, 0
    %v788 = vsel %vm383, %v785, 0
    %790 = vmatprep.subr.mxu0 0.0
    %791 = vmatpush1.xpose.msra.mxu0 %v788
    %792 = vmatprep.subr.mxu0 0.0
    %793 = vmatpush1.xpose.msra.mxu0 0.0
    %794 = vmatprep.subr.mxu0 0.0
    %795 = vmatpush1.xpose.msra.mxu0 0.0
    %796 = vmatprep.subr.mxu0 0.0
    %797 = vmatpush1.xpose.msra.mxu0 0.0
    %798 = vmatprep.subr.mxu0 0.0
    %799 = vmatpush1.xpose.msra.mxu0 0.0
    %800 = vmatprep.subr.mxu0 0.0
    %801 = vmatpush1.xpose.msra.mxu0 0.0
    %802 = vmatprep.subr.mxu0 0.0
    %803 = vmatpush1.xpose.msra.mxu0 0.0
    %804 = vmatprep.subr.mxu0 0.0
    %805 = vmatpush1.xpose.msra.mxu0 0.0
    %806 = vmatprep.subr.mxu0 0.0
    %807 = vmatpush1.xpose.msra.mxu0 0.0
    %808 = vmatprep.subr.mxu0 0.0
    %809 = vmatpush1.xpose.msra.mxu0 0.0
    %810 = vmatprep.subr.mxu0 0.0
    %811 = vmatpush1.xpose.msra.mxu0 0.0
    %812 = vmatprep.subr.mxu0 0.0
    %813 = vmatpush1.xpose.msra.mxu0 0.0
    %814 = vmatprep.subr.mxu0 0.0
    %815 = vmatpush1.xpose.msra.mxu0 0.0
    %816 = vmatprep.subr.mxu0 0.0
    %817 = vmatpush1.xpose.msra.mxu0 0.0
    %818 = vmatprep.subr.mxu0 0.0
    %819 = vmatpush1.xpose.msra.mxu0 0.0
    %820 = vmatprep.subr.mxu0 0.0
    %821 = vmatpush1.xpose.msra.mxu0 0.0
    %822 = vmatprep.subr.mxu0 0.0
    %823 = vmatpush1.xpose.msra.mxu0 0.0
    %824 = vmatprep.subr.mxu0 0.0
    %825 = vmatpush1.xpose.msra.mxu0 0.0
    %826 = vmatprep.subr.mxu0 0.0
    %827 = vmatpush1.xpose.msra.mxu0 0.0
    %828 = vmatprep.subr.mxu0 0.0
    %829 = vmatpush1.xpose.msra.mxu0 0.0
    %830 = vmatprep.subr.mxu0 0.0
    %831 = vmatpush1.xpose.msra.mxu0 0.0
    %832 = vmatprep.subr.mxu0 0.0
    %833 = vmatpush1.xpose.msra.mxu0 0.0
    %834 = vmatprep.subr.mxu0 0.0
    %835 = vmatpush1.xpose.msra.mxu0 0.0
    %836 = vmatprep.subr.mxu0 0.0
    %837 = vmatpush1.xpose.msra.mxu0 0.0
    %838 = vmatprep.subr.mxu0 0.0
    %839 = vmatpush1.xpose.msra.mxu0 0.0
    %840 = vmatprep.subr.mxu0 0.0
    %841 = vmatpush1.xpose.msra.mxu0 0.0
    %842 = vmatprep.subr.mxu0 0.0
    %843 = vmatpush1.xpose.msra.mxu0 0.0
    %844 = vmatprep.subr.mxu0 0.0
    %845 = vmatpush1.xpose.msra.mxu0 0.0
    %846 = vmatprep.subr.mxu0 0.0
    %847 = vmatpush1.xpose.msra.mxu0 0.0
    %848 = vmatprep.subr.mxu0 0.0
    %849 = vmatpush1.xpose.msra.mxu0 0.0
    %850 = vmatprep.subr.mxu0 0.0
    %851 = vmatpush1.xpose.msra.mxu0 0.0
    %852 = vmatprep.subr.mxu0 0.0
    %853 = vmatpush1.xpose.msra.mxu0 0.0
    %854 = vmatprep.mubr.f32.mxu0 0.0
    %855 = vmatmul.mubr.f32.gmra.mrb[0].mxu0 %v786
    %v856 = vpop.f32.mrb[0].mxu0
    %v857 = vadd.f32 %v380, %v856
    %v858 = vpop.f32.mrb[0].mxu0
    %859 = vdwg.mxu0
    %v860 = vsel %vm383, %v779, -inf
    %861 = vmax.xlane.f32.xlu0 %v860
    %v862 = vpop.xlane.xlu0 %861
    %v863 = vsel %vm383, %v857, -inf
    %864 = vmax.xlane.f32.xlu0 %v863
    %v865 = vpop.xlane.xlu0 %864
    %v866 = vsub.f32 %v779, %v862
    %v867 = vsub.f32 %v857, %v865
    %v868 = vmul.f32 %v866, 1.442695
    %v869 = vpow.pop %v868
    %v870 = vmul.f32 %v867, 1.442695
    %v871 = vpow.pop %v870
    %v872 = vsel %vm383, %v869, 0.0
    %873 = vadd.xlane.f32.xlu0 %v872
    %v874 = vpop.xlane.xlu0 %873
    %v875 = vsel %vm383, %v871, 0.0
    %876 = vadd.xlane.f32.xlu0 %v875
    %v877 = vpop.xlane.xlu0 %876
    %v878 = vrcp.pop %v874
    %v879 = vrcp.pop %v877
    %v880 = vmul.f32 %v869, %v878
    %v881 = vmul.f32 %v871, %v879
    %883 = vrot.lane.b32.xlu0 %v365, 120
    %v884 = vpop.permute.xlu0 %883
    %v887 = vsel %vm383, %v880, 0
    %889 = vmatprep.subr.mxu0 0.0
    %890 = vmatpush1.msra.mxu0 %v884
    %891 = vmatprep.subr.mxu0 0.0
    %892 = vmatpush1.msra.mxu0 0.0
    %893 = vmatprep.subr.mxu0 0.0
    %894 = vmatpush1.msra.mxu0 0.0
    %895 = vmatprep.subr.mxu0 0.0
    %896 = vmatpush1.msra.mxu0 0.0
    %897 = vmatprep.subr.mxu0 0.0
    %898 = vmatpush1.msra.mxu0 0.0
    %899 = vmatprep.subr.mxu0 0.0
    %900 = vmatpush1.msra.mxu0 0.0
    %901 = vmatprep.subr.mxu0 0.0
    %902 = vmatpush1.msra.mxu0 0.0
    %903 = vmatprep.subr.mxu0 0.0
    %904 = vmatpush1.msra.mxu0 0.0
    %905 = vmatprep.subr.mxu0 0.0
    %906 = vmatpush1.msra.mxu0 0.0
    %907 = vmatprep.subr.mxu0 0.0
    %908 = vmatpush1.msra.mxu0 0.0
    %909 = vmatprep.subr.mxu0 0.0
    %910 = vmatpush1.msra.mxu0 0.0
    %911 = vmatprep.subr.mxu0 0.0
    %912 = vmatpush1.msra.mxu0 0.0
    %913 = vmatprep.subr.mxu0 0.0
    %914 = vmatpush1.msra.mxu0 0.0
    %915 = vmatprep.subr.mxu0 0.0
    %916 = vmatpush1.msra.mxu0 0.0
    %917 = vmatprep.subr.mxu0 0.0
    %918 = vmatpush1.msra.mxu0 0.0
    %919 = vmatprep.subr.mxu0 0.0
    %920 = vmatpush1.msra.mxu0 0.0
    %921 = vmatprep.subr.mxu0 0.0
    %922 = vmatpush1.msra.mxu0 0.0
    %923 = vmatprep.subr.mxu0 0.0
    %924 = vmatpush1.msra.mxu0 0.0
    %925 = vmatprep.subr.mxu0 0.0
    %926 = vmatpush1.msra.mxu0 0.0
    %927 = vmatprep.subr.mxu0 0.0
    %928 = vmatpush1.msra.mxu0 0.0
    %929 = vmatprep.subr.mxu0 0.0
    %930 = vmatpush1.msra.mxu0 0.0
    %931 = vmatprep.subr.mxu0 0.0
    %932 = vmatpush1.msra.mxu0 0.0
    %933 = vmatprep.subr.mxu0 0.0
    %934 = vmatpush1.msra.mxu0 0.0
    %935 = vmatprep.subr.mxu0 0.0
    %936 = vmatpush1.msra.mxu0 0.0
    %937 = vmatprep.subr.mxu0 0.0
    %938 = vmatpush1.msra.mxu0 0.0
    %939 = vmatprep.subr.mxu0 0.0
    %940 = vmatpush1.msra.mxu0 0.0
    %941 = vmatprep.subr.mxu0 0.0
    %942 = vmatpush1.msra.mxu0 0.0
    %943 = vmatprep.subr.mxu0 0.0
    %944 = vmatpush1.msra.mxu0 0.0
    %945 = vmatprep.subr.mxu0 0.0
    %946 = vmatpush1.msra.mxu0 0.0
    %947 = vmatprep.subr.mxu0 0.0
    %948 = vmatpush1.msra.mxu0 0.0
    %949 = vmatprep.subr.mxu0 0.0
    %950 = vmatpush1.msra.mxu0 0.0
    %951 = vmatprep.subr.mxu0 0.0
    %952 = vmatpush1.msra.mxu0 0.0
    %953 = vmatprep.mubr.f32.mxu0 0.0
    %954 = vmatmul.mubr.f32.gmra.mrb[0].mxu0 %v887
    %v955 = vpop.f32.mrb[0].mxu0
    %v956 = vadd.f32 0.0, %v955
    %v957 = vpop.f32.mrb[0].mxu0
    %958 = vdwg.mxu0
    %960 = vrot.lane.b32.xlu0 %v370, 120
    %v961 = vpop.permute.xlu0 %960
    %v964 = vsel %vm383, %v881, 0
    %966 = vmatprep.subr.mxu0 0.0
    %967 = vmatpush1.msra.mxu0 %v961
    %968 = vmatprep.subr.mxu0 0.0
    %969 = vmatpush1.msra.mxu0 0.0
    %970 = vmatprep.subr.mxu0 0.0
    %971 = vmatpush1.msra.mxu0 0.0
    %972 = vmatprep.subr.mxu0 0.0
    %973 = vmatpush1.msra.mxu0 0.0
    %974 = vmatprep.subr.mxu0 0.0
    %975 = vmatpush1.msra.mxu0 0.0
    %976 = vmatprep.subr.mxu0 0.0
    %977 = vmatpush1.msra.mxu0 0.0
    %978 = vmatprep.subr.mxu0 0.0
    %979 = vmatpush1.msra.mxu0 0.0
    %980 = vmatprep.subr.mxu0 0.0
    %981 = vmatpush1.msra.mxu0 0.0
    %982 = vmatprep.subr.mxu0 0.0
    %983 = vmatpush1.msra.mxu0 0.0
    %984 = vmatprep.subr.mxu0 0.0
    %985 = vmatpush1.msra.mxu0 0.0
    %986 = vmatprep.subr.mxu0 0.0
    %987 = vmatpush1.msra.mxu0 0.0
    %988 = vmatprep.subr.mxu0 0.0
    %989 = vmatpush1.msra.mxu0 0.0
    %990 = vmatprep.subr.mxu0 0.0
    %991 = vmatpush1.msra.mxu0 0.0
    %992 = vmatprep.subr.mxu0 0.0
    %993 = vmatpush1.msra.mxu0 0.0
    %994 = vmatprep.subr.mxu0 0.0
    %995 = vmatpush1.msra.mxu0 0.0
    %996 = vmatprep.subr.mxu0 0.0
    %997 = vmatpush1.msra.mxu0 0.0
    %998 = vmatprep.subr.mxu0 0.0
    %999 = vmatpush1.msra.mxu0 0.0
    %1000 = vmatprep.subr.mxu0 0.0
    %1001 = vmatpush1.msra.mxu0 0.0
    %1002 = vmatprep.subr.mxu0 0.0
    %1003 = vmatpush1.msra.mxu0 0.0
    %1004 = vmatprep.subr.mxu0 0.0
    %1005 = vmatpush1.msra.mxu0 0.0
    %1006 = vmatprep.subr.mxu0 0.0
    %1007 = vmatpush1.msra.mxu0 0.0
    %1008 = vmatprep.subr.mxu0 0.0
    %1009 = vmatpush1.msra.mxu0 0.0
    %1010 = vmatprep.subr.mxu0 0.0
    %1011 = vmatpush1.msra.mxu0 0.0
    %1012 = vmatprep.subr.mxu0 0.0
    %1013 = vmatpush1.msra.mxu0 0.0
    %1014 = vmatprep.subr.mxu0 0.0
    %1015 = vmatpush1.msra.mxu0 0.0
    %1016 = vmatprep.subr.mxu0 0.0
    %1017 = vmatpush1.msra.mxu0 0.0
    %1018 = vmatprep.subr.mxu0 0.0
    %1019 = vmatpush1.msra.mxu0 0.0
    %1020 = vmatprep.subr.mxu0 0.0
    %1021 = vmatpush1.msra.mxu0 0.0
    %1022 = vmatprep.subr.mxu0 0.0
    %1023 = vmatpush1.msra.mxu0 0.0
    %1024 = vmatprep.subr.mxu0 0.0
    %1025 = vmatpush1.msra.mxu0 0.0
    %1026 = vmatprep.subr.mxu0 0.0
    %1027 = vmatpush1.msra.mxu0 0.0
    %1028 = vmatprep.subr.mxu0 0.0
    %1029 = vmatpush1.msra.mxu0 0.0
    %1030 = vmatprep.mubr.f32.mxu0 0.0
    %1031 = vmatmul.mubr.f32.gmra.mrb[0].mxu0 %v964
    %v1032 = vpop.f32.mrb[0].mxu0
    %v1033 = vadd.f32 0.0, %v1032
    %v1034 = vpop.f32.mrb[0].mxu0
    %1035 = vdwg.mxu0
    %v1037 = vsel %vm383, %v956, 0
    %v1040 = vsel %vm383, %v1033, 0
    %1042 = vmatprep.subr.mxu0 0.0
    %1043 = vmatpush1.msra.mxu0 %v83
    %1044 = vmatprep.subr.mxu0 0.0
    %1045 = vmatpush1.msra.mxu0 0.0
    %1046 = vmatprep.subr.mxu0 0.0
    %1047 = vmatpush1.msra.mxu0 0.0
    %1048 = vmatprep.subr.mxu0 0.0
    %1049 = vmatpush1.msra.mxu0 0.0
    %1050 = vmatprep.subr.mxu0 0.0
    %1051 = vmatpush1.msra.mxu0 0.0
    %1052 = vmatprep.subr.mxu0 0.0
    %1053 = vmatpush1.msra.mxu0 0.0
    %1054 = vmatprep.subr.mxu0 0.0
    %1055 = vmatpush1.msra.mxu0 0.0
    %1056 = vmatprep.subr.mxu0 0.0
    %1057 = vmatpush1.msra.mxu0 0.0
    %1058 = vmatprep.subr.mxu0 0.0
    %1059 = vmatpush1.msra.mxu0 0.0
    %1060 = vmatprep.subr.mxu0 0.0
    %1061 = vmatpush1.msra.mxu0 0.0
    %1062 = vmatprep.subr.mxu0 0.0
    %1063 = vmatpush1.msra.mxu0 0.0
    %1064 = vmatprep.subr.mxu0 0.0
    %1065 = vmatpush1.msra.mxu0 0.0
    %1066 = vmatprep.subr.mxu0 0.0
    %1067 = vmatpush1.msra.mxu0 0.0
    %1068 = vmatprep.subr.mxu0 0.0
    %1069 = vmatpush1.msra.mxu0 0.0
    %1070 = vmatprep.subr.mxu0 0.0
    %1071 = vmatpush1.msra.mxu0 0.0
    %1072 = vmatprep.subr.mxu0 0.0
    %1073 = vmatpush1.msra.mxu0 0.0
    %1074 = vmatprep.subr.mxu0 0.0
    %1075 = vmatpush1.msra.mxu0 0.0
    %1076 = vmatprep.subr.mxu0 0.0
    %1077 = vmatpush1.msra.mxu0 0.0
    %1078 = vmatprep.subr.mxu0 0.0
    %1079 = vmatpush1.msra.mxu0 0.0
    %1080 = vmatprep.subr.mxu0 0.0
    %1081 = vmatpush1.msra.mxu0 0.0
    %1082 = vmatprep.subr.mxu0 0.0
    %1083 = vmatpush1.msra.mxu0 0.0
    %1084 = vmatprep.subr.mxu0 0.0
    %1085 = vmatpush1.msra.mxu0 0.0
    %1086 = vmatprep.subr.mxu0 0.0
    %1087 = vmatpush1.msra.mxu0 0.0
    %1088 = vmatprep.subr.mxu0 0.0
    %1089 = vmatpush1.msra.mxu0 0.0
    %1090 = vmatprep.subr.mxu0 0.0
    %1091 = vmatpush1.msra.mxu0 0.0
    %1092 = vmatprep.subr.mxu0 0.0
    %1093 = vmatpush1.msra.mxu0 0.0
    %1094 = vmatprep.subr.mxu0 0.0
    %1095 = vmatpush1.msra.mxu0 0.0
    %1096 = vmatprep.subr.mxu0 0.0
    %1097 = vmatpush1.msra.mxu0 0.0
    %1098 = vmatprep.subr.mxu0 0.0
    %1099 = vmatpush1.msra.mxu0 0.0
    %1100 = vmatprep.subr.mxu0 0.0
    %1101 = vmatpush1.msra.mxu0 0.0
    %1102 = vmatprep.subr.mxu0 0.0
    %1103 = vmatpush1.msra.mxu0 0.0
    %1104 = vmatprep.subr.mxu0 0.0
    %1105 = vmatpush1.msra.mxu0 0.0
    %1106 = vmatprep.mubr.f32.mxu0 0.0
    %1107 = vmatmul.mubr.f32.gmra.mrb[0].mxu0 %v1037
    %v1108 = vpop.f32.mrb[0].mxu0
    %v1109 = vadd.f32 0.0, %v1108
    %v1110 = vpop.f32.mrb[0].mxu0
    %1111 = vmatprep.mubr.f32.mxu0 0.0
    %1112 = vmatmul.mubr.f32.gmra.mrb[0].mxu0 %v1040
    %v1113 = vpop.f32.mrb[0].mxu0
    %v1114 = vadd.f32 0.0, %v1113
    %v1115 = vpop.f32.mrb[0].mxu0
    %1116 = vdwg.mxu0
    %v1118 = vsel %vm383, %v628, 0
    %v1121 = vsel %vm383, %v701, 0
    %1123 = vmatprep.subr.mxu0 0.0
    %1124 = vmatpush1.msra.mxu0 %v82
    %1125 = vmatprep.subr.mxu0 0.0
    %1126 = vmatpush1.msra.mxu0 0.0
    %1127 = vmatprep.subr.mxu0 0.0
    %1128 = vmatpush1.msra.mxu0 0.0
    %1129 = vmatprep.subr.mxu0 0.0
    %1130 = vmatpush1.msra.mxu0 0.0
    %1131 = vmatprep.subr.mxu0 0.0
    %1132 = vmatpush1.msra.mxu0 0.0
    %1133 = vmatprep.subr.mxu0 0.0
    %1134 = vmatpush1.msra.mxu0 0.0
    %1135 = vmatprep.subr.mxu0 0.0
    %1136 = vmatpush1.msra.mxu0 0.0
    %1137 = vmatprep.subr.mxu0 0.0
    %1138 = vmatpush1.msra.mxu0 0.0
    %1139 = vmatprep.subr.mxu0 0.0
    %1140 = vmatpush1.msra.mxu0 0.0
    %1141 = vmatprep.subr.mxu0 0.0
    %1142 = vmatpush1.msra.mxu0 0.0
    %1143 = vmatprep.subr.mxu0 0.0
    %1144 = vmatpush1.msra.mxu0 0.0
    %1145 = vmatprep.subr.mxu0 0.0
    %1146 = vmatpush1.msra.mxu0 0.0
    %1147 = vmatprep.subr.mxu0 0.0
    %1148 = vmatpush1.msra.mxu0 0.0
    %1149 = vmatprep.subr.mxu0 0.0
    %1150 = vmatpush1.msra.mxu0 0.0
    %1151 = vmatprep.subr.mxu0 0.0
    %1152 = vmatpush1.msra.mxu0 0.0
    %1153 = vmatprep.subr.mxu0 0.0
    %1154 = vmatpush1.msra.mxu0 0.0
    %1155 = vmatprep.subr.mxu0 0.0
    %1156 = vmatpush1.msra.mxu0 0.0
    %1157 = vmatprep.subr.mxu0 0.0
    %1158 = vmatpush1.msra.mxu0 0.0
    %1159 = vmatprep.subr.mxu0 0.0
    %1160 = vmatpush1.msra.mxu0 0.0
    %1161 = vmatprep.subr.mxu0 0.0
    %1162 = vmatpush1.msra.mxu0 0.0
    %1163 = vmatprep.subr.mxu0 0.0
    %1164 = vmatpush1.msra.mxu0 0.0
    %1165 = vmatprep.subr.mxu0 0.0
    %1166 = vmatpush1.msra.mxu0 0.0
    %1167 = vmatprep.subr.mxu0 0.0
    %1168 = vmatpush1.msra.mxu0 0.0
    %1169 = vmatprep.subr.mxu0 0.0
    %1170 = vmatpush1.msra.mxu0 0.0
    %1171 = vmatprep.subr.mxu0 0.0
    %1172 = vmatpush1.msra.mxu0 0.0
    %1173 = vmatprep.subr.mxu0 0.0
    %1174 = vmatpush1.msra.mxu0 0.0
    %1175 = vmatprep.subr.mxu0 0.0
    %1176 = vmatpush1.msra.mxu0 0.0
    %1177 = vmatprep.subr.mxu0 0.0
    %1178 = vmatpush1.msra.mxu0 0.0
    %1179 = vmatprep.subr.mxu0 0.0
    %1180 = vmatpush1.msra.mxu0 0.0
    %1181 = vmatprep.subr.mxu0 0.0
    %1182 = vmatpush1.msra.mxu0 0.0
    %1183 = vmatprep.subr.mxu0 0.0
    %1184 = vmatpush1.msra.mxu0 0.0
    %1185 = vmatprep.subr.mxu0 0.0
    %1186 = vmatpush1.msra.mxu0 0.0
    %1187 = vmatprep.mubr.f32.mxu0 0.0
    %1188 = vmatmul.mubr.f32.gmra.mrb[0].mxu0 %v1118
    %v1189 = vpop.f32.mrb[0].mxu0
    %v1190 = vadd.f32 %v1109, %v1189
    %v1191 = vpop.f32.mrb[0].mxu0
    %1192 = vmatprep.mubr.f32.mxu0 0.0
    %1193 = vmatmul.mubr.f32.gmra.mrb[0].mxu0 %v1121
    %v1194 = vpop.f32.mrb[0].mxu0
    %v1195 = vadd.f32 %v1114, %v1194
    %v1196 = vpop.f32.mrb[0].mxu0
    %1197 = vdwg.mxu0
    %1198 = vrot.lane.b32.xlu0 %v221, 112
    %v1199 = vpop.permute.xlu0 %1198
    %1200 = vrot.lane.b32.xlu0 %v290, 112
    %v1201 = vpop.permute.xlu0 %1200
    %v1202 = vsel %vm383, %v1199, 0
    %v1204 = vsel %vm383, %v1201, 0
    %1206 = vmatprep.subr.mxu0 0.0
    %1207 = vmatpush1.xpose.msra.mxu0 %v1204
    %1208 = vmatprep.subr.mxu0 0.0
    %1209 = vmatpush1.xpose.msra.mxu0 0.0
    %1210 = vmatprep.subr.mxu0 0.0
    %1211 = vmatpush1.xpose.msra.mxu0 0.0
    %1212 = vmatprep.subr.mxu0 0.0
    %1213 = vmatpush1.xpose.msra.mxu0 0.0
    %1214 = vmatprep.subr.mxu0 0.0
    %1215 = vmatpush1.xpose.msra.mxu0 0.0
    %1216 = vmatprep.subr.mxu0 0.0
    %1217 = vmatpush1.xpose.msra.mxu0 0.0
    %1218 = vmatprep.subr.mxu0 0.0
    %1219 = vmatpush1.xpose.msra.mxu0 0.0
    %1220 = vmatprep.subr.mxu0 0.0
    %1221 = vmatpush1.xpose.msra.mxu0 0.0
    %1222 = vmatprep.subr.mxu0 0.0
    %1223 = vmatpush1.xpose.msra.mxu0 0.0
    %1224 = vmatprep.subr.mxu0 0.0
    %1225 = vmatpush1.xpose.msra.mxu0 0.0
    %1226 = vmatprep.subr.mxu0 0.0
    %1227 = vmatpush1.xpose.msra.mxu0 0.0
    %1228 = vmatprep.subr.mxu0 0.0
    %1229 = vmatpush1.xpose.msra.mxu0 0.0
    %1230 = vmatprep.subr.mxu0 0.0
    %1231 = vmatpush1.xpose.msra.mxu0 0.0
    %1232 = vmatprep.subr.mxu0 0.0
    %1233 = vmatpush1.xpose.msra.mxu0 0.0
    %1234 = vmatprep.subr.mxu0 0.0
    %1235 = vmatpush1.xpose.msra.mxu0 0.0
    %1236 = vmatprep.subr.mxu0 0.0
    %1237 = vmatpush1.xpose.msra.mxu0 0.0
    %1238 = vmatprep.subr.mxu0 0.0
    %1239 = vmatpush1.xpose.msra.mxu0 0.0
    %1240 = vmatprep.subr.mxu0 0.0
    %1241 = vmatpush1.xpose.msra.mxu0 0.0
    %1242 = vmatprep.subr.mxu0 0.0
    %1243 = vmatpush1.xpose.msra.mxu0 0.0
    %1244 = vmatprep.subr.mxu0 0.0
    %1245 = vmatpush1.xpose.msra.mxu0 0.0
    %1246 = vmatprep.subr.mxu0 0.0
    %1247 = vmatpush1.xpose.msra.mxu0 0.0
    %1248 = vmatprep.subr.mxu0 0.0
    %1249 = vmatpush1.xpose.msra.mxu0 0.0
    %1250 = vmatprep.subr.mxu0 0.0
    %1251 = vmatpush1.xpose.msra.mxu0 0.0
    %1252 = vmatprep.subr.mxu0 0.0
    %1253 = vmatpush1.xpose.msra.mxu0 0.0
    %1254 = vmatprep.subr.mxu0 0.0
    %1255 = vmatpush1.xpose.msra.mxu0 0.0
    %1256 = vmatprep.subr.mxu0 0.0
    %1257 = vmatpush1.xpose.msra.mxu0 0.0
    %1258 = vmatprep.subr.mxu0 0.0
    %1259 = vmatpush1.xpose.msra.mxu0 0.0
    %1260 = vmatprep.subr.mxu0 0.0
    %1261 = vmatpush1.xpose.msra.mxu0 0.0
    %1262 = vmatprep.subr.mxu0 0.0
    %1263 = vmatpush1.xpose.msra.mxu0 0.0
    %1264 = vmatprep.subr.mxu0 0.0
    %1265 = vmatpush1.xpose.msra.mxu0 0.0
    %1266 = vmatprep.subr.mxu0 0.0
    %1267 = vmatpush1.xpose.msra.mxu0 0.0
    %1268 = vmatprep.subr.mxu0 0.0
    %1269 = vmatpush1.xpose.msra.mxu0 0.0
    %1270 = vmatprep.mubr.f32.mxu0 0.0
    %1271 = vmatmul.mubr.f32.gmra.mrb[0].mxu0 %v1202
    %v1272 = vpop.f32.mrb[0].mxu0
    %v1273 = vadd.f32 %v376, %v1272
    %v1274 = vpop.f32.mrb[0].mxu0
    %1275 = vdwg.mxu0
    %1276 = vrot.lane.b32.xlu0 %v222, 112
    %v1277 = vpop.permute.xlu0 %1276
    %1278 = vrot.lane.b32.xlu0 %v295, 112
    %v1279 = vpop.permute.xlu0 %1278
    %v1280 = vsel %vm383, %v1277, 0
    %v1282 = vsel %vm383, %v1279, 0
    %1284 = vmatprep.subr.mxu0 0.0
    %1285 = vmatpush1.xpose.msra.mxu0 %v1282
    %1286 = vmatprep.subr.mxu0 0.0
    %1287 = vmatpush1.xpose.msra.mxu0 0.0
    %1288 = vmatprep.subr.mxu0 0.0
    %1289 = vmatpush1.xpose.msra.mxu0 0.0
    %1290 = vmatprep.subr.mxu0 0.0
    %1291 = vmatpush1.xpose.msra.mxu0 0.0
    %1292 = vmatprep.subr.mxu0 0.0
    %1293 = vmatpush1.xpose.msra.mxu0 0.0
    %1294 = vmatprep.subr.mxu0 0.0
    %1295 = vmatpush1.xpose.msra.mxu0 0.0
    %1296 = vmatprep.subr.mxu0 0.0
    %1297 = vmatpush1.xpose.msra.mxu0 0.0
    %1298 = vmatprep.subr.mxu0 0.0
    %1299 = vmatpush1.xpose.msra.mxu0 0.0
    %1300 = vmatprep.subr.mxu0 0.0
    %1301 = vmatpush1.xpose.msra.mxu0 0.0
    %1302 = vmatprep.subr.mxu0 0.0
    %1303 = vmatpush1.xpose.msra.mxu0 0.0
    %1304 = vmatprep.subr.mxu0 0.0
    %1305 = vmatpush1.xpose.msra.mxu0 0.0
    %1306 = vmatprep.subr.mxu0 0.0
    %1307 = vmatpush1.xpose.msra.mxu0 0.0
    %1308 = vmatprep.subr.mxu0 0.0
    %1309 = vmatpush1.xpose.msra.mxu0 0.0
    %1310 = vmatprep.subr.mxu0 0.0
    %1311 = vmatpush1.xpose.msra.mxu0 0.0
    %1312 = vmatprep.subr.mxu0 0.0
    %1313 = vmatpush1.xpose.msra.mxu0 0.0
    %1314 = vmatprep.subr.mxu0 0.0
    %1315 = vmatpush1.xpose.msra.mxu0 0.0
    %1316 = vmatprep.subr.mxu0 0.0
    %1317 = vmatpush1.xpose.msra.mxu0 0.0
    %1318 = vmatprep.subr.mxu0 0.0
    %1319 = vmatpush1.xpose.msra.mxu0 0.0
    %1320 = vmatprep.subr.mxu0 0.0
    %1321 = vmatpush1.xpose.msra.mxu0 0.0
    %1322 = vmatprep.subr.mxu0 0.0
    %1323 = vmatpush1.xpose.msra.mxu0 0.0
    %1324 = vmatprep.subr.mxu0 0.0
    %1325 = vmatpush1.xpose.msra.mxu0 0.0
    %1326 = vmatprep.subr.mxu0 0.0
    %1327 = vmatpush1.xpose.msra.mxu0 0.0
    %1328 = vmatprep.subr.mxu0 0.0
    %1329 = vmatpush1.xpose.msra.mxu0 0.0
    %1330 = vmatprep.subr.mxu0 0.0
    %1331 = vmatpush1.xpose.msra.mxu0 0.0
    %1332 = vmatprep.subr.mxu0 0.0
    %1333 = vmatpush1.xpose.msra.mxu0 0.0
    %1334 = vmatprep.subr.mxu0 0.0
    %1335 = vmatpush1.xpose.msra.mxu0 0.0
    %1336 = vmatprep.subr.mxu0 0.0
    %1337 = vmatpush1.xpose.msra.mxu0 0.0
    %1338 = vmatprep.subr.mxu0 0.0
    %1339 = vmatpush1.xpose.msra.mxu0 0.0
    %1340 = vmatprep.subr.mxu0 0.0
    %1341 = vmatpush1.xpose.msra.mxu0 0.0
    %1342 = vmatprep.subr.mxu0 0.0
    %1343 = vmatpush1.xpose.msra.mxu0 0.0
    %1344 = vmatprep.subr.mxu0 0.0
    %1345 = vmatpush1.xpose.msra.mxu0 0.0
    %1346 = vmatprep.subr.mxu0 0.0
    %1347 = vmatpush1.xpose.msra.mxu0 0.0
    %1348 = vmatprep.mubr.f32.mxu0 0.0
    %1349 = vmatmul.mubr.f32.gmra.mrb[0].mxu0 %v1280
    %v1350 = vpop.f32.mrb[0].mxu0
    %v1351 = vadd.f32 %v380, %v1350
    %v1352 = vpop.f32.mrb[0].mxu0
    %1353 = vdwg.mxu0
    %v1354 = vsel %vm383, %v1273, -inf
    %1355 = vmax.xlane.f32.xlu0 %v1354
    %v1356 = vpop.xlane.xlu0 %1355
    %v1357 = vsel %vm383, %v1351, -inf
    %1358 = vmax.xlane.f32.xlu0 %v1357
    %v1359 = vpop.xlane.xlu0 %1358
    %v1360 = vsub.f32 %v1273, %v1356
    %v1361 = vsub.f32 %v1351, %v1359
    %v1362 = vmul.f32 %v1360, 1.442695
    %v1363 = vpow.pop %v1362
    %v1364 = vmul.f32 %v1361, 1.442695
    %v1365 = vpow.pop %v1364
    %v1366 = vsel %vm383, %v1363, 0.0
    %1367 = vadd.xlane.f32.xlu0 %v1366
    %v1368 = vpop.xlane.xlu0 %1367
    %v1369 = vsel %vm383, %v1365, 0.0
    %1370 = vadd.xlane.f32.xlu0 %v1369
    %v1371 = vpop.xlane.xlu0 %1370
    %v1372 = vrcp.pop %v1368
    %v1373 = vrcp.pop %v1371
    %v1374 = vmul.f32 %v1363, %v1372
    %v1375 = vmul.f32 %v1365, %v1373
    %1376 = vrot.lane.b32.xlu0 %v365, 112
    %v1377 = vpop.permute.xlu0 %1376
    %v1380 = vsel %vm383, %v1374, 0
    %1382 = vmatprep.subr.mxu0 0.0
    %1383 = vmatpush1.msra.mxu0 %v1377
    %1384 = vmatprep.subr.mxu0 0.0
    %1385 = vmatpush1.msra.mxu0 0.0
    %1386 = vmatprep.subr.mxu0 0.0
    %1387 = vmatpush1.msra.mxu0 0.0
    %1388 = vmatprep.subr.mxu0 0.0
    %1389 = vmatpush1.msra.mxu0 0.0
    %1390 = vmatprep.subr.mxu0 0.0
    %1391 = vmatpush1.msra.mxu0 0.0
    %1392 = vmatprep.subr.mxu0 0.0
    %1393 = vmatpush1.msra.mxu0 0.0
    %1394 = vmatprep.subr.mxu0 0.0
    %1395 = vmatpush1.msra.mxu0 0.0
    %1396 = vmatprep.subr.mxu0 0.0
    %1397 = vmatpush1.msra.mxu0 0.0
    %1398 = vmatprep.subr.mxu0 0.0
    %1399 = vmatpush1.msra.mxu0 0.0
    %1400 = vmatprep.subr.mxu0 0.0
    %1401 = vmatpush1.msra.mxu0 0.0
    %1402 = vmatprep.subr.mxu0 0.0
    %1403 = vmatpush1.msra.mxu0 0.0
    %1404 = vmatprep.subr.mxu0 0.0
    %1405 = vmatpush1.msra.mxu0 0.0
    %1406 = vmatprep.subr.mxu0 0.0
    %1407 = vmatpush1.msra.mxu0 0.0
    %1408 = vmatprep.subr.mxu0 0.0
    %1409 = vmatpush1.msra.mxu0 0.0
    %1410 = vmatprep.subr.mxu0 0.0
    %1411 = vmatpush1.msra.mxu0 0.0
    %1412 = vmatprep.subr.mxu0 0.0
    %1413 = vmatpush1.msra.mxu0 0.0
    %1414 = vmatprep.subr.mxu0 0.0
    %1415 = vmatpush1.msra.mxu0 0.0
    %1416 = vmatprep.subr.mxu0 0.0
    %1417 = vmatpush1.msra.mxu0 0.0
    %1418 = vmatprep.subr.mxu0 0.0
    %1419 = vmatpush1.msra.mxu0 0.0
    %1420 = vmatprep.subr.mxu0 0.0
    %1421 = vmatpush1.msra.mxu0 0.0
    %1422 = vmatprep.subr.mxu0 0.0
    %1423 = vmatpush1.msra.mxu0 0.0
    %1424 = vmatprep.subr.mxu0 0.0
    %1425 = vmatpush1.msra.mxu0 0.0
    %1426 = vmatprep.subr.mxu0 0.0
    %1427 = vmatpush1.msra.mxu0 0.0
    %1428 = vmatprep.subr.mxu0 0.0
    %1429 = vmatpush1.msra.mxu0 0.0
    %1430 = vmatprep.subr.mxu0 0.0
    %1431 = vmatpush1.msra.mxu0 0.0
    %1432 = vmatprep.subr.mxu0 0.0
    %1433 = vmatpush1.msra.mxu0 0.0
    %1434 = vmatprep.subr.mxu0 0.0
    %1435 = vmatpush1.msra.mxu0 0.0
    %1436 = vmatprep.subr.mxu0 0.0
    %1437 = vmatpush1.msra.mxu0 0.0
    %1438 = vmatprep.subr.mxu0 0.0
    %1439 = vmatpush1.msra.mxu0 0.0
    %1440 = vmatprep.subr.mxu0 0.0
    %1441 = vmatpush1.msra.mxu0 0.0
    %1442 = vmatprep.subr.mxu0 0.0
    %1443 = vmatpush1.msra.mxu0 0.0
    %1444 = vmatprep.subr.mxu0 0.0
    %1445 = vmatpush1.msra.mxu0 0.0
    %1446 = vmatprep.mubr.f32.mxu0 0.0
    %1447 = vmatmul.mubr.f32.gmra.mrb[0].mxu0 %v1380
    %v1448 = vpop.f32.mrb[0].mxu0
    %v1449 = vadd.f32 0.0, %v1448
    %v1450 = vpop.f32.mrb[0].mxu0
    %1451 = vdwg.mxu0
    %1452 = vrot.lane.b32.xlu0 %v370, 112
    %v1453 = vpop.permute.xlu0 %1452
    %v1456 = vsel %vm383, %v1375, 0
    %1458 = vmatprep.subr.mxu0 0.0
    %1459 = vmatpush1.msra.mxu0 %v1453
    %1460 = vmatprep.subr.mxu0 0.0
    %1461 = vmatpush1.msra.mxu0 0.0
    %1462 = vmatprep.subr.mxu0 0.0
    %1463 = vmatpush1.msra.mxu0 0.0
    %1464 = vmatprep.subr.mxu0 0.0
    %1465 = vmatpush1.msra.mxu0 0.0
    %1466 = vmatprep.subr.mxu0 0.0
    %1467 = vmatpush1.msra.mxu0 0.0
    %1468 = vmatprep.subr.mxu0 0.0
    %1469 = vmatpush1.msra.mxu0 0.0
    %1470 = vmatprep.subr.mxu0 0.0
    %1471 = vmatpush1.msra.mxu0 0.0
    %1472 = vmatprep.subr.mxu0 0.0
    %1473 = vmatpush1.msra.mxu0 0.0
    %1474 = vmatprep.subr.mxu0 0.0
    %1475 = vmatpush1.msra.mxu0 0.0
    %1476 = vmatprep.subr.mxu0 0.0
    %1477 = vmatpush1.msra.mxu0 0.0
    %1478 = vmatprep.subr.mxu0 0.0
    %1479 = vmatpush1.msra.mxu0 0.0
    %1480 = vmatprep.subr.mxu0 0.0
    %1481 = vmatpush1.msra.mxu0 0.0
    %1482 = vmatprep.subr.mxu0 0.0
    %1483 = vmatpush1.msra.mxu0 0.0
    %1484 = vmatprep.subr.mxu0 0.0
    %1485 = vmatpush1.msra.mxu0 0.0
    %1486 = vmatprep.subr.mxu0 0.0
    %1487 = vmatpush1.msra.mxu0 0.0
    %1488 = vmatprep.subr.mxu0 0.0
    %1489 = vmatpush1.msra.mxu0 0.0
    %1490 = vmatprep.subr.mxu0 0.0
    %1491 = vmatpush1.msra.mxu0 0.0
    %1492 = vmatprep.subr.mxu0 0.0
    %1493 = vmatpush1.msra.mxu0 0.0
    %1494 = vmatprep.subr.mxu0 0.0
    %1495 = vmatpush1.msra.mxu0 0.0
    %1496 = vmatprep.subr.mxu0 0.0
    %1497 = vmatpush1.msra.mxu0 0.0
    %1498 = vmatprep.subr.mxu0 0.0
    %1499 = vmatpush1.msra.mxu0 0.0
    %1500 = vmatprep.subr.mxu0 0.0
    %1501 = vmatpush1.msra.mxu0 0.0
    %1502 = vmatprep.subr.mxu0 0.0
    %1503 = vmatpush1.msra.mxu0 0.0
    %1504 = vmatprep.subr.mxu0 0.0
    %1505 = vmatpush1.msra.mxu0 0.0
    %1506 = vmatprep.subr.mxu0 0.0
    %1507 = vmatpush1.msra.mxu0 0.0
    %1508 = vmatprep.subr.mxu0 0.0
    %1509 = vmatpush1.msra.mxu0 0.0
    %1510 = vmatprep.subr.mxu0 0.0
    %1511 = vmatpush1.msra.mxu0 0.0
    %1512 = vmatprep.subr.mxu0 0.0
    %1513 = vmatpush1.msra.mxu0 0.0
    %1514 = vmatprep.subr.mxu0 0.0
    %1515 = vmatpush1.msra.mxu0 0.0
    %1516 = vmatprep.subr.mxu0 0.0
    %1517 = vmatpush1.msra.mxu0 0.0
    %1518 = vmatprep.subr.mxu0 0.0
    %1519 = vmatpush1.msra.mxu0 0.0
    %1520 = vmatprep.subr.mxu0 0.0
    %1521 = vmatpush1.msra.mxu0 0.0
    %1522 = vmatprep.mubr.f32.mxu0 0.0
    %1523 = vmatmul.mubr.f32.gmra.mrb[0].mxu0 %v1456
    %v1524 = vpop.f32.mrb[0].mxu0
    %v1525 = vadd.f32 0.0, %v1524
    %v1526 = vpop.f32.mrb[0].mxu0
    %1527 = vdwg.mxu0
    %v1529 = vsel %vm383, %v1449, 0
    %v1532 = vsel %vm383, %v1525, 0
    %1534 = vmatprep.subr.mxu0 0.0
    %1535 = vmatpush1.msra.mxu0 %v84
    %1536 = vmatprep.subr.mxu0 0.0
    %1537 = vmatpush1.msra.mxu0 0.0
    %1538 = vmatprep.subr.mxu0 0.0
    %1539 = vmatpush1.msra.mxu0 0.0
    %1540 = vmatprep.subr.mxu0 0.0
    %1541 = vmatpush1.msra.mxu0 0.0
    %1542 = vmatprep.subr.mxu0 0.0
    %1543 = vmatpush1.msra.mxu0 0.0
    %1544 = vmatprep.subr.mxu0 0.0
    %1545 = vmatpush1.msra.mxu0 0.0
    %1546 = vmatprep.subr.mxu0 0.0
    %1547 = vmatpush1.msra.mxu0 0.0
    %1548 = vmatprep.subr.mxu0 0.0
    %1549 = vmatpush1.msra.mxu0 0.0
    %1550 = vmatprep.subr.mxu0 0.0
    %1551 = vmatpush1.msra.mxu0 0.0
    %1552 = vmatprep.subr.mxu0 0.0
    %1553 = vmatpush1.msra.mxu0 0.0
    %1554 = vmatprep.subr.mxu0 0.0
    %1555 = vmatpush1.msra.mxu0 0.0
    %1556 = vmatprep.subr.mxu0 0.0
    %1557 = vmatpush1.msra.mxu0 0.0
    %1558 = vmatprep.subr.mxu0 0.0
    %1559 = vmatpush1.msra.mxu0 0.0
    %1560 = vmatprep.subr.mxu0 0.0
    %1561 = vmatpush1.msra.mxu0 0.0
    %1562 = vmatprep.subr.mxu0 0.0
    %1563 = vmatpush1.msra.mxu0 0.0
    %1564 = vmatprep.subr.mxu0 0.0
    %1565 = vmatpush1.msra.mxu0 0.0
    %1566 = vmatprep.subr.mxu0 0.0
    %1567 = vmatpush1.msra.mxu0 0.0
    %1568 = vmatprep.subr.mxu0 0.0
    %1569 = vmatpush1.msra.mxu0 0.0
    %1570 = vmatprep.subr.mxu0 0.0
    %1571 = vmatpush1.msra.mxu0 0.0
    %1572 = vmatprep.subr.mxu0 0.0
    %1573 = vmatpush1.msra.mxu0 0.0
    %1574 = vmatprep.subr.mxu0 0.0
    %1575 = vmatpush1.msra.mxu0 0.0
    %1576 = vmatprep.subr.mxu0 0.0
    %1577 = vmatpush1.msra.mxu0 0.0
    %1578 = vmatprep.subr.mxu0 0.0
    %1579 = vmatpush1.msra.mxu0 0.0
    %1580 = vmatprep.subr.mxu0 0.0
    %1581 = vmatpush1.msra.mxu0 0.0
    %1582 = vmatprep.subr.mxu0 0.0
    %1583 = vmatpush1.msra.mxu0 0.0
    %1584 = vmatprep.subr.mxu0 0.0
    %1585 = vmatpush1.msra.mxu0 0.0
    %1586 = vmatprep.subr.mxu0 0.0
    %1587 = vmatpush1.msra.mxu0 0.0
    %1588 = vmatprep.subr.mxu0 0.0
    %1589 = vmatpush1.msra.mxu0 0.0
    %1590 = vmatprep.subr.mxu0 0.0
    %1591 = vmatpush1.msra.mxu0 0.0
    %1592 = vmatprep.subr.mxu0 0.0
    %1593 = vmatpush1.msra.mxu0 0.0
    %1594 = vmatprep.subr.mxu0 0.0
    %1595 = vmatpush1.msra.mxu0 0.0
    %1596 = vmatprep.subr.mxu0 0.0
    %1597 = vmatpush1.msra.mxu0 0.0
    %1598 = vmatprep.mubr.f32.mxu0 0.0
    %1599 = vmatmul.mubr.f32.gmra.mrb[0].mxu0 %v1529
    %v1600 = vpop.f32.mrb[0].mxu0
    %v1601 = vadd.f32 0.0, %v1600
    %v1602 = vpop.f32.mrb[0].mxu0
    %1603 = vmatprep.mubr.f32.mxu0 0.0
    %1604 = vmatmul.mubr.f32.gmra.mrb[0].mxu0 %v1532
    %v1605 = vpop.f32.mrb[0].mxu0
    %v1606 = vadd.f32 0.0, %v1605
    %v1607 = vpop.f32.mrb[0].mxu0
    %1608 = vdwg.mxu0
    %v1609 = vadd.f32 %v1190, %v1601
    %v1610 = vadd.f32 %v1195, %v1606
    %1611 = vrot.lane.b32.xlu0 %v221, 104
    %v1612 = vpop.permute.xlu0 %1611
    %1613 = vrot.lane.b32.xlu0 %v290, 104
    %v1614 = vpop.permute.xlu0 %1613
    %v1615 = vsel %vm383, %v1612, 0
    %v1617 = vsel %vm383, %v1614, 0
    %1619 = vmatprep.subr.mxu0 0.0
    %1620 = vmatpush1.xpose.msra.mxu0 %v1617
    %1621 = vmatprep.subr.mxu0 0.0
    %1622 = vmatpush1.xpose.msra.mxu0 0.0
    %1623 = vmatprep.subr.mxu0 0.0
    %1624 = vmatpush1.xpose.msra.mxu0 0.0
    %1625 = vmatprep.subr.mxu0 0.0
    %1626 = vmatpush1.xpose.msra.mxu0 0.0
    %1627 = vmatprep.subr.mxu0 0.0
    %1628 = vmatpush1.xpose.msra.mxu0 0.0
    %1629 = vmatprep.subr.mxu0 0.0
    %1630 = vmatpush1.xpose.msra.mxu0 0.0
    %1631 = vmatprep.subr.mxu0 0.0
    %1632 = vmatpush1.xpose.msra.mxu0 0.0
    %1633 = vmatprep.subr.mxu0 0.0
    %1634 = vmatpush1.xpose.msra.mxu0 0.0
    %1635 = vmatprep.subr.mxu0 0.0
    %1636 = vmatpush1.xpose.msra.mxu0 0.0
    %1637 = vmatprep.subr.mxu0 0.0
    %1638 = vmatpush1.xpose.msra.mxu0 0.0
    %1639 = vmatprep.subr.mxu0 0.0
    %1640 = vmatpush1.xpose.msra.mxu0 0.0
    %1641 = vmatprep.subr.mxu0 0.0
    %1642 = vmatpush1.xpose.msra.mxu0 0.0
    %1643 = vmatprep.subr.mxu0 0.0
    %1644 = vmatpush1.xpose.msra.mxu0 0.0
    %1645 = vmatprep.subr.mxu0 0.0
    %1646 = vmatpush1.xpose.msra.mxu0 0.0
    %1647 = vmatprep.subr.mxu0 0.0
    %1648 = vmatpush1.xpose.msra.mxu0 0.0
    %1649 = vmatprep.subr.mxu0 0.0
    %1650 = vmatpush1.xpose.msra.mxu0 0.0
    %1651 = vmatprep.subr.mxu0 0.0
    %1652 = vmatpush1.xpose.msra.mxu0 0.0
    %1653 = vmatprep.subr.mxu0 0.0
    %1654 = vmatpush1.xpose.msra.mxu0 0.0
    %1655 = vmatprep.subr.mxu0 0.0
    %1656 = vmatpush1.xpose.msra.mxu0 0.0
    %1657 = vmatprep.subr.mxu0 0.0
    %1658 = vmatpush1.xpose.msra.mxu0 0.0
    %1659 = vmatprep.subr.mxu0 0.0
    %1660 = vmatpush1.xpose.msra.mxu0 0.0
    %1661 = vmatprep.subr.mxu0 0.0
    %1662 = vmatpush1.xpose.msra.mxu0 0.0
    %1663 = vmatprep.subr.mxu0 0.0
    %1664 = vmatpush1.xpose.msra.mxu0 0.0
    %1665 = vmatprep.subr.mxu0 0.0
    %1666 = vmatpush1.xpose.msra.mxu0 0.0
    %1667 = vmatprep.subr.mxu0 0.0
    %1668 = vmatpush1.xpose.msra.mxu0 0.0
    %1669 = vmatprep.subr.mxu0 0.0
    %1670 = vmatpush1.xpose.msra.mxu0 0.0
    %1671 = vmatprep.subr.mxu0 0.0
    %1672 = vmatpush1.xpose.msra.mxu0 0.0
    %1673 = vmatprep.subr.mxu0 0.0
    %1674 = vmatpush1.xpose.msra.mxu0 0.0
    %1675 = vmatprep.subr.mxu0 0.0
    %1676 = vmatpush1.xpose.msra.mxu0 0.0
    %1677 = vmatprep.subr.mxu0 0.0
    %1678 = vmatpush1.xpose.msra.mxu0 0.0
    %1679 = vmatprep.subr.mxu0 0.0
    %1680 = vmatpush1.xpose.msra.mxu0 0.0
    %1681 = vmatprep.subr.mxu0 0.0
    %1682 = vmatpush1.xpose.msra.mxu0 0.0
    %1683 = vmatprep.mubr.f32.mxu0 0.0
    %1684 = vmatmul.mubr.f32.gmra.mrb[0].mxu0 %v1615
    %v1685 = vpop.f32.mrb[0].mxu0
    %v1686 = vadd.f32 %v376, %v1685
    %v1687 = vpop.f32.mrb[0].mxu0
    %1688 = vdwg.mxu0
    %1689 = vrot.lane.b32.xlu0 %v222, 104
    %v1690 = vpop.permute.xlu0 %1689
    %1691 = vrot.lane.b32.xlu0 %v295, 104
    %v1692 = vpop.permute.xlu0 %1691
    %v1693 = vsel %vm383, %v1690, 0
    %v1695 = vsel %vm383, %v1692, 0
    %1697 = vmatprep.subr.mxu0 0.0
    %1698 = vmatpush1.xpose.msra.mxu0 %v1695
    %1699 = vmatprep.subr.mxu0 0.0
    %1700 = vmatpush1.xpose.msra.mxu0 0.0
    %1701 = vmatprep.subr.mxu0 0.0
    %1702 = vmatpush1.xpose.msra.mxu0 0.0
    %1703 = vmatprep.subr.mxu0 0.0
    %1704 = vmatpush1.xpose.msra.mxu0 0.0
    %1705 = vmatprep.subr.mxu0 0.0
    %1706 = vmatpush1.xpose.msra.mxu0 0.0
    %1707 = vmatprep.subr.mxu0 0.0
    %1708 = vmatpush1.xpose.msra.mxu0 0.0
    %1709 = vmatprep.subr.mxu0 0.0
    %1710 = vmatpush1.xpose.msra.mxu0 0.0
    %1711 = vmatprep.subr.mxu0 0.0
    %1712 = vmatpush1.xpose.msra.mxu0 0.0
    %1713 = vmatprep.subr.mxu0 0.0
    %1714 = vmatpush1.xpose.msra.mxu0 0.0
    %1715 = vmatprep.subr.mxu0 0.0
    %1716 = vmatpush1.xpose.msra.mxu0 0.0
    %1717 = vmatprep.subr.mxu0 0.0
    %1718 = vmatpush1.xpose.msra.mxu0 0.0
    %1719 = vmatprep.subr.mxu0 0.0
    %1720 = vmatpush1.xpose.msra.mxu0 0.0
    %1721 = vmatprep.subr.mxu0 0.0
    %1722 = vmatpush1.xpose.msra.mxu0 0.0
    %1723 = vmatprep.subr.mxu0 0.0
    %1724 = vmatpush1.xpose.msra.mxu0 0.0
    %1725 = vmatprep.subr.mxu0 0.0
    %1726 = vmatpush1.xpose.msra.mxu0 0.0
    %1727 = vmatprep.subr.mxu0 0.0
    %1728 = vmatpush1.xpose.msra.mxu0 0.0
    %1729 = vmatprep.subr.mxu0 0.0
    %1730 = vmatpush1.xpose.msra.mxu0 0.0
    %1731 = vmatprep.subr.mxu0 0.0
    %1732 = vmatpush1.xpose.msra.mxu0 0.0
    %1733 = vmatprep.subr.mxu0 0.0
    %1734 = vmatpush1.xpose.msra.mxu0 0.0
    %1735 = vmatprep.subr.mxu0 0.0
    %1736 = vmatpush1.xpose.msra.mxu0 0.0
    %1737 = vmatprep.subr.mxu0 0.0
    %1738 = vmatpush1.xpose.msra.mxu0 0.0
    %1739 = vmatprep.subr.mxu0 0.0
    %1740 = vmatpush1.xpose.msra.mxu0 0.0
    %1741 = vmatprep.subr.mxu0 0.0
    %1742 = vmatpush1.xpose.msra.mxu0 0.0
    %1743 = vmatprep.subr.mxu0 0.0
    %1744 = vmatpush1.xpose.msra.mxu0 0.0
    %1745 = vmatprep.subr.mxu0 0.0
    %1746 = vmatpush1.xpose.msra.mxu0 0.0
    %1747 = vmatprep.subr.mxu0 0.0
    %1748 = vmatpush1.xpose.msra.mxu0 0.0
    %1749 = vmatprep.subr.mxu0 0.0
    %1750 = vmatpush1.xpose.msra.mxu0 0.0
    %1751 = vmatprep.subr.mxu0 0.0
    %1752 = vmatpush1.xpose.msra.mxu0 0.0
    %1753 = vmatprep.subr.mxu0 0.0
    %1754 = vmatpush1.xpose.msra.mxu0 0.0
    %1755 = vmatprep.subr.mxu0 0.0
    %1756 = vmatpush1.xpose.msra.mxu0 0.0
    %1757 = vmatprep.subr.mxu0 0.0
    %1758 = vmatpush1.xpose.msra.mxu0 0.0
    %1759 = vmatprep.subr.mxu0 0.0
    %1760 = vmatpush1.xpose.msra.mxu0 0.0
    %1761 = vmatprep.mubr.f32.mxu0 0.0
    %1762 = vmatmul.mubr.f32.gmra.mrb[0].mxu0 %v1693
    %v1763 = vpop.f32.mrb[0].mxu0
    %v1764 = vadd.f32 %v380, %v1763
    %v1765 = vpop.f32.mrb[0].mxu0
    %1766 = vdwg.mxu0
    %v1767 = vsel %vm383, %v1686, -inf
    %1768 = vmax.xlane.f32.xlu0 %v1767
    %v1769 = vpop.xlane.xlu0 %1768
    %v1770 = vsel %vm383, %v1764, -inf
    %1771 = vmax.xlane.f32.xlu0 %v1770
    %v1772 = vpop.xlane.xlu0 %1771
    %v1773 = vsub.f32 %v1686, %v1769
    %v1774 = vsub.f32 %v1764, %v1772
    %v1775 = vmul.f32 %v1773, 1.442695
    %v1776 = vpow.pop %v1775
    %v1777 = vmul.f32 %v1774, 1.442695
    %v1778 = vpow.pop %v1777
    %v1779 = vsel %vm383, %v1776, 0.0
    %1780 = vadd.xlane.f32.xlu0 %v1779
    %v1781 = vpop.xlane.xlu0 %1780
    %v1782 = vsel %vm383, %v1778, 0.0
    %1783 = vadd.xlane.f32.xlu0 %v1782
    %v1784 = vpop.xlane.xlu0 %1783
    %v1785 = vrcp.pop %v1781
    %v1786 = vrcp.pop %v1784
    %v1787 = vmul.f32 %v1776, %v1785
    %v1788 = vmul.f32 %v1778, %v1786
    %1789 = vrot.lane.b32.xlu0 %v365, 104
    %v1790 = vpop.permute.xlu0 %1789
    %v1793 = vsel %vm383, %v1787, 0
    %1795 = vmatprep.subr.mxu0 0.0
    %1796 = vmatpush1.msra.mxu0 %v1790
    %1797 = vmatprep.subr.mxu0 0.0
    %1798 = vmatpush1.msra.mxu0 0.0
    %1799 = vmatprep.subr.mxu0 0.0
    %1800 = vmatpush1.msra.mxu0 0.0
    %1801 = vmatprep.subr.mxu0 0.0
    %1802 = vmatpush1.msra.mxu0 0.0
    %1803 = vmatprep.subr.mxu0 0.0
    %1804 = vmatpush1.msra.mxu0 0.0
    %1805 = vmatprep.subr.mxu0 0.0
    %1806 = vmatpush1.msra.mxu0 0.0
    %1807 = vmatprep.subr.mxu0 0.0
    %1808 = vmatpush1.msra.mxu0 0.0
    %1809 = vmatprep.subr.mxu0 0.0
    %1810 = vmatpush1.msra.mxu0 0.0
    %1811 = vmatprep.subr.mxu0 0.0
    %1812 = vmatpush1.msra.mxu0 0.0
    %1813 = vmatprep.subr.mxu0 0.0
    %1814 = vmatpush1.msra.mxu0 0.0
    %1815 = vmatprep.subr.mxu0 0.0
    %1816 = vmatpush1.msra.mxu0 0.0
    %1817 = vmatprep.subr.mxu0 0.0
    %1818 = vmatpush1.msra.mxu0 0.0
    %1819 = vmatprep.subr.mxu0 0.0
    %1820 = vmatpush1.msra.mxu0 0.0
    %1821 = vmatprep.subr.mxu0 0.0
    %1822 = vmatpush1.msra.mxu0 0.0
    %1823 = vmatprep.subr.mxu0 0.0
    %1824 = vmatpush1.msra.mxu0 0.0
    %1825 = vmatprep.subr.mxu0 0.0
    %1826 = vmatpush1.msra.mxu0 0.0
    %1827 = vmatprep.subr.mxu0 0.0
    %1828 = vmatpush1.msra.mxu0 0.0
    %1829 = vmatprep.subr.mxu0 0.0
    %1830 = vmatpush1.msra.mxu0 0.0
    %1831 = vmatprep.subr.mxu0 0.0
    %1832 = vmatpush1.msra.mxu0 0.0
    %1833 = vmatprep.subr.mxu0 0.0
    %1834 = vmatpush1.msra.mxu0 0.0
    %1835 = vmatprep.subr.mxu0 0.0
    %1836 = vmatpush1.msra.mxu0 0.0
    %1837 = vmatprep.subr.mxu0 0.0
    %1838 = vmatpush1.msra.mxu0 0.0
    %1839 = vmatprep.subr.mxu0 0.0
    %1840 = vmatpush1.msra.mxu0 0.0
    %1841 = vmatprep.subr.mxu0 0.0
    %1842 = vmatpush1.msra.mxu0 0.0
    %1843 = vmatprep.subr.mxu0 0.0
    %1844 = vmatpush1.msra.mxu0 0.0
    %1845 = vmatprep.subr.mxu0 0.0
    %1846 = vmatpush1.msra.mxu0 0.0
    %1847 = vmatprep.subr.mxu0 0.0
    %1848 = vmatpush1.msra.mxu0 0.0
    %1849 = vmatprep.subr.mxu0 0.0
    %1850 = vmatpush1.msra.mxu0 0.0
    %1851 = vmatprep.subr.mxu0 0.0
    %1852 = vmatpush1.msra.mxu0 0.0
    %1853 = vmatprep.subr.mxu0 0.0
    %1854 = vmatpush1.msra.mxu0 0.0
    %1855 = vmatprep.subr.mxu0 0.0
    %1856 = vmatpush1.msra.mxu0 0.0
    %1857 = vmatprep.subr.mxu0 0.0
    %1858 = vmatpush1.msra.mxu0 0.0
    %1859 = vmatprep.mubr.f32.mxu0 0.0
    %1860 = vmatmul.mubr.f32.gmra.mrb[0].mxu0 %v1793
    %v1861 = vpop.f32.mrb[0].mxu0
    %v1862 = vadd.f32 0.0, %v1861
    %v1863 = vpop.f32.mrb[0].mxu0
    %1864 = vdwg.mxu0
    %1865 = vrot.lane.b32.xlu0 %v370, 104
    %v1866 = vpop.permute.xlu0 %1865
    %v1869 = vsel %vm383, %v1788, 0
    %1871 = vmatprep.subr.mxu0 0.0
    %1872 = vmatpush1.msra.mxu0 %v1866
    %1873 = vmatprep.subr.mxu0 0.0
    %1874 = vmatpush1.msra.mxu0 0.0
    %1875 = vmatprep.subr.mxu0 0.0
    %1876 = vmatpush1.msra.mxu0 0.0
    %1877 = vmatprep.subr.mxu0 0.0
    %1878 = vmatpush1.msra.mxu0 0.0
    %1879 = vmatprep.subr.mxu0 0.0
    %1880 = vmatpush1.msra.mxu0 0.0
    %1881 = vmatprep.subr.mxu0 0.0
    %1882 = vmatpush1.msra.mxu0 0.0
    %1883 = vmatprep.subr.mxu0 0.0
    %1884 = vmatpush1.msra.mxu0 0.0
    %1885 = vmatprep.subr.mxu0 0.0
    %1886 = vmatpush1.msra.mxu0 0.0
    %1887 = vmatprep.subr.mxu0 0.0
    %1888 = vmatpush1.msra.mxu0 0.0
    %1889 = vmatprep.subr.mxu0 0.0
    %1890 = vmatpush1.msra.mxu0 0.0
    %1891 = vmatprep.subr.mxu0 0.0
    %1892 = vmatpush1.msra.mxu0 0.0
    %1893 = vmatprep.subr.mxu0 0.0
    %1894 = vmatpush1.msra.mxu0 0.0
    %1895 = vmatprep.subr.mxu0 0.0
    %1896 = vmatpush1.msra.mxu0 0.0
    %1897 = vmatprep.subr.mxu0 0.0
    %1898 = vmatpush1.msra.mxu0 0.0
    %1899 = vmatprep.subr.mxu0 0.0
    %1900 = vmatpush1.msra.mxu0 0.0
    %1901 = vmatprep.subr.mxu0 0.0
    %1902 = vmatpush1.msra.mxu0 0.0
    %1903 = vmatprep.subr.mxu0 0.0
    %1904 = vmatpush1.msra.mxu0 0.0
    %1905 = vmatprep.subr.mxu0 0.0
    %1906 = vmatpush1.msra.mxu0 0.0
    %1907 = vmatprep.subr.mxu0 0.0
    %1908 = vmatpush1.msra.mxu0 0.0
    %1909 = vmatprep.subr.mxu0 0.0
    %1910 = vmatpush1.msra.mxu0 0.0
    %1911 = vmatprep.subr.mxu0 0.0
    %1912 = vmatpush1.msra.mxu0 0.0
    %1913 = vmatprep.subr.mxu0 0.0
    %1914 = vmatpush1.msra.mxu0 0.0
    %1915 = vmatprep.subr.mxu0 0.0
    %1916 = vmatpush1.msra.mxu0 0.0
    %1917 = vmatprep.subr.mxu0 0.0
    %1918 = vmatpush1.msra.mxu0 0.0
    %1919 = vmatprep.subr.mxu0 0.0
    %1920 = vmatpush1.msra.mxu0 0.0
    %1921 = vmatprep.subr.mxu0 0.0
    %1922 = vmatpush1.msra.mxu0 0.0
    %1923 = vmatprep.subr.mxu0 0.0
    %1924 = vmatpush1.msra.mxu0 0.0
    %1925 = vmatprep.subr.mxu0 0.0
    %1926 = vmatpush1.msra.mxu0 0.0
    %1927 = vmatprep.subr.mxu0 0.0
    %1928 = vmatpush1.msra.mxu0 0.0
    %1929 = vmatprep.subr.mxu0 0.0
    %1930 = vmatpush1.msra.mxu0 0.0
    %1931 = vmatprep.subr.mxu0 0.0
    %1932 = vmatpush1.msra.mxu0 0.0
    %1933 = vmatprep.subr.mxu0 0.0
    %1934 = vmatpush1.msra.mxu0 0.0
    %1935 = vmatprep.mubr.f32.mxu0 0.0
    %1936 = vmatmul.mubr.f32.gmra.mrb[0].mxu0 %v1869
    %v1937 = vpop.f32.mrb[0].mxu0
    %v1938 = vadd.f32 0.0, %v1937
    %v1939 = vpop.f32.mrb[0].mxu0
    %1940 = vdwg.mxu0
    %v1942 = vsel %vm383, %v1862, 0
    %v1945 = vsel %vm383, %v1938, 0
    %1947 = vmatprep.subr.mxu0 0.0
    %1948 = vmatpush1.msra.mxu0 %v85
    %1949 = vmatprep.subr.mxu0 0.0
    %1950 = vmatpush1.msra.mxu0 0.0
    %1951 = vmatprep.subr.mxu0 0.0
    %1952 = vmatpush1.msra.mxu0 0.0
    %1953 = vmatprep.subr.mxu0 0.0
    %1954 = vmatpush1.msra.mxu0 0.0
    %1955 = vmatprep.subr.mxu0 0.0
    %1956 = vmatpush1.msra.mxu0 0.0
    %1957 = vmatprep.subr.mxu0 0.0
    %1958 = vmatpush1.msra.mxu0 0.0
    %1959 = vmatprep.subr.mxu0 0.0
    %1960 = vmatpush1.msra.mxu0 0.0
    %1961 = vmatprep.subr.mxu0 0.0
    %1962 = vmatpush1.msra.mxu0 0.0
    %1963 = vmatprep.subr.mxu0 0.0
    %1964 = vmatpush1.msra.mxu0 0.0
    %1965 = vmatprep.subr.mxu0 0.0
    %1966 = vmatpush1.msra.mxu0 0.0
    %1967 = vmatprep.subr.mxu0 0.0
    %1968 = vmatpush1.msra.mxu0 0.0
    %1969 = vmatprep.subr.mxu0 0.0
    %1970 = vmatpush1.msra.mxu0 0.0
    %1971 = vmatprep.subr.mxu0 0.0
    %1972 = vmatpush1.msra.mxu0 0.0
    %1973 = vmatprep.subr.mxu0 0.0
    %1974 = vmatpush1.msra.mxu0 0.0
    %1975 = vmatprep.subr.mxu0 0.0
    %1976 = vmatpush1.msra.mxu0 0.0
    %1977 = vmatprep.subr.mxu0 0.0
    %1978 = vmatpush1.msra.mxu0 0.0
    %1979 = vmatprep.subr.mxu0 0.0
    %1980 = vmatpush1.msra.mxu0 0.0
    %1981 = vmatprep.subr.mxu0 0.0
    %1982 = vmatpush1.msra.mxu0 0.0
    %1983 = vmatprep.subr.mxu0 0.0
    %1984 = vmatpush1.msra.mxu0 0.0
    %1985 = vmatprep.subr.mxu0 0.0
    %1986 = vmatpush1.msra.mxu0 0.0
    %1987 = vmatprep.subr.mxu0 0.0
    %1988 = vmatpush1.msra.mxu0 0.0
    %1989 = vmatprep.subr.mxu0 0.0
    %1990 = vmatpush1.msra.mxu0 0.0
    %1991 = vmatprep.subr.mxu0 0.0
    %1992 = vmatpush1.msra.mxu0 0.0
    %1993 = vmatprep.subr.mxu0 0.0
    %1994 = vmatpush1.msra.mxu0 0.0
    %1995 = vmatprep.subr.mxu0 0.0
    %1996 = vmatpush1.msra.mxu0 0.0
    %1997 = vmatprep.subr.mxu0 0.0
    %1998 = vmatpush1.msra.mxu0 0.0
    %1999 = vmatprep.subr.mxu0 0.0
    %2000 = vmatpush1.msra.mxu0 0.0
    %2001 = vmatprep.subr.mxu0 0.0
    %2002 = vmatpush1.msra.mxu0 0.0
    %2003 = vmatprep.subr.mxu0 0.0
    %2004 = vmatpush1.msra.mxu0 0.0
    %2005 = vmatprep.subr.mxu0 0.0
    %2006 = vmatpush1.msra.mxu0 0.0
    %2007 = vmatprep.subr.mxu0 0.0
    %2008 = vmatpush1.msra.mxu0 0.0
    %2009 = vmatprep.subr.mxu0 0.0
    %2010 = vmatpush1.msra.mxu0 0.0
    %2011 = vmatprep.mubr.f32.mxu0 0.0
    %2012 = vmatmul.mubr.f32.gmra.mrb[0].mxu0 %v1942
    %v2013 = vpop.f32.mrb[0].mxu0
    %v2014 = vadd.f32 0.0, %v2013
    %v2015 = vpop.f32.mrb[0].mxu0
    %2016 = vmatprep.mubr.f32.mxu0 0.0
    %2017 = vmatmul.mubr.f32.gmra.mrb[0].mxu0 %v1945
    %v2018 = vpop.f32.mrb[0].mxu0
    %v2019 = vadd.f32 0.0, %v2018
    %v2020 = vpop.f32.mrb[0].mxu0
    %2021 = vdwg.mxu0
    %v2022 = vadd.f32 %v1609, %v2014
    %v2023 = vadd.f32 %v1610, %v2019
    %v2024 = vadd.f32 %v42, %v2022
    %v2025 = vadd.f32 %v43, %v2023
    %v2026 = vsel %vm100, %v2024, 0.0
    %2027 = vadd.xlane.f32.xlu0 %v2026
    %v2028 = vpop.xlane.xlu0 %2027
    %v2029 = vsel %vm100, %v2025, 0.0
    %2030 = vadd.xlane.f32.xlu0 %v2029
    %v2031 = vpop.xlane.xlu0 %2030
    %v2032 = vmul.f32 %v2028, %v107
    %v2033 = vmul.f32 %v2031, %v107
    %v2034 = vsub.f32 %v2024, %v2032
    %v2035 = vsub.f32 %v2025, %v2033
    %v2036 = vmul.f32 %v2034, %v2034
    %v2037 = vmul.f32 %v2035, %v2035
    %v2038 = vsel %vm100, %v2036, 0.0
    %2039 = vadd.xlane.f32.xlu0 %v2038
    %v2040 = vpop.xlane.xlu0 %2039
    %v2041 = vsel %vm100, %v2037, 0.0
    %2042 = vadd.xlane.f32.xlu0 %v2041
    %v2043 = vpop.xlane.xlu0 %2042
    %v2044 = vmul.f32 %v2040, %v107
    %v2045 = vmul.f32 %v2043, %v107
    %v2046 = vadd.f32 %v2044, 1e-06
    %v2047 = vadd.f32 %v2045, 1e-06
    %v2048 = vrsqrt.pop %v2046
    %v2049 = vrsqrt.pop %v2047
    %v2050 = vmul.f32 %v2034, %v2048
    %v2051 = vmul.f32 %v2035, %v2049
    %v2052 = vmul.f32 %v2050, %v131
    %v2053 = vmul.f32 %v2051, %v131
    %v2054 = vadd.f32 %v2052, %v137
    %v2055 = vadd.f32 %v2053, %v137
    %v2056 = vlaneseq
    %v2057 = vshrl.u32 %v2056, 7
    %v2058 = vsub.s32 0, %v2057
    %v2059 = vrot.slane %v90, %v2058
    %v2061 = vsel %vm100, %v2054, 0
    %v2064 = vsel %vm100, %v2055, 0
    %2066 = vmatprep.subr.mxu0 0.0
    %2067 = vmatpush1.msra.mxu0 %v86
    %2068 = vmatprep.subr.mxu0 0.0
    %2069 = vmatpush1.msra.mxu0 %v87
    %2070 = vmatprep.subr.mxu0 0.0
    %2071 = vmatpush1.msra.mxu0 %v88
    %2072 = vmatprep.subr.mxu0 0.0
    %2073 = vmatpush1.msra.mxu0 %v89
    %2074 = vmatprep.subr.mxu0 0.0
    %2075 = vmatpush1.msra.mxu0 0.0
    %2076 = vmatprep.subr.mxu0 0.0
    %2077 = vmatpush1.msra.mxu0 0.0
    %2078 = vmatprep.subr.mxu0 0.0
    %2079 = vmatpush1.msra.mxu0 0.0
    %2080 = vmatprep.subr.mxu0 0.0
    %2081 = vmatpush1.msra.mxu0 0.0
    %2082 = vmatprep.subr.mxu0 0.0
    %2083 = vmatpush1.msra.mxu0 0.0
    %2084 = vmatprep.subr.mxu0 0.0
    %2085 = vmatpush1.msra.mxu0 0.0
    %2086 = vmatprep.subr.mxu0 0.0
    %2087 = vmatpush1.msra.mxu0 0.0
    %2088 = vmatprep.subr.mxu0 0.0
    %2089 = vmatpush1.msra.mxu0 0.0
    %2090 = vmatprep.subr.mxu0 0.0
    %2091 = vmatpush1.msra.mxu0 0.0
    %2092 = vmatprep.subr.mxu0 0.0
    %2093 = vmatpush1.msra.mxu0 0.0
    %2094 = vmatprep.subr.mxu0 0.0
    %2095 = vmatpush1.msra.mxu0 0.0
    %2096 = vmatprep.subr.mxu0 0.0
    %2097 = vmatpush1.msra.mxu0 0.0
    %2098 = vmatprep.subr.mxu0 0.0
    %2099 = vmatpush1.msra.mxu0 0.0
    %2100 = vmatprep.subr.mxu0 0.0
    %2101 = vmatpush1.msra.mxu0 0.0
    %2102 = vmatprep.subr.mxu0 0.0
    %2103 = vmatpush1.msra.mxu0 0.0
    %2104 = vmatprep.subr.mxu0 0.0
    %2105 = vmatpush1.msra.mxu0 0.0
    %2106 = vmatprep.subr.mxu0 0.0
    %2107 = vmatpush1.msra.mxu0 0.0
    %2108 = vmatprep.subr.mxu0 0.0
    %2109 = vmatpush1.msra.mxu0 0.0
    %2110 = vmatprep.subr.mxu0 0.0
    %2111 = vmatpush1.msra.mxu0 0.0
    %2112 = vmatprep.subr.mxu0 0.0
    %2113 = vmatpush1.msra.mxu0 0.0
    %2114 = vmatprep.subr.mxu0 0.0
    %2115 = vmatpush1.msra.mxu0 0.0
    %2116 = vmatprep.subr.mxu0 0.0
    %2117 = vmatpush1.msra.mxu0 0.0
    %2118 = vmatprep.subr.mxu0 0.0
    %2119 = vmatpush1.msra.mxu0 0.0
    %2120 = vmatprep.subr.mxu0 0.0
    %2121 = vmatpush1.msra.mxu0 0.0
    %2122 = vmatprep.subr.mxu0 0.0
    %2123 = vmatpush1.msra.mxu0 0.0
    %2124 = vmatprep.subr.mxu0 0.0
    %2125 = vmatpush1.msra.mxu0 0.0
    %2126 = vmatprep.subr.mxu0 0.0
    %2127 = vmatpush1.msra.mxu0 0.0
    %2128 = vmatprep.subr.mxu0 0.0
    %2129 = vmatpush1.msra.mxu0 0.0
    %2130 = vmatprep.mubr.f32.mxu0 0.0
    %2131 = vmatmul.mubr.f32.gmra.mrb[0].mxu0 %v2061
    %v2132 = vpop.f32.mrb[0].mxu0
    %v2133 = vadd.f32 %v2059, %v2132
    %v2134 = vpop.f32.mrb[0].mxu0
    %2135 = vmatprep.mubr.f32.mxu0 0.0
    %2136 = vmatmul.mubr.f32.gmra.mrb[0].mxu0 %v2064
    %v2137 = vpop.f32.mrb[0].mxu0
    %v2138 = vadd.f32 %v2059, %v2137
    %v2139 = vpop.f32.mrb[0].mxu0
    %2140 = vdwg.mxu0
    %v2141 = vmax.f32 %v2133, 0.0
    %v2142 = vmax.f32 %v2138, 0.0
    %v2143 = vlaneseq
    %v2144 = vshrl.u32 %v2143, 7
    %v2145 = vsub.s32 0, %v2144
    %v2146 = vrot.slane %v99, %v2145
    %vm2147 = vcmask 523264
    %v2149 = vsel %vm2147, %v2141, 0
    %v2152 = vsel %vm2147, %v2142, 0
    %2154 = vmatprep.subr.mxu0 0.0
    %2155 = vmatpush1.msra.mxu0 %v91
    %2156 = vmatprep.subr.mxu0 0.0
    %2157 = vmatpush1.msra.mxu0 %v92
    %2158 = vmatprep.subr.mxu0 0.0
    %2159 = vmatpush1.msra.mxu0 %v93
    %2160 = vmatprep.subr.mxu0 0.0
    %2161 = vmatpush1.msra.mxu0 %v94
    %2162 = vmatprep.subr.mxu0 0.0
    %2163 = vmatpush1.msra.mxu0 %v95
    %2164 = vmatprep.subr.mxu0 0.0
    %2165 = vmatpush1.msra.mxu0 %v96
    %2166 = vmatprep.subr.mxu0 0.0
    %2167 = vmatpush1.msra.mxu0 %v97
    %2168 = vmatprep.subr.mxu0 0.0
    %2169 = vmatpush1.msra.mxu0 %v98
    %2170 = vmatprep.subr.mxu0 0.0
    %2171 = vmatpush1.msra.mxu0 0.0
    %2172 = vmatprep.subr.mxu0 0.0
    %2173 = vmatpush1.msra.mxu0 0.0
    %2174 = vmatprep.subr.mxu0 0.0
    %2175 = vmatpush1.msra.mxu0 0.0
    %2176 = vmatprep.subr.mxu0 0.0
    %2177 = vmatpush1.msra.mxu0 0.0
    %2178 = vmatprep.subr.mxu0 0.0
    %2179 = vmatpush1.msra.mxu0 0.0
    %2180 = vmatprep.subr.mxu0 0.0
    %2181 = vmatpush1.msra.mxu0 0.0
    %2182 = vmatprep.subr.mxu0 0.0
    %2183 = vmatpush1.msra.mxu0 0.0
    %2184 = vmatprep.subr.mxu0 0.0
    %2185 = vmatpush1.msra.mxu0 0.0
    %2186 = vmatprep.subr.mxu0 0.0
    %2187 = vmatpush1.msra.mxu0 0.0
    %2188 = vmatprep.subr.mxu0 0.0
    %2189 = vmatpush1.msra.mxu0 0.0
    %2190 = vmatprep.subr.mxu0 0.0
    %2191 = vmatpush1.msra.mxu0 0.0
    %2192 = vmatprep.subr.mxu0 0.0
    %2193 = vmatpush1.msra.mxu0 0.0
    %2194 = vmatprep.subr.mxu0 0.0
    %2195 = vmatpush1.msra.mxu0 0.0
    %2196 = vmatprep.subr.mxu0 0.0
    %2197 = vmatpush1.msra.mxu0 0.0
    %2198 = vmatprep.subr.mxu0 0.0
    %2199 = vmatpush1.msra.mxu0 0.0
    %2200 = vmatprep.subr.mxu0 0.0
    %2201 = vmatpush1.msra.mxu0 0.0
    %2202 = vmatprep.subr.mxu0 0.0
    %2203 = vmatpush1.msra.mxu0 0.0
    %2204 = vmatprep.subr.mxu0 0.0
    %2205 = vmatpush1.msra.mxu0 0.0
    %2206 = vmatprep.subr.mxu0 0.0
    %2207 = vmatpush1.msra.mxu0 0.0
    %2208 = vmatprep.subr.mxu0 0.0
    %2209 = vmatpush1.msra.mxu0 0.0
    %2210 = vmatprep.subr.mxu0 0.0
    %2211 = vmatpush1.msra.mxu0 0.0
    %2212 = vmatprep.subr.mxu0 0.0
    %2213 = vmatpush1.msra.mxu0 0.0
    %2214 = vmatprep.subr.mxu0 0.0
    %2215 = vmatpush1.msra.mxu0 0.0
    %2216 = vmatprep.subr.mxu0 0.0
    %2217 = vmatpush1.msra.mxu0 0.0
    %2218 = vmatprep.mubr.f32.mxu0 0.0
    %2219 = vmatmul.mubr.f32.gmra.mrb[0].mxu0 %v2149
    %v2220 = vpop.f32.mrb[0].mxu0
    %v2221 = vadd.f32 %v2146, %v2220
    %v2222 = vpop.f32.mrb[0].mxu0
    %2223 = vmatprep.mubr.f32.mxu0 0.0
    %2224 = vmatmul.mubr.f32.gmra.mrb[0].mxu0 %v2152
    %v2225 = vpop.f32.mrb[0].mxu0
    %v2226 = vadd.f32 %v2146, %v2225
    %v2227 = vpop.f32.mrb[0].mxu0
    %2228 = vdwg.mxu0
    %v2229 = vadd.f32 %v2024, %v2221
    %v2230 = vadd.f32 %v2025, %v2226
    %v2231 = vld [vmem:[%s2 + $0x1] sm:$0x1]
    %v2232 = vld [vmem:[%s3 + $0x1] sm:$0x1]
    %s2233 = scalar_lea.vmem %s4, 32
    %v2234 = vld [vmem:[%s2233] sm:$0xff]
    %v2235 = vld [vmem:[%s2233 + $0x8] sm:$0xff]
    %v2236 = vld [vmem:[%s2233 + $0x10] sm:$0xff]
    %v2237 = vld [vmem:[%s2233 + $0x18] sm:$0xff]
    %s2238 = scalar_lea.vmem %s5, 32
    %v2239 = vld [vmem:[%s2238] sm:$0xff]
    %v2240 = vld [vmem:[%s2238 + $0x8] sm:$0xff]
    %v2241 = vld [vmem:[%s2238 + $0x10] sm:$0xff]
    %v2242 = vld [vmem:[%s2238 + $0x18] sm:$0xff]
    %s2243 = scalar_lea.vmem %s6, 32
    %v2244 = vld [vmem:[%s2243] sm:$0xff]
    %v2245 = vld [vmem:[%s2243 + $0x8] sm:$0xff]
    %v2246 = vld [vmem:[%s2243 + $0x10] sm:$0xff]
    %v2247 = vld [vmem:[%s2243 + $0x18] sm:$0xff]
    %s2248 = scalar_lea.vmem %s7, 32
    %v2249 = vld [vmem:[%s2248] sm:$0xff]
    %v2250 = vld [vmem:[%s2248 + $0x8] sm:$0xff]
    %v2251 = vld [vmem:[%s2248 + $0x10] sm:$0xff]
    %v2252 = vld [vmem:[%s2248 + $0x18] sm:$0xff]
    %s2253 = scalar_lea.vmem %s8, 32
    %v2254 = vld [vmem:[%s2253] sm:$0xff]
    %v2255 = vld [vmem:[%s2253 + $0x8] sm:$0xff]
    %v2256 = vld [vmem:[%s2253 + $0x10] sm:$0xff]
    %v2257 = vld [vmem:[%s2253 + $0x18] sm:$0xff]
    %v2258 = vld [vmem:[%s9 + $0x1] sm:$0x1]
    %s2259 = scalar_lea.vmem %s10, 64
    %v2260 = vld [vmem:[%s2259] sm:$0xff]
    %v2261 = vld [vmem:[%s2259 + $0x8] sm:$0xff]
    %v2262 = vld [vmem:[%s2259 + $0x10] sm:$0xff]
    %v2263 = vld [vmem:[%s2259 + $0x18] sm:$0xff]
    %v2264 = vld [vmem:[%s2259 + $0x20] sm:$0xff]
    %v2265 = vld [vmem:[%s2259 + $0x28] sm:$0xff]
    %v2266 = vld [vmem:[%s2259 + $0x30] sm:$0xff]
    %v2267 = vld [vmem:[%s2259 + $0x38] sm:$0xff]
    %v2268 = vld [vmem:[%s11 + $0x1] sm:$0x1]
    %v2269 = vsel %vm100, %v2229, 0.0
    %2270 = vadd.xlane.f32.xlu0 %v2269
    %v2271 = vpop.xlane.xlu0 %2270
    %v2272 = vsel %vm100, %v2230, 0.0
    %2273 = vadd.xlane.f32.xlu0 %v2272
    %v2274 = vpop.xlane.xlu0 %2273
    %v2275 = vmul.f32 %v2271, %v107
    %v2276 = vmul.f32 %v2274, %v107
    %v2277 = vsub.f32 %v2229, %v2275
    %v2278 = vsub.f32 %v2230, %v2276
    %v2279 = vmul.f32 %v2277, %v2277
    %v2280 = vmul.f32 %v2278, %v2278
    %v2281 = vsel %vm100, %v2279, 0.0
    %2282 = vadd.xlane.f32.xlu0 %v2281
    %v2283 = vpop.xlane.xlu0 %2282
    %v2284 = vsel %vm100, %v2280, 0.0
    %2285 = vadd.xlane.f32.xlu0 %v2284
    %v2286 = vpop.xlane.xlu0 %2285
    %v2287 = vmul.f32 %v2283, %v107
    %v2288 = vmul.f32 %v2286, %v107
    %v2289 = vadd.f32 %v2287, 1e-06
    %v2290 = vadd.f32 %v2288, 1e-06
    %v2291 = vrsqrt.pop %v2289
    %v2292 = vrsqrt.pop %v2290
    %v2293 = vmul.f32 %v2277, %v2291
    %v2294 = vmul.f32 %v2278, %v2292
    %v2295 = vlaneseq
    %v2296 = vshrl.u32 %v2295, 7
    %v2297 = vsub.s32 0, %v2296
    %v2298 = vrot.slane %v2231, %v2297
    %v2299 = vmul.f32 %v2293, %v2298
    %v2300 = vmul.f32 %v2294, %v2298
    %v2301 = vlaneseq
    %v2302 = vshrl.u32 %v2301, 7
    %v2303 = vsub.s32 0, %v2302
    %v2304 = vrot.slane %v2232, %v2303
    %v2305 = vadd.f32 %v2299, %v2304
    %v2306 = vadd.f32 %v2300, %v2304
    %v2308 = vsel %vm100, %v2305, 0
    %v2311 = vsel %vm100, %v2306, 0
    %2313 = vmatprep.subr.mxu0 0.0
    %2314 = vmatpush1.msra.mxu0 %v2234
    %2315 = vmatprep.subr.mxu0 0.0
    %2316 = vmatpush1.msra.mxu0 %v2235
    %2317 = vmatprep.subr.mxu0 0.0
    %2318 = vmatpush1.msra.mxu0 %v2236
    %2319 = vmatprep.subr.mxu0 0.0
    %2320 = vmatpush1.msra.mxu0 %v2237
    %2321 = vmatprep.subr.mxu0 0.0
    %2322 = vmatpush1.msra.mxu0 0.0
    %2323 = vmatprep.subr.mxu0 0.0
    %2324 = vmatpush1.msra.mxu0 0.0
    %2325 = vmatprep.subr.mxu0 0.0
    %2326 = vmatpush1.msra.mxu0 0.0
    %2327 = vmatprep.subr.mxu0 0.0
    %2328 = vmatpush1.msra.mxu0 0.0
    %2329 = vmatprep.subr.mxu0 0.0
    %2330 = vmatpush1.msra.mxu0 0.0
    %2331 = vmatprep.subr.mxu0 0.0
    %2332 = vmatpush1.msra.mxu0 0.0
    %2333 = vmatprep.subr.mxu0 0.0
    %2334 = vmatpush1.msra.mxu0 0.0
    %2335 = vmatprep.subr.mxu0 0.0
    %2336 = vmatpush1.msra.mxu0 0.0
    %2337 = vmatprep.subr.mxu0 0.0
    %2338 = vmatpush1.msra.mxu0 0.0
    %2339 = vmatprep.subr.mxu0 0.0
    %2340 = vmatpush1.msra.mxu0 0.0
    %2341 = vmatprep.subr.mxu0 0.0
    %2342 = vmatpush1.msra.mxu0 0.0
    %2343 = vmatprep.subr.mxu0 0.0
    %2344 = vmatpush1.msra.mxu0 0.0
    %2345 = vmatprep.subr.mxu0 0.0
    %2346 = vmatpush1.msra.mxu0 0.0
    %2347 = vmatprep.subr.mxu0 0.0
    %2348 = vmatpush1.msra.mxu0 0.0
    %2349 = vmatprep.subr.mxu0 0.0
    %2350 = vmatpush1.msra.mxu0 0.0
    %2351 = vmatprep.subr.mxu0 0.0
    %2352 = vmatpush1.msra.mxu0 0.0
    %2353 = vmatprep.subr.mxu0 0.0
    %2354 = vmatpush1.msra.mxu0 0.0
    %2355 = vmatprep.subr.mxu0 0.0
    %2356 = vmatpush1.msra.mxu0 0.0
    %2357 = vmatprep.subr.mxu0 0.0
    %2358 = vmatpush1.msra.mxu0 0.0
    %2359 = vmatprep.subr.mxu0 0.0
    %2360 = vmatpush1.msra.mxu0 0.0
    %2361 = vmatprep.subr.mxu0 0.0
    %2362 = vmatpush1.msra.mxu0 0.0
    %2363 = vmatprep.subr.mxu0 0.0
    %2364 = vmatpush1.msra.mxu0 0.0
    %2365 = vmatprep.subr.mxu0 0.0
    %2366 = vmatpush1.msra.mxu0 0.0
    %2367 = vmatprep.subr.mxu0 0.0
    %2368 = vmatpush1.msra.mxu0 0.0
    %2369 = vmatprep.subr.mxu0 0.0
    %2370 = vmatpush1.msra.mxu0 0.0
    %2371 = vmatprep.subr.mxu0 0.0
    %2372 = vmatpush1.msra.mxu0 0.0
    %2373 = vmatprep.subr.mxu0 0.0
    %2374 = vmatpush1.msra.mxu0 0.0
    %2375 = vmatprep.subr.mxu0 0.0
    %2376 = vmatpush1.msra.mxu0 0.0
    %2377 = vmatprep.mubr.f32.mxu0 0.0
    %2378 = vmatmul.mubr.f32.gmra.mrb[0].mxu0 %v2308
    %v2379 = vpop.f32.mrb[0].mxu0
    %v2380 = vadd.f32 0.0, %v2379
    %v2381 = vpop.f32.mrb[0].mxu0
    %2382 = vmatprep.mubr.f32.mxu0 0.0
    %2383 = vmatmul.mubr.f32.gmra.mrb[0].mxu0 %v2311
    %v2384 = vpop.f32.mrb[0].mxu0
    %v2385 = vadd.f32 0.0, %v2384
    %v2386 = vpop.f32.mrb[0].mxu0
    %2387 = vdwg.mxu0
    %v2388 = vmul.f32 %v2380, 0.35355338
    %v2389 = vmul.f32 %v2385, 0.35355338
    %2390 = vmatprep.subr.mxu0 0.0
    %2391 = vmatpush1.msra.mxu0 %v2239
    %2392 = vmatprep.subr.mxu0 0.0
    %2393 = vmatpush1.msra.mxu0 %v2240
    %2394 = vmatprep.subr.mxu0 0.0
    %2395 = vmatpush1.msra.mxu0 %v2241
    %2396 = vmatprep.subr.mxu0 0.0
    %2397 = vmatpush1.msra.mxu0 %v2242
    %2398 = vmatprep.subr.mxu0 0.0
    %2399 = vmatpush1.msra.mxu0 0.0
    %2400 = vmatprep.subr.mxu0 0.0
    %2401 = vmatpush1.msra.mxu0 0.0
    %2402 = vmatprep.subr.mxu0 0.0
    %2403 = vmatpush1.msra.mxu0 0.0
    %2404 = vmatprep.subr.mxu0 0.0
    %2405 = vmatpush1.msra.mxu0 0.0
    %2406 = vmatprep.subr.mxu0 0.0
    %2407 = vmatpush1.msra.mxu0 0.0
    %2408 = vmatprep.subr.mxu0 0.0
    %2409 = vmatpush1.msra.mxu0 0.0
    %2410 = vmatprep.subr.mxu0 0.0
    %2411 = vmatpush1.msra.mxu0 0.0
    %2412 = vmatprep.subr.mxu0 0.0
    %2413 = vmatpush1.msra.mxu0 0.0
    %2414 = vmatprep.subr.mxu0 0.0
    %2415 = vmatpush1.msra.mxu0 0.0
    %2416 = vmatprep.subr.mxu0 0.0
    %2417 = vmatpush1.msra.mxu0 0.0
    %2418 = vmatprep.subr.mxu0 0.0
    %2419 = vmatpush1.msra.mxu0 0.0
    %2420 = vmatprep.subr.mxu0 0.0
    %2421 = vmatpush1.msra.mxu0 0.0
    %2422 = vmatprep.subr.mxu0 0.0
    %2423 = vmatpush1.msra.mxu0 0.0
    %2424 = vmatprep.subr.mxu0 0.0
    %2425 = vmatpush1.msra.mxu0 0.0
    %2426 = vmatprep.subr.mxu0 0.0
    %2427 = vmatpush1.msra.mxu0 0.0
    %2428 = vmatprep.subr.mxu0 0.0
    %2429 = vmatpush1.msra.mxu0 0.0
    %2430 = vmatprep.subr.mxu0 0.0
    %2431 = vmatpush1.msra.mxu0 0.0
    %2432 = vmatprep.subr.mxu0 0.0
    %2433 = vmatpush1.msra.mxu0 0.0
    %2434 = vmatprep.subr.mxu0 0.0
    %2435 = vmatpush1.msra.mxu0 0.0
    %2436 = vmatprep.subr.mxu0 0.0
    %2437 = vmatpush1.msra.mxu0 0.0
    %2438 = vmatprep.subr.mxu0 0.0
    %2439 = vmatpush1.msra.mxu0 0.0
    %2440 = vmatprep.subr.mxu0 0.0
    %2441 = vmatpush1.msra.mxu0 0.0
    %2442 = vmatprep.subr.mxu0 0.0
    %2443 = vmatpush1.msra.mxu0 0.0
    %2444 = vmatprep.subr.mxu0 0.0
    %2445 = vmatpush1.msra.mxu0 0.0
    %2446 = vmatprep.subr.mxu0 0.0
    %2447 = vmatpush1.msra.mxu0 0.0
    %2448 = vmatprep.subr.mxu0 0.0
    %2449 = vmatpush1.msra.mxu0 0.0
    %2450 = vmatprep.subr.mxu0 0.0
    %2451 = vmatpush1.msra.mxu0 0.0
    %2452 = vmatprep.subr.mxu0 0.0
    %2453 = vmatpush1.msra.mxu0 0.0
    %2454 = vmatprep.mubr.f32.mxu0 0.0
    %2455 = vmatmul.mubr.f32.gmra.mrb[0].mxu0 %v2308
    %v2456 = vpop.f32.mrb[0].mxu0
    %v2457 = vadd.f32 0.0, %v2456
    %v2458 = vpop.f32.mrb[0].mxu0
    %2459 = vmatprep.mubr.f32.mxu0 0.0
    %2460 = vmatmul.mubr.f32.gmra.mrb[0].mxu0 %v2311
    %v2461 = vpop.f32.mrb[0].mxu0
    %v2462 = vadd.f32 0.0, %v2461
    %v2463 = vpop.f32.mrb[0].mxu0
    %2464 = vdwg.mxu0
    %2465 = vmatprep.subr.mxu0 0.0
    %2466 = vmatpush1.msra.mxu0 %v2244
    %2467 = vmatprep.subr.mxu0 0.0
    %2468 = vmatpush1.msra.mxu0 %v2245
    %2469 = vmatprep.subr.mxu0 0.0
    %2470 = vmatpush1.msra.mxu0 %v2246
    %2471 = vmatprep.subr.mxu0 0.0
    %2472 = vmatpush1.msra.mxu0 %v2247
    %2473 = vmatprep.subr.mxu0 0.0
    %2474 = vmatpush1.msra.mxu0 0.0
    %2475 = vmatprep.subr.mxu0 0.0
    %2476 = vmatpush1.msra.mxu0 0.0
    %2477 = vmatprep.subr.mxu0 0.0
    %2478 = vmatpush1.msra.mxu0 0.0
    %2479 = vmatprep.subr.mxu0 0.0
    %2480 = vmatpush1.msra.mxu0 0.0
    %2481 = vmatprep.subr.mxu0 0.0
    %2482 = vmatpush1.msra.mxu0 0.0
    %2483 = vmatprep.subr.mxu0 0.0
    %2484 = vmatpush1.msra.mxu0 0.0
    %2485 = vmatprep.subr.mxu0 0.0
    %2486 = vmatpush1.msra.mxu0 0.0
    %2487 = vmatprep.subr.mxu0 0.0
    %2488 = vmatpush1.msra.mxu0 0.0
    %2489 = vmatprep.subr.mxu0 0.0
    %2490 = vmatpush1.msra.mxu0 0.0
    %2491 = vmatprep.subr.mxu0 0.0
    %2492 = vmatpush1.msra.mxu0 0.0
    %2493 = vmatprep.subr.mxu0 0.0
    %2494 = vmatpush1.msra.mxu0 0.0
    %2495 = vmatprep.subr.mxu0 0.0
    %2496 = vmatpush1.msra.mxu0 0.0
    %2497 = vmatprep.subr.mxu0 0.0
    %2498 = vmatpush1.msra.mxu0 0.0
    %2499 = vmatprep.subr.mxu0 0.0
    %2500 = vmatpush1.msra.mxu0 0.0
    %2501 = vmatprep.subr.mxu0 0.0
    %2502 = vmatpush1.msra.mxu0 0.0
    %2503 = vmatprep.subr.mxu0 0.0
    %2504 = vmatpush1.msra.mxu0 0.0
    %2505 = vmatprep.subr.mxu0 0.0
    %2506 = vmatpush1.msra.mxu0 0.0
    %2507 = vmatprep.subr.mxu0 0.0
    %2508 = vmatpush1.msra.mxu0 0.0
    %2509 = vmatprep.subr.mxu0 0.0
    %2510 = vmatpush1.msra.mxu0 0.0
    %2511 = vmatprep.subr.mxu0 0.0
    %2512 = vmatpush1.msra.mxu0 0.0
    %2513 = vmatprep.subr.mxu0 0.0
    %2514 = vmatpush1.msra.mxu0 0.0
    %2515 = vmatprep.subr.mxu0 0.0
    %2516 = vmatpush1.msra.mxu0 0.0
    %2517 = vmatprep.subr.mxu0 0.0
    %2518 = vmatpush1.msra.mxu0 0.0
    %2519 = vmatprep.subr.mxu0 0.0
    %2520 = vmatpush1.msra.mxu0 0.0
    %2521 = vmatprep.subr.mxu0 0.0
    %2522 = vmatpush1.msra.mxu0 0.0
    %2523 = vmatprep.subr.mxu0 0.0
    %2524 = vmatpush1.msra.mxu0 0.0
    %2525 = vmatprep.subr.mxu0 0.0
    %2526 = vmatpush1.msra.mxu0 0.0
    %2527 = vmatprep.subr.mxu0 0.0
    %2528 = vmatpush1.msra.mxu0 0.0
    %2529 = vmatprep.mubr.f32.mxu0 0.0
    %2530 = vmatmul.mubr.f32.gmra.mrb[0].mxu0 %v2308
    %v2531 = vpop.f32.mrb[0].mxu0
    %v2532 = vadd.f32 0.0, %v2531
    %v2533 = vpop.f32.mrb[0].mxu0
    %2534 = vmatprep.mubr.f32.mxu0 0.0
    %2535 = vmatmul.mubr.f32.gmra.mrb[0].mxu0 %v2311
    %v2536 = vpop.f32.mrb[0].mxu0
    %v2537 = vadd.f32 0.0, %v2536
    %v2538 = vpop.f32.mrb[0].mxu0
    %2539 = vdwg.mxu0
    %v2541 = vsel %vm383, %v2388, 0
    %v2544 = vsel %vm383, %v2457, 0
    %2546 = vmatprep.subr.mxu0 0.0
    %2547 = vmatpush1.xpose.msra.mxu0 %v2544
    %2548 = vmatprep.subr.mxu0 0.0
    %2549 = vmatpush1.xpose.msra.mxu0 0.0
    %2550 = vmatprep.subr.mxu0 0.0
    %2551 = vmatpush1.xpose.msra.mxu0 0.0
    %2552 = vmatprep.subr.mxu0 0.0
    %2553 = vmatpush1.xpose.msra.mxu0 0.0
    %2554 = vmatprep.subr.mxu0 0.0
    %2555 = vmatpush1.xpose.msra.mxu0 0.0
    %2556 = vmatprep.subr.mxu0 0.0
    %2557 = vmatpush1.xpose.msra.mxu0 0.0
    %2558 = vmatprep.subr.mxu0 0.0
    %2559 = vmatpush1.xpose.msra.mxu0 0.0
    %2560 = vmatprep.subr.mxu0 0.0
    %2561 = vmatpush1.xpose.msra.mxu0 0.0
    %2562 = vmatprep.subr.mxu0 0.0
    %2563 = vmatpush1.xpose.msra.mxu0 0.0
    %2564 = vmatprep.subr.mxu0 0.0
    %2565 = vmatpush1.xpose.msra.mxu0 0.0
    %2566 = vmatprep.subr.mxu0 0.0
    %2567 = vmatpush1.xpose.msra.mxu0 0.0
    %2568 = vmatprep.subr.mxu0 0.0
    %2569 = vmatpush1.xpose.msra.mxu0 0.0
    %2570 = vmatprep.subr.mxu0 0.0
    %2571 = vmatpush1.xpose.msra.mxu0 0.0
    %2572 = vmatprep.subr.mxu0 0.0
    %2573 = vmatpush1.xpose.msra.mxu0 0.0
    %2574 = vmatprep.subr.mxu0 0.0
    %2575 = vmatpush1.xpose.msra.mxu0 0.0
    %2576 = vmatprep.subr.mxu0 0.0
    %2577 = vmatpush1.xpose.msra.mxu0 0.0
    %2578 = vmatprep.subr.mxu0 0.0
    %2579 = vmatpush1.xpose.msra.mxu0 0.0
    %2580 = vmatprep.subr.mxu0 0.0
    %2581 = vmatpush1.xpose.msra.mxu0 0.0
    %2582 = vmatprep.subr.mxu0 0.0
    %2583 = vmatpush1.xpose.msra.mxu0 0.0
    %2584 = vmatprep.subr.mxu0 0.0
    %2585 = vmatpush1.xpose.msra.mxu0 0.0
    %2586 = vmatprep.subr.mxu0 0.0
    %2587 = vmatpush1.xpose.msra.mxu0 0.0
    %2588 = vmatprep.subr.mxu0 0.0
    %2589 = vmatpush1.xpose.msra.mxu0 0.0
    %2590 = vmatprep.subr.mxu0 0.0
    %2591 = vmatpush1.xpose.msra.mxu0 0.0
    %2592 = vmatprep.subr.mxu0 0.0
    %2593 = vmatpush1.xpose.msra.mxu0 0.0
    %2594 = vmatprep.subr.mxu0 0.0
    %2595 = vmatpush1.xpose.msra.mxu0 0.0
    %2596 = vmatprep.subr.mxu0 0.0
    %2597 = vmatpush1.xpose.msra.mxu0 0.0
    %2598 = vmatprep.subr.mxu0 0.0
    %2599 = vmatpush1.xpose.msra.mxu0 0.0
    %2600 = vmatprep.subr.mxu0 0.0
    %2601 = vmatpush1.xpose.msra.mxu0 0.0
    %2602 = vmatprep.subr.mxu0 0.0
    %2603 = vmatpush1.xpose.msra.mxu0 0.0
    %2604 = vmatprep.subr.mxu0 0.0
    %2605 = vmatpush1.xpose.msra.mxu0 0.0
    %2606 = vmatprep.subr.mxu0 0.0
    %2607 = vmatpush1.xpose.msra.mxu0 0.0
    %2608 = vmatprep.subr.mxu0 0.0
    %2609 = vmatpush1.xpose.msra.mxu0 0.0
    %2610 = vmatprep.mubr.f32.mxu0 0.0
    %2611 = vmatmul.mubr.f32.gmra.mrb[0].mxu0 %v2541
    %v2612 = vpop.f32.mrb[0].mxu0
    %v2613 = vadd.f32 %v376, %v2612
    %v2614 = vpop.f32.mrb[0].mxu0
    %2615 = vdwg.mxu0
    %v2617 = vsel %vm383, %v2389, 0
    %v2620 = vsel %vm383, %v2462, 0
    %2622 = vmatprep.subr.mxu0 0.0
    %2623 = vmatpush1.xpose.msra.mxu0 %v2620
    %2624 = vmatprep.subr.mxu0 0.0
    %2625 = vmatpush1.xpose.msra.mxu0 0.0
    %2626 = vmatprep.subr.mxu0 0.0
    %2627 = vmatpush1.xpose.msra.mxu0 0.0
    %2628 = vmatprep.subr.mxu0 0.0
    %2629 = vmatpush1.xpose.msra.mxu0 0.0
    %2630 = vmatprep.subr.mxu0 0.0
    %2631 = vmatpush1.xpose.msra.mxu0 0.0
    %2632 = vmatprep.subr.mxu0 0.0
    %2633 = vmatpush1.xpose.msra.mxu0 0.0
    %2634 = vmatprep.subr.mxu0 0.0
    %2635 = vmatpush1.xpose.msra.mxu0 0.0
    %2636 = vmatprep.subr.mxu0 0.0
    %2637 = vmatpush1.xpose.msra.mxu0 0.0
    %2638 = vmatprep.subr.mxu0 0.0
    %2639 = vmatpush1.xpose.msra.mxu0 0.0
    %2640 = vmatprep.subr.mxu0 0.0
    %2641 = vmatpush1.xpose.msra.mxu0 0.0
    %2642 = vmatprep.subr.mxu0 0.0
    %2643 = vmatpush1.xpose.msra.mxu0 0.0
    %2644 = vmatprep.subr.mxu0 0.0
    %2645 = vmatpush1.xpose.msra.mxu0 0.0
    %2646 = vmatprep.subr.mxu0 0.0
    %2647 = vmatpush1.xpose.msra.mxu0 0.0
    %2648 = vmatprep.subr.mxu0 0.0
    %2649 = vmatpush1.xpose.msra.mxu0 0.0
    %2650 = vmatprep.subr.mxu0 0.0
    %2651 = vmatpush1.xpose.msra.mxu0 0.0
    %2652 = vmatprep.subr.mxu0 0.0
    %2653 = vmatpush1.xpose.msra.mxu0 0.0
    %2654 = vmatprep.subr.mxu0 0.0
    %2655 = vmatpush1.xpose.msra.mxu0 0.0
    %2656 = vmatprep.subr.mxu0 0.0
    %2657 = vmatpush1.xpose.msra.mxu0 0.0
    %2658 = vmatprep.subr.mxu0 0.0
    %2659 = vmatpush1.xpose.msra.mxu0 0.0
    %2660 = vmatprep.subr.mxu0 0.0
    %2661 = vmatpush1.xpose.msra.mxu0 0.0
    %2662 = vmatprep.subr.mxu0 0.0
    %2663 = vmatpush1.xpose.msra.mxu0 0.0
    %2664 = vmatprep.subr.mxu0 0.0
    %2665 = vmatpush1.xpose.msra.mxu0 0.0
    %2666 = vmatprep.subr.mxu0 0.0
    %2667 = vmatpush1.xpose.msra.mxu0 0.0
    %2668 = vmatprep.subr.mxu0 0.0
    %2669 = vmatpush1.xpose.msra.mxu0 0.0
    %2670 = vmatprep.subr.mxu0 0.0
    %2671 = vmatpush1.xpose.msra.mxu0 0.0
    %2672 = vmatprep.subr.mxu0 0.0
    %2673 = vmatpush1.xpose.msra.mxu0 0.0
    %2674 = vmatprep.subr.mxu0 0.0
    %2675 = vmatpush1.xpose.msra.mxu0 0.0
    %2676 = vmatprep.subr.mxu0 0.0
    %2677 = vmatpush1.xpose.msra.mxu0 0.0
    %2678 = vmatprep.subr.mxu0 0.0
    %2679 = vmatpush1.xpose.msra.mxu0 0.0
    %2680 = vmatprep.subr.mxu0 0.0
    %2681 = vmatpush1.xpose.msra.mxu0 0.0
    %2682 = vmatprep.subr.mxu0 0.0
    %2683 = vmatpush1.xpose.msra.mxu0 0.0
    %2684 = vmatprep.subr.mxu0 0.0
    %2685 = vmatpush1.xpose.msra.mxu0 0.0
    %2686 = vmatprep.mubr.f32.mxu0 0.0
    %2687 = vmatmul.mubr.f32.gmra.mrb[0].mxu0 %v2617
    %v2688 = vpop.f32.mrb[0].mxu0
    %v2689 = vadd.f32 %v380, %v2688
    %v2690 = vpop.f32.mrb[0].mxu0
    %2691 = vdwg.mxu0
    %v2692 = vsel %vm383, %v2613, -inf
    %2693 = vmax.xlane.f32.xlu0 %v2692
    %v2694 = vpop.xlane.xlu0 %2693
    %v2695 = vsel %vm383, %v2689, -inf
    %2696 = vmax.xlane.f32.xlu0 %v2695
    %v2697 = vpop.xlane.xlu0 %2696
    %v2698 = vsub.f32 %v2613, %v2694
    %v2699 = vsub.f32 %v2689, %v2697
    %v2700 = vmul.f32 %v2698, 1.442695
    %v2701 = vpow.pop %v2700
    %v2702 = vmul.f32 %v2699, 1.442695
    %v2703 = vpow.pop %v2702
    %v2704 = vsel %vm383, %v2701, 0.0
    %2705 = vadd.xlane.f32.xlu0 %v2704
    %v2706 = vpop.xlane.xlu0 %2705
    %v2707 = vsel %vm383, %v2703, 0.0
    %2708 = vadd.xlane.f32.xlu0 %v2707
    %v2709 = vpop.xlane.xlu0 %2708
    %v2710 = vrcp.pop %v2706
    %v2711 = vrcp.pop %v2709
    %v2712 = vmul.f32 %v2701, %v2710
    %v2713 = vmul.f32 %v2703, %v2711
    %v2715 = vsel %vm383, %v2712, 0
    %2717 = vmatprep.subr.mxu0 0.0
    %2718 = vmatpush1.msra.mxu0 %v2532
    %2719 = vmatprep.subr.mxu0 0.0
    %2720 = vmatpush1.msra.mxu0 0.0
    %2721 = vmatprep.subr.mxu0 0.0
    %2722 = vmatpush1.msra.mxu0 0.0
    %2723 = vmatprep.subr.mxu0 0.0
    %2724 = vmatpush1.msra.mxu0 0.0
    %2725 = vmatprep.subr.mxu0 0.0
    %2726 = vmatpush1.msra.mxu0 0.0
    %2727 = vmatprep.subr.mxu0 0.0
    %2728 = vmatpush1.msra.mxu0 0.0
    %2729 = vmatprep.subr.mxu0 0.0
    %2730 = vmatpush1.msra.mxu0 0.0
    %2731 = vmatprep.subr.mxu0 0.0
    %2732 = vmatpush1.msra.mxu0 0.0
    %2733 = vmatprep.subr.mxu0 0.0
    %2734 = vmatpush1.msra.mxu0 0.0
    %2735 = vmatprep.subr.mxu0 0.0
    %2736 = vmatpush1.msra.mxu0 0.0
    %2737 = vmatprep.subr.mxu0 0.0
    %2738 = vmatpush1.msra.mxu0 0.0
    %2739 = vmatprep.subr.mxu0 0.0
    %2740 = vmatpush1.msra.mxu0 0.0
    %2741 = vmatprep.subr.mxu0 0.0
    %2742 = vmatpush1.msra.mxu0 0.0
    %2743 = vmatprep.subr.mxu0 0.0
    %2744 = vmatpush1.msra.mxu0 0.0
    %2745 = vmatprep.subr.mxu0 0.0
    %2746 = vmatpush1.msra.mxu0 0.0
    %2747 = vmatprep.subr.mxu0 0.0
    %2748 = vmatpush1.msra.mxu0 0.0
    %2749 = vmatprep.subr.mxu0 0.0
    %2750 = vmatpush1.msra.mxu0 0.0
    %2751 = vmatprep.subr.mxu0 0.0
    %2752 = vmatpush1.msra.mxu0 0.0
    %2753 = vmatprep.subr.mxu0 0.0
    %2754 = vmatpush1.msra.mxu0 0.0
    %2755 = vmatprep.subr.mxu0 0.0
    %2756 = vmatpush1.msra.mxu0 0.0
    %2757 = vmatprep.subr.mxu0 0.0
    %2758 = vmatpush1.msra.mxu0 0.0
    %2759 = vmatprep.subr.mxu0 0.0
    %2760 = vmatpush1.msra.mxu0 0.0
    %2761 = vmatprep.subr.mxu0 0.0
    %2762 = vmatpush1.msra.mxu0 0.0
    %2763 = vmatprep.subr.mxu0 0.0
    %2764 = vmatpush1.msra.mxu0 0.0
    %2765 = vmatprep.subr.mxu0 0.0
    %2766 = vmatpush1.msra.mxu0 0.0
    %2767 = vmatprep.subr.mxu0 0.0
    %2768 = vmatpush1.msra.mxu0 0.0
    %2769 = vmatprep.subr.mxu0 0.0
    %2770 = vmatpush1.msra.mxu0 0.0
    %2771 = vmatprep.subr.mxu0 0.0
    %2772 = vmatpush1.msra.mxu0 0.0
    %2773 = vmatprep.subr.mxu0 0.0
    %2774 = vmatpush1.msra.mxu0 0.0
    %2775 = vmatprep.subr.mxu0 0.0
    %2776 = vmatpush1.msra.mxu0 0.0
    %2777 = vmatprep.subr.mxu0 0.0
    %2778 = vmatpush1.msra.mxu0 0.0
    %2779 = vmatprep.subr.mxu0 0.0
    %2780 = vmatpush1.msra.mxu0 0.0
    %2781 = vmatprep.mubr.f32.mxu0 0.0
    %2782 = vmatmul.mubr.f32.gmra.mrb[0].mxu0 %v2715
    %v2783 = vpop.f32.mrb[0].mxu0
    %v2784 = vadd.f32 0.0, %v2783
    %v2785 = vpop.f32.mrb[0].mxu0
    %2786 = vdwg.mxu0
    %v2788 = vsel %vm383, %v2713, 0
    %2790 = vmatprep.subr.mxu0 0.0
    %2791 = vmatpush1.msra.mxu0 %v2537
    %2792 = vmatprep.subr.mxu0 0.0
    %2793 = vmatpush1.msra.mxu0 0.0
    %2794 = vmatprep.subr.mxu0 0.0
    %2795 = vmatpush1.msra.mxu0 0.0
    %2796 = vmatprep.subr.mxu0 0.0
    %2797 = vmatpush1.msra.mxu0 0.0
    %2798 = vmatprep.subr.mxu0 0.0
    %2799 = vmatpush1.msra.mxu0 0.0
    %2800 = vmatprep.subr.mxu0 0.0
    %2801 = vmatpush1.msra.mxu0 0.0
    %2802 = vmatprep.subr.mxu0 0.0
    %2803 = vmatpush1.msra.mxu0 0.0
    %2804 = vmatprep.subr.mxu0 0.0
    %2805 = vmatpush1.msra.mxu0 0.0
    %2806 = vmatprep.subr.mxu0 0.0
    %2807 = vmatpush1.msra.mxu0 0.0
    %2808 = vmatprep.subr.mxu0 0.0
    %2809 = vmatpush1.msra.mxu0 0.0
    %2810 = vmatprep.subr.mxu0 0.0
    %2811 = vmatpush1.msra.mxu0 0.0
    %2812 = vmatprep.subr.mxu0 0.0
    %2813 = vmatpush1.msra.mxu0 0.0
    %2814 = vmatprep.subr.mxu0 0.0
    %2815 = vmatpush1.msra.mxu0 0.0
    %2816 = vmatprep.subr.mxu0 0.0
    %2817 = vmatpush1.msra.mxu0 0.0
    %2818 = vmatprep.subr.mxu0 0.0
    %2819 = vmatpush1.msra.mxu0 0.0
    %2820 = vmatprep.subr.mxu0 0.0
    %2821 = vmatpush1.msra.mxu0 0.0
    %2822 = vmatprep.subr.mxu0 0.0
    %2823 = vmatpush1.msra.mxu0 0.0
    %2824 = vmatprep.subr.mxu0 0.0
    %2825 = vmatpush1.msra.mxu0 0.0
    %2826 = vmatprep.subr.mxu0 0.0
    %2827 = vmatpush1.msra.mxu0 0.0
    %2828 = vmatprep.subr.mxu0 0.0
    %2829 = vmatpush1.msra.mxu0 0.0
    %2830 = vmatprep.subr.mxu0 0.0
    %2831 = vmatpush1.msra.mxu0 0.0
    %2832 = vmatprep.subr.mxu0 0.0
    %2833 = vmatpush1.msra.mxu0 0.0
    %2834 = vmatprep.subr.mxu0 0.0
    %2835 = vmatpush1.msra.mxu0 0.0
    %2836 = vmatprep.subr.mxu0 0.0
    %2837 = vmatpush1.msra.mxu0 0.0
    %2838 = vmatprep.subr.mxu0 0.0
    %2839 = vmatpush1.msra.mxu0 0.0
    %2840 = vmatprep.subr.mxu0 0.0
    %2841 = vmatpush1.msra.mxu0 0.0
    %2842 = vmatprep.subr.mxu0 0.0
    %2843 = vmatpush1.msra.mxu0 0.0
    %2844 = vmatprep.subr.mxu0 0.0
    %2845 = vmatpush1.msra.mxu0 0.0
    %2846 = vmatprep.subr.mxu0 0.0
    %2847 = vmatpush1.msra.mxu0 0.0
    %2848 = vmatprep.subr.mxu0 0.0
    %2849 = vmatpush1.msra.mxu0 0.0
    %2850 = vmatprep.subr.mxu0 0.0
    %2851 = vmatpush1.msra.mxu0 0.0
    %2852 = vmatprep.subr.mxu0 0.0
    %2853 = vmatpush1.msra.mxu0 0.0
    %2854 = vmatprep.mubr.f32.mxu0 0.0
    %2855 = vmatmul.mubr.f32.gmra.mrb[0].mxu0 %v2788
    %v2856 = vpop.f32.mrb[0].mxu0
    %v2857 = vadd.f32 0.0, %v2856
    %v2858 = vpop.f32.mrb[0].mxu0
    %2859 = vdwg.mxu0
    %2860 = vrot.lane.b32.xlu0 %v2388, 120
    %v2861 = vpop.permute.xlu0 %2860
    %2862 = vrot.lane.b32.xlu0 %v2457, 120
    %v2863 = vpop.permute.xlu0 %2862
    %v2864 = vsel %vm383, %v2861, 0
    %v2866 = vsel %vm383, %v2863, 0
    %2868 = vmatprep.subr.mxu0 0.0
    %2869 = vmatpush1.xpose.msra.mxu0 %v2866
    %2870 = vmatprep.subr.mxu0 0.0
    %2871 = vmatpush1.xpose.msra.mxu0 0.0
    %2872 = vmatprep.subr.mxu0 0.0
    %2873 = vmatpush1.xpose.msra.mxu0 0.0
    %2874 = vmatprep.subr.mxu0 0.0
    %2875 = vmatpush1.xpose.msra.mxu0 0.0
    %2876 = vmatprep.subr.mxu0 0.0
    %2877 = vmatpush1.xpose.msra.mxu0 0.0
    %2878 = vmatprep.subr.mxu0 0.0
    %2879 = vmatpush1.xpose.msra.mxu0 0.0
    %2880 = vmatprep.subr.mxu0 0.0
    %2881 = vmatpush1.xpose.msra.mxu0 0.0
    %2882 = vmatprep.subr.mxu0 0.0
    %2883 = vmatpush1.xpose.msra.mxu0 0.0
    %2884 = vmatprep.subr.mxu0 0.0
    %2885 = vmatpush1.xpose.msra.mxu0 0.0
    %2886 = vmatprep.subr.mxu0 0.0
    %2887 = vmatpush1.xpose.msra.mxu0 0.0
    %2888 = vmatprep.subr.mxu0 0.0
    %2889 = vmatpush1.xpose.msra.mxu0 0.0
    %2890 = vmatprep.subr.mxu0 0.0
    %2891 = vmatpush1.xpose.msra.mxu0 0.0
    %2892 = vmatprep.subr.mxu0 0.0
    %2893 = vmatpush1.xpose.msra.mxu0 0.0
    %2894 = vmatprep.subr.mxu0 0.0
    %2895 = vmatpush1.xpose.msra.mxu0 0.0
    %2896 = vmatprep.subr.mxu0 0.0
    %2897 = vmatpush1.xpose.msra.mxu0 0.0
    %2898 = vmatprep.subr.mxu0 0.0
    %2899 = vmatpush1.xpose.msra.mxu0 0.0
    %2900 = vmatprep.subr.mxu0 0.0
    %2901 = vmatpush1.xpose.msra.mxu0 0.0
    %2902 = vmatprep.subr.mxu0 0.0
    %2903 = vmatpush1.xpose.msra.mxu0 0.0
    %2904 = vmatprep.subr.mxu0 0.0
    %2905 = vmatpush1.xpose.msra.mxu0 0.0
    %2906 = vmatprep.subr.mxu0 0.0
    %2907 = vmatpush1.xpose.msra.mxu0 0.0
    %2908 = vmatprep.subr.mxu0 0.0
    %2909 = vmatpush1.xpose.msra.mxu0 0.0
    %2910 = vmatprep.subr.mxu0 0.0
    %2911 = vmatpush1.xpose.msra.mxu0 0.0
    %2912 = vmatprep.subr.mxu0 0.0
    %2913 = vmatpush1.xpose.msra.mxu0 0.0
    %2914 = vmatprep.subr.mxu0 0.0
    %2915 = vmatpush1.xpose.msra.mxu0 0.0
    %2916 = vmatprep.subr.mxu0 0.0
    %2917 = vmatpush1.xpose.msra.mxu0 0.0
    %2918 = vmatprep.subr.mxu0 0.0
    %2919 = vmatpush1.xpose.msra.mxu0 0.0
    %2920 = vmatprep.subr.mxu0 0.0
    %2921 = vmatpush1.xpose.msra.mxu0 0.0
    %2922 = vmatprep.subr.mxu0 0.0
    %2923 = vmatpush1.xpose.msra.mxu0 0.0
    %2924 = vmatprep.subr.mxu0 0.0
    %2925 = vmatpush1.xpose.msra.mxu0 0.0
    %2926 = vmatprep.subr.mxu0 0.0
    %2927 = vmatpush1.xpose.msra.mxu0 0.0
    %2928 = vmatprep.subr.mxu0 0.0
    %2929 = vmatpush1.xpose.msra.mxu0 0.0
    %2930 = vmatprep.subr.mxu0 0.0
    %2931 = vmatpush1.xpose.msra.mxu0 0.0
    %2932 = vmatprep.mubr.f32.mxu0 0.0
    %2933 = vmatmul.mubr.f32.gmra.mrb[0].mxu0 %v2864
    %v2934 = vpop.f32.mrb[0].mxu0
    %v2935 = vadd.f32 %v376, %v2934
    %v2936 = vpop.f32.mrb[0].mxu0
    %2937 = vdwg.mxu0
    %2938 = vrot.lane.b32.xlu0 %v2389, 120
    %v2939 = vpop.permute.xlu0 %2938
    %2940 = vrot.lane.b32.xlu0 %v2462, 120
    %v2941 = vpop.permute.xlu0 %2940
    %v2942 = vsel %vm383, %v2939, 0
    %v2944 = vsel %vm383, %v2941, 0
    %2946 = vmatprep.subr.mxu0 0.0
    %2947 = vmatpush1.xpose.msra.mxu0 %v2944
    %2948 = vmatprep.subr.mxu0 0.0
    %2949 = vmatpush1.xpose.msra.mxu0 0.0
    %2950 = vmatprep.subr.mxu0 0.0
    %2951 = vmatpush1.xpose.msra.mxu0 0.0
    %2952 = vmatprep.subr.mxu0 0.0
    %2953 = vmatpush1.xpose.msra.mxu0 0.0
    %2954 = vmatprep.subr.mxu0 0.0
    %2955 = vmatpush1.xpose.msra.mxu0 0.0
    %2956 = vmatprep.subr.mxu0 0.0
    %2957 = vmatpush1.xpose.msra.mxu0 0.0
    %2958 = vmatprep.subr.mxu0 0.0
    %2959 = vmatpush1.xpose.msra.mxu0 0.0
    %2960 = vmatprep.subr.mxu0 0.0
    %2961 = vmatpush1.xpose.msra.mxu0 0.0
    %2962 = vmatprep.subr.mxu0 0.0
    %2963 = vmatpush1.xpose.msra.mxu0 0.0
    %2964 = vmatprep.subr.mxu0 0.0
    %2965 = vmatpush1.xpose.msra.mxu0 0.0
    %2966 = vmatprep.subr.mxu0 0.0
    %2967 = vmatpush1.xpose.msra.mxu0 0.0
    %2968 = vmatprep.subr.mxu0 0.0
    %2969 = vmatpush1.xpose.msra.mxu0 0.0
    %2970 = vmatprep.subr.mxu0 0.0
    %2971 = vmatpush1.xpose.msra.mxu0 0.0
    %2972 = vmatprep.subr.mxu0 0.0
    %2973 = vmatpush1.xpose.msra.mxu0 0.0
    %2974 = vmatprep.subr.mxu0 0.0
    %2975 = vmatpush1.xpose.msra.mxu0 0.0
    %2976 = vmatprep.subr.mxu0 0.0
    %2977 = vmatpush1.xpose.msra.mxu0 0.0
    %2978 = vmatprep.subr.mxu0 0.0
    %2979 = vmatpush1.xpose.msra.mxu0 0.0
    %2980 = vmatprep.subr.mxu0 0.0
    %2981 = vmatpush1.xpose.msra.mxu0 0.0
    %2982 = vmatprep.subr.mxu0 0.0
    %2983 = vmatpush1.xpose.msra.mxu0 0.0
    %2984 = vmatprep.subr.mxu0 0.0
    %2985 = vmatpush1.xpose.msra.mxu0 0.0
    %2986 = vmatprep.subr.mxu0 0.0
    %2987 = vmatpush1.xpose.msra.mxu0 0.0
    %2988 = vmatprep.subr.mxu0 0.0
    %2989 = vmatpush1.xpose.msra.mxu0 0.0
    %2990 = vmatprep.subr.mxu0 0.0
    %2991 = vmatpush1.xpose.msra.mxu0 0.0
    %2992 = vmatprep.subr.mxu0 0.0
    %2993 = vmatpush1.xpose.msra.mxu0 0.0
    %2994 = vmatprep.subr.mxu0 0.0
    %2995 = vmatpush1.xpose.msra.mxu0 0.0
    %2996 = vmatprep.subr.mxu0 0.0
    %2997 = vmatpush1.xpose.msra.mxu0 0.0
    %2998 = vmatprep.subr.mxu0 0.0
    %2999 = vmatpush1.xpose.msra.mxu0 0.0
    %3000 = vmatprep.subr.mxu0 0.0
    %3001 = vmatpush1.xpose.msra.mxu0 0.0
    %3002 = vmatprep.subr.mxu0 0.0
    %3003 = vmatpush1.xpose.msra.mxu0 0.0
    %3004 = vmatprep.subr.mxu0 0.0
    %3005 = vmatpush1.xpose.msra.mxu0 0.0
    %3006 = vmatprep.subr.mxu0 0.0
    %3007 = vmatpush1.xpose.msra.mxu0 0.0
    %3008 = vmatprep.subr.mxu0 0.0
    %3009 = vmatpush1.xpose.msra.mxu0 0.0
    %3010 = vmatprep.mubr.f32.mxu0 0.0
    %3011 = vmatmul.mubr.f32.gmra.mrb[0].mxu0 %v2942
    %v3012 = vpop.f32.mrb[0].mxu0
    %v3013 = vadd.f32 %v380, %v3012
    %v3014 = vpop.f32.mrb[0].mxu0
    %3015 = vdwg.mxu0
    %v3016 = vsel %vm383, %v2935, -inf
    %3017 = vmax.xlane.f32.xlu0 %v3016
    %v3018 = vpop.xlane.xlu0 %3017
    %v3019 = vsel %vm383, %v3013, -inf
    %3020 = vmax.xlane.f32.xlu0 %v3019
    %v3021 = vpop.xlane.xlu0 %3020
    %v3022 = vsub.f32 %v2935, %v3018
    %v3023 = vsub.f32 %v3013, %v3021
    %v3024 = vmul.f32 %v3022, 1.442695
    %v3025 = vpow.pop %v3024
    %v3026 = vmul.f32 %v3023, 1.442695
    %v3027 = vpow.pop %v3026
    %v3028 = vsel %vm383, %v3025, 0.0
    %3029 = vadd.xlane.f32.xlu0 %v3028
    %v3030 = vpop.xlane.xlu0 %3029
    %v3031 = vsel %vm383, %v3027, 0.0
    %3032 = vadd.xlane.f32.xlu0 %v3031
    %v3033 = vpop.xlane.xlu0 %3032
    %v3034 = vrcp.pop %v3030
    %v3035 = vrcp.pop %v3033
    %v3036 = vmul.f32 %v3025, %v3034
    %v3037 = vmul.f32 %v3027, %v3035
    %3039 = vrot.lane.b32.xlu0 %v2532, 120
    %v3040 = vpop.permute.xlu0 %3039
    %v3043 = vsel %vm383, %v3036, 0
    %3045 = vmatprep.subr.mxu0 0.0
    %3046 = vmatpush1.msra.mxu0 %v3040
    %3047 = vmatprep.subr.mxu0 0.0
    %3048 = vmatpush1.msra.mxu0 0.0
    %3049 = vmatprep.subr.mxu0 0.0
    %3050 = vmatpush1.msra.mxu0 0.0
    %3051 = vmatprep.subr.mxu0 0.0
    %3052 = vmatpush1.msra.mxu0 0.0
    %3053 = vmatprep.subr.mxu0 0.0
    %3054 = vmatpush1.msra.mxu0 0.0
    %3055 = vmatprep.subr.mxu0 0.0
    %3056 = vmatpush1.msra.mxu0 0.0
    %3057 = vmatprep.subr.mxu0 0.0
    %3058 = vmatpush1.msra.mxu0 0.0
    %3059 = vmatprep.subr.mxu0 0.0
    %3060 = vmatpush1.msra.mxu0 0.0
    %3061 = vmatprep.subr.mxu0 0.0
    %3062 = vmatpush1.msra.mxu0 0.0
    %3063 = vmatprep.subr.mxu0 0.0
    %3064 = vmatpush1.msra.mxu0 0.0
    %3065 = vmatprep.subr.mxu0 0.0
    %3066 = vmatpush1.msra.mxu0 0.0
    %3067 = vmatprep.subr.mxu0 0.0
    %3068 = vmatpush1.msra.mxu0 0.0
    %3069 = vmatprep.subr.mxu0 0.0
    %3070 = vmatpush1.msra.mxu0 0.0
    %3071 = vmatprep.subr.mxu0 0.0
    %3072 = vmatpush1.msra.mxu0 0.0
    %3073 = vmatprep.subr.mxu0 0.0
    %3074 = vmatpush1.msra.mxu0 0.0
    %3075 = vmatprep.subr.mxu0 0.0
    %3076 = vmatpush1.msra.mxu0 0.0
    %3077 = vmatprep.subr.mxu0 0.0
    %3078 = vmatpush1.msra.mxu0 0.0
    %3079 = vmatprep.subr.mxu0 0.0
    %3080 = vmatpush1.msra.mxu0 0.0
    %3081 = vmatprep.subr.mxu0 0.0
    %3082 = vmatpush1.msra.mxu0 0.0
    %3083 = vmatprep.subr.mxu0 0.0
    %3084 = vmatpush1.msra.mxu0 0.0
    %3085 = vmatprep.subr.mxu0 0.0
    %3086 = vmatpush1.msra.mxu0 0.0
    %3087 = vmatprep.subr.mxu0 0.0
    %3088 = vmatpush1.msra.mxu0 0.0
    %3089 = vmatprep.subr.mxu0 0.0
    %3090 = vmatpush1.msra.mxu0 0.0
    %3091 = vmatprep.subr.mxu0 0.0
    %3092 = vmatpush1.msra.mxu0 0.0
    %3093 = vmatprep.subr.mxu0 0.0
    %3094 = vmatpush1.msra.mxu0 0.0
    %3095 = vmatprep.subr.mxu0 0.0
    %3096 = vmatpush1.msra.mxu0 0.0
    %3097 = vmatprep.subr.mxu0 0.0
    %3098 = vmatpush1.msra.mxu0 0.0
    %3099 = vmatprep.subr.mxu0 0.0
    %3100 = vmatpush1.msra.mxu0 0.0
    %3101 = vmatprep.subr.mxu0 0.0
    %3102 = vmatpush1.msra.mxu0 0.0
    %3103 = vmatprep.subr.mxu0 0.0
    %3104 = vmatpush1.msra.mxu0 0.0
    %3105 = vmatprep.subr.mxu0 0.0
    %3106 = vmatpush1.msra.mxu0 0.0
    %3107 = vmatprep.subr.mxu0 0.0
    %3108 = vmatpush1.msra.mxu0 0.0
    %3109 = vmatprep.mubr.f32.mxu0 0.0
    %3110 = vmatmul.mubr.f32.gmra.mrb[0].mxu0 %v3043
    %v3111 = vpop.f32.mrb[0].mxu0
    %v3112 = vadd.f32 0.0, %v3111
    %v3113 = vpop.f32.mrb[0].mxu0
    %3114 = vdwg.mxu0
    %3116 = vrot.lane.b32.xlu0 %v2537, 120
    %v3117 = vpop.permute.xlu0 %3116
    %v3120 = vsel %vm383, %v3037, 0
    %3122 = vmatprep.subr.mxu0 0.0
    %3123 = vmatpush1.msra.mxu0 %v3117
    %3124 = vmatprep.subr.mxu0 0.0
    %3125 = vmatpush1.msra.mxu0 0.0
    %3126 = vmatprep.subr.mxu0 0.0
    %3127 = vmatpush1.msra.mxu0 0.0
    %3128 = vmatprep.subr.mxu0 0.0
    %3129 = vmatpush1.msra.mxu0 0.0
    %3130 = vmatprep.subr.mxu0 0.0
    %3131 = vmatpush1.msra.mxu0 0.0
    %3132 = vmatprep.subr.mxu0 0.0
    %3133 = vmatpush1.msra.mxu0 0.0
    %3134 = vmatprep.subr.mxu0 0.0
    %3135 = vmatpush1.msra.mxu0 0.0
    %3136 = vmatprep.subr.mxu0 0.0
    %3137 = vmatpush1.msra.mxu0 0.0
    %3138 = vmatprep.subr.mxu0 0.0
    %3139 = vmatpush1.msra.mxu0 0.0
    %3140 = vmatprep.subr.mxu0 0.0
    %3141 = vmatpush1.msra.mxu0 0.0
    %3142 = vmatprep.subr.mxu0 0.0
    %3143 = vmatpush1.msra.mxu0 0.0
    %3144 = vmatprep.subr.mxu0 0.0
    %3145 = vmatpush1.msra.mxu0 0.0
    %3146 = vmatprep.subr.mxu0 0.0
    %3147 = vmatpush1.msra.mxu0 0.0
    %3148 = vmatprep.subr.mxu0 0.0
    %3149 = vmatpush1.msra.mxu0 0.0
    %3150 = vmatprep.subr.mxu0 0.0
    %3151 = vmatpush1.msra.mxu0 0.0
    %3152 = vmatprep.subr.mxu0 0.0
    %3153 = vmatpush1.msra.mxu0 0.0
    %3154 = vmatprep.subr.mxu0 0.0
    %3155 = vmatpush1.msra.mxu0 0.0
    %3156 = vmatprep.subr.mxu0 0.0
    %3157 = vmatpush1.msra.mxu0 0.0
    %3158 = vmatprep.subr.mxu0 0.0
    %3159 = vmatpush1.msra.mxu0 0.0
    %3160 = vmatprep.subr.mxu0 0.0
    %3161 = vmatpush1.msra.mxu0 0.0
    %3162 = vmatprep.subr.mxu0 0.0
    %3163 = vmatpush1.msra.mxu0 0.0
    %3164 = vmatprep.subr.mxu0 0.0
    %3165 = vmatpush1.msra.mxu0 0.0
    %3166 = vmatprep.subr.mxu0 0.0
    %3167 = vmatpush1.msra.mxu0 0.0
    %3168 = vmatprep.subr.mxu0 0.0
    %3169 = vmatpush1.msra.mxu0 0.0
    %3170 = vmatprep.subr.mxu0 0.0
    %3171 = vmatpush1.msra.mxu0 0.0
    %3172 = vmatprep.subr.mxu0 0.0
    %3173 = vmatpush1.msra.mxu0 0.0
    %3174 = vmatprep.subr.mxu0 0.0
    %3175 = vmatpush1.msra.mxu0 0.0
    %3176 = vmatprep.subr.mxu0 0.0
    %3177 = vmatpush1.msra.mxu0 0.0
    %3178 = vmatprep.subr.mxu0 0.0
    %3179 = vmatpush1.msra.mxu0 0.0
    %3180 = vmatprep.subr.mxu0 0.0
    %3181 = vmatpush1.msra.mxu0 0.0
    %3182 = vmatprep.subr.mxu0 0.0
    %3183 = vmatpush1.msra.mxu0 0.0
    %3184 = vmatprep.subr.mxu0 0.0
    %3185 = vmatpush1.msra.mxu0 0.0
    %3186 = vmatprep.mubr.f32.mxu0 0.0
    %3187 = vmatmul.mubr.f32.gmra.mrb[0].mxu0 %v3120
    %v3188 = vpop.f32.mrb[0].mxu0
    %v3189 = vadd.f32 0.0, %v3188
    %v3190 = vpop.f32.mrb[0].mxu0
    %3191 = vdwg.mxu0
    %v3193 = vsel %vm383, %v3112, 0
    %v3196 = vsel %vm383, %v3189, 0
    %3198 = vmatprep.subr.mxu0 0.0
    %3199 = vmatpush1.msra.mxu0 %v2250
    %3200 = vmatprep.subr.mxu0 0.0
    %3201 = vmatpush1.msra.mxu0 0.0
    %3202 = vmatprep.subr.mxu0 0.0
    %3203 = vmatpush1.msra.mxu0 0.0
    %3204 = vmatprep.subr.mxu0 0.0
    %3205 = vmatpush1.msra.mxu0 0.0
    %3206 = vmatprep.subr.mxu0 0.0
    %3207 = vmatpush1.msra.mxu0 0.0
    %3208 = vmatprep.subr.mxu0 0.0
    %3209 = vmatpush1.msra.mxu0 0.0
    %3210 = vmatprep.subr.mxu0 0.0
    %3211 = vmatpush1.msra.mxu0 0.0
    %3212 = vmatprep.subr.mxu0 0.0
    %3213 = vmatpush1.msra.mxu0 0.0
    %3214 = vmatprep.subr.mxu0 0.0
    %3215 = vmatpush1.msra.mxu0 0.0
    %3216 = vmatprep.subr.mxu0 0.0
    %3217 = vmatpush1.msra.mxu0 0.0
    %3218 = vmatprep.subr.mxu0 0.0
    %3219 = vmatpush1.msra.mxu0 0.0
    %3220 = vmatprep.subr.mxu0 0.0
    %3221 = vmatpush1.msra.mxu0 0.0
    %3222 = vmatprep.subr.mxu0 0.0
    %3223 = vmatpush1.msra.mxu0 0.0
    %3224 = vmatprep.subr.mxu0 0.0
    %3225 = vmatpush1.msra.mxu0 0.0
    %3226 = vmatprep.subr.mxu0 0.0
    %3227 = vmatpush1.msra.mxu0 0.0
    %3228 = vmatprep.subr.mxu0 0.0
    %3229 = vmatpush1.msra.mxu0 0.0
    %3230 = vmatprep.subr.mxu0 0.0
    %3231 = vmatpush1.msra.mxu0 0.0
    %3232 = vmatprep.subr.mxu0 0.0
    %3233 = vmatpush1.msra.mxu0 0.0
    %3234 = vmatprep.subr.mxu0 0.0
    %3235 = vmatpush1.msra.mxu0 0.0
    %3236 = vmatprep.subr.mxu0 0.0
    %3237 = vmatpush1.msra.mxu0 0.0
    %3238 = vmatprep.subr.mxu0 0.0
    %3239 = vmatpush1.msra.mxu0 0.0
    %3240 = vmatprep.subr.mxu0 0.0
    %3241 = vmatpush1.msra.mxu0 0.0
    %3242 = vmatprep.subr.mxu0 0.0
    %3243 = vmatpush1.msra.mxu0 0.0
    %3244 = vmatprep.subr.mxu0 0.0
    %3245 = vmatpush1.msra.mxu0 0.0
    %3246 = vmatprep.subr.mxu0 0.0
    %3247 = vmatpush1.msra.mxu0 0.0
    %3248 = vmatprep.subr.mxu0 0.0
    %3249 = vmatpush1.msra.mxu0 0.0
    %3250 = vmatprep.subr.mxu0 0.0
    %3251 = vmatpush1.msra.mxu0 0.0
    %3252 = vmatprep.subr.mxu0 0.0
    %3253 = vmatpush1.msra.mxu0 0.0
    %3254 = vmatprep.subr.mxu0 0.0
    %3255 = vmatpush1.msra.mxu0 0.0
    %3256 = vmatprep.subr.mxu0 0.0
    %3257 = vmatpush1.msra.mxu0 0.0
    %3258 = vmatprep.subr.mxu0 0.0
    %3259 = vmatpush1.msra.mxu0 0.0
    %3260 = vmatprep.subr.mxu0 0.0
    %3261 = vmatpush1.msra.mxu0 0.0
    %3262 = vmatprep.mubr.f32.mxu0 0.0
    %3263 = vmatmul.mubr.f32.gmra.mrb[0].mxu0 %v3193
    %v3264 = vpop.f32.mrb[0].mxu0
    %v3265 = vadd.f32 0.0, %v3264
    %v3266 = vpop.f32.mrb[0].mxu0
    %3267 = vmatprep.mubr.f32.mxu0 0.0
    %3268 = vmatmul.mubr.f32.gmra.mrb[0].mxu0 %v3196
    %v3269 = vpop.f32.mrb[0].mxu0
    %v3270 = vadd.f32 0.0, %v3269
    %v3271 = vpop.f32.mrb[0].mxu0
    %3272 = vdwg.mxu0
    %v3274 = vsel %vm383, %v2784, 0
    %v3277 = vsel %vm383, %v2857, 0
    %3279 = vmatprep.subr.mxu0 0.0
    %3280 = vmatpush1.msra.mxu0 %v2249
    %3281 = vmatprep.subr.mxu0 0.0
    %3282 = vmatpush1.msra.mxu0 0.0
    %3283 = vmatprep.subr.mxu0 0.0
    %3284 = vmatpush1.msra.mxu0 0.0
    %3285 = vmatprep.subr.mxu0 0.0
    %3286 = vmatpush1.msra.mxu0 0.0
    %3287 = vmatprep.subr.mxu0 0.0
    %3288 = vmatpush1.msra.mxu0 0.0
    %3289 = vmatprep.subr.mxu0 0.0
    %3290 = vmatpush1.msra.mxu0 0.0
    %3291 = vmatprep.subr.mxu0 0.0
    %3292 = vmatpush1.msra.mxu0 0.0
    %3293 = vmatprep.subr.mxu0 0.0
    %3294 = vmatpush1.msra.mxu0 0.0
    %3295 = vmatprep.subr.mxu0 0.0
    %3296 = vmatpush1.msra.mxu0 0.0
    %3297 = vmatprep.subr.mxu0 0.0
    %3298 = vmatpush1.msra.mxu0 0.0
    %3299 = vmatprep.subr.mxu0 0.0
    %3300 = vmatpush1.msra.mxu0 0.0
    %3301 = vmatprep.subr.mxu0 0.0
    %3302 = vmatpush1.msra.mxu0 0.0
    %3303 = vmatprep.subr.mxu0 0.0
    %3304 = vmatpush1.msra.mxu0 0.0
    %3305 = vmatprep.subr.mxu0 0.0
    %3306 = vmatpush1.msra.mxu0 0.0
    %3307 = vmatprep.subr.mxu0 0.0
    %3308 = vmatpush1.msra.mxu0 0.0
    %3309 = vmatprep.subr.mxu0 0.0
    %3310 = vmatpush1.msra.mxu0 0.0
    %3311 = vmatprep.subr.mxu0 0.0
    %3312 = vmatpush1.msra.mxu0 0.0
    %3313 = vmatprep.subr.mxu0 0.0
    %3314 = vmatpush1.msra.mxu0 0.0
    %3315 = vmatprep.subr.mxu0 0.0
    %3316 = vmatpush1.msra.mxu0 0.0
    %3317 = vmatprep.subr.mxu0 0.0
    %3318 = vmatpush1.msra.mxu0 0.0
    %3319 = vmatprep.subr.mxu0 0.0
    %3320 = vmatpush1.msra.mxu0 0.0
    %3321 = vmatprep.subr.mxu0 0.0
    %3322 = vmatpush1.msra.mxu0 0.0
    %3323 = vmatprep.subr.mxu0 0.0
    %3324 = vmatpush1.msra.mxu0 0.0
    %3325 = vmatprep.subr.mxu0 0.0
    %3326 = vmatpush1.msra.mxu0 0.0
    %3327 = vmatprep.subr.mxu0 0.0
    %3328 = vmatpush1.msra.mxu0 0.0
    %3329 = vmatprep.subr.mxu0 0.0
    %3330 = vmatpush1.msra.mxu0 0.0
    %3331 = vmatprep.subr.mxu0 0.0
    %3332 = vmatpush1.msra.mxu0 0.0
    %3333 = vmatprep.subr.mxu0 0.0
    %3334 = vmatpush1.msra.mxu0 0.0
    %3335 = vmatprep.subr.mxu0 0.0
    %3336 = vmatpush1.msra.mxu0 0.0
    %3337 = vmatprep.subr.mxu0 0.0
    %3338 = vmatpush1.msra.mxu0 0.0
    %3339 = vmatprep.subr.mxu0 0.0
    %3340 = vmatpush1.msra.mxu0 0.0
    %3341 = vmatprep.subr.mxu0 0.0
    %3342 = vmatpush1.msra.mxu0 0.0
    %3343 = vmatprep.mubr.f32.mxu0 0.0
    %3344 = vmatmul.mubr.f32.gmra.mrb[0].mxu0 %v3274
    %v3345 = vpop.f32.mrb[0].mxu0
    %v3346 = vadd.f32 %v3265, %v3345
    %v3347 = vpop.f32.mrb[0].mxu0
    %3348 = vmatprep.mubr.f32.mxu0 0.0
    %3349 = vmatmul.mubr.f32.gmra.mrb[0].mxu0 %v3277
    %v3350 = vpop.f32.mrb[0].mxu0
    %v3351 = vadd.f32 %v3270, %v3350
    %v3352 = vpop.f32.mrb[0].mxu0
    %3353 = vdwg.mxu0
    %3354 = vrot.lane.b32.xlu0 %v2388, 112
    %v3355 = vpop.permute.xlu0 %3354
    %3356 = vrot.lane.b32.xlu0 %v2457, 112
    %v3357 = vpop.permute.xlu0 %3356
    %v3358 = vsel %vm383, %v3355, 0
    %v3360 = vsel %vm383, %v3357, 0
    %3362 = vmatprep.subr.mxu0 0.0
    %3363 = vmatpush1.xpose.msra.mxu0 %v3360
    %3364 = vmatprep.subr.mxu0 0.0
    %3365 = vmatpush1.xpose.msra.mxu0 0.0
    %3366 = vmatprep.subr.mxu0 0.0
    %3367 = vmatpush1.xpose.msra.mxu0 0.0
    %3368 = vmatprep.subr.mxu0 0.0
    %3369 = vmatpush1.xpose.msra.mxu0 0.0
    %3370 = vmatprep.subr.mxu0 0.0
    %3371 = vmatpush1.xpose.msra.mxu0 0.0
    %3372 = vmatprep.subr.mxu0 0.0
    %3373 = vmatpush1.xpose.msra.mxu0 0.0
    %3374 = vmatprep.subr.mxu0 0.0
    %3375 = vmatpush1.xpose.msra.mxu0 0.0
    %3376 = vmatprep.subr.mxu0 0.0
    %3377 = vmatpush1.xpose.msra.mxu0 0.0
    %3378 = vmatprep.subr.mxu0 0.0
    %3379 = vmatpush1.xpose.msra.mxu0 0.0
    %3380 = vmatprep.subr.mxu0 0.0
    %3381 = vmatpush1.xpose.msra.mxu0 0.0
    %3382 = vmatprep.subr.mxu0 0.0
    %3383 = vmatpush1.xpose.msra.mxu0 0.0
    %3384 = vmatprep.subr.mxu0 0.0
    %3385 = vmatpush1.xpose.msra.mxu0 0.0
    %3386 = vmatprep.subr.mxu0 0.0
    %3387 = vmatpush1.xpose.msra.mxu0 0.0
    %3388 = vmatprep.subr.mxu0 0.0
    %3389 = vmatpush1.xpose.msra.mxu0 0.0
    %3390 = vmatprep.subr.mxu0 0.0
    %3391 = vmatpush1.xpose.msra.mxu0 0.0
    %3392 = vmatprep.subr.mxu0 0.0
    %3393 = vmatpush1.xpose.msra.mxu0 0.0
    %3394 = vmatprep.subr.mxu0 0.0
    %3395 = vmatpush1.xpose.msra.mxu0 0.0
    %3396 = vmatprep.subr.mxu0 0.0
    %3397 = vmatpush1.xpose.msra.mxu0 0.0
    %3398 = vmatprep.subr.mxu0 0.0
    %3399 = vmatpush1.xpose.msra.mxu0 0.0
    %3400 = vmatprep.subr.mxu0 0.0
    %3401 = vmatpush1.xpose.msra.mxu0 0.0
    %3402 = vmatprep.subr.mxu0 0.0
    %3403 = vmatpush1.xpose.msra.mxu0 0.0
    %3404 = vmatprep.subr.mxu0 0.0
    %3405 = vmatpush1.xpose.msra.mxu0 0.0
    %3406 = vmatprep.subr.mxu0 0.0
    %3407 = vmatpush1.xpose.msra.mxu0 0.0
    %3408 = vmatprep.subr.mxu0 0.0
    %3409 = vmatpush1.xpose.msra.mxu0 0.0
    %3410 = vmatprep.subr.mxu0 0.0
    %3411 = vmatpush1.xpose.msra.mxu0 0.0
    %3412 = vmatprep.subr.mxu0 0.0
    %3413 = vmatpush1.xpose.msra.mxu0 0.0
    %3414 = vmatprep.subr.mxu0 0.0
    %3415 = vmatpush1.xpose.msra.mxu0 0.0
    %3416 = vmatprep.subr.mxu0 0.0
    %3417 = vmatpush1.xpose.msra.mxu0 0.0
    %3418 = vmatprep.subr.mxu0 0.0
    %3419 = vmatpush1.xpose.msra.mxu0 0.0
    %3420 = vmatprep.subr.mxu0 0.0
    %3421 = vmatpush1.xpose.msra.mxu0 0.0
    %3422 = vmatprep.subr.mxu0 0.0
    %3423 = vmatpush1.xpose.msra.mxu0 0.0
    %3424 = vmatprep.subr.mxu0 0.0
    %3425 = vmatpush1.xpose.msra.mxu0 0.0
    %3426 = vmatprep.mubr.f32.mxu0 0.0
    %3427 = vmatmul.mubr.f32.gmra.mrb[0].mxu0 %v3358
    %v3428 = vpop.f32.mrb[0].mxu0
    %v3429 = vadd.f32 %v376, %v3428
    %v3430 = vpop.f32.mrb[0].mxu0
    %3431 = vdwg.mxu0
    %3432 = vrot.lane.b32.xlu0 %v2389, 112
    %v3433 = vpop.permute.xlu0 %3432
    %3434 = vrot.lane.b32.xlu0 %v2462, 112
    %v3435 = vpop.permute.xlu0 %3434
    %v3436 = vsel %vm383, %v3433, 0
    %v3438 = vsel %vm383, %v3435, 0
    %3440 = vmatprep.subr.mxu0 0.0
    %3441 = vmatpush1.xpose.msra.mxu0 %v3438
    %3442 = vmatprep.subr.mxu0 0.0
    %3443 = vmatpush1.xpose.msra.mxu0 0.0
    %3444 = vmatprep.subr.mxu0 0.0
    %3445 = vmatpush1.xpose.msra.mxu0 0.0
    %3446 = vmatprep.subr.mxu0 0.0
    %3447 = vmatpush1.xpose.msra.mxu0 0.0
    %3448 = vmatprep.subr.mxu0 0.0
    %3449 = vmatpush1.xpose.msra.mxu0 0.0
    %3450 = vmatprep.subr.mxu0 0.0
    %3451 = vmatpush1.xpose.msra.mxu0 0.0
    %3452 = vmatprep.subr.mxu0 0.0
    %3453 = vmatpush1.xpose.msra.mxu0 0.0
    %3454 = vmatprep.subr.mxu0 0.0
    %3455 = vmatpush1.xpose.msra.mxu0 0.0
    %3456 = vmatprep.subr.mxu0 0.0
    %3457 = vmatpush1.xpose.msra.mxu0 0.0
    %3458 = vmatprep.subr.mxu0 0.0
    %3459 = vmatpush1.xpose.msra.mxu0 0.0
    %3460 = vmatprep.subr.mxu0 0.0
    %3461 = vmatpush1.xpose.msra.mxu0 0.0
    %3462 = vmatprep.subr.mxu0 0.0
    %3463 = vmatpush1.xpose.msra.mxu0 0.0
    %3464 = vmatprep.subr.mxu0 0.0
    %3465 = vmatpush1.xpose.msra.mxu0 0.0
    %3466 = vmatprep.subr.mxu0 0.0
    %3467 = vmatpush1.xpose.msra.mxu0 0.0
    %3468 = vmatprep.subr.mxu0 0.0
    %3469 = vmatpush1.xpose.msra.mxu0 0.0
    %3470 = vmatprep.subr.mxu0 0.0
    %3471 = vmatpush1.xpose.msra.mxu0 0.0
    %3472 = vmatprep.subr.mxu0 0.0
    %3473 = vmatpush1.xpose.msra.mxu0 0.0
    %3474 = vmatprep.subr.mxu0 0.0
    %3475 = vmatpush1.xpose.msra.mxu0 0.0
    %3476 = vmatprep.subr.mxu0 0.0
    %3477 = vmatpush1.xpose.msra.mxu0 0.0
    %3478 = vmatprep.subr.mxu0 0.0
    %3479 = vmatpush1.xpose.msra.mxu0 0.0
    %3480 = vmatprep.subr.mxu0 0.0
    %3481 = vmatpush1.xpose.msra.mxu0 0.0
    %3482 = vmatprep.subr.mxu0 0.0
    %3483 = vmatpush1.xpose.msra.mxu0 0.0
    %3484 = vmatprep.subr.mxu0 0.0
    %3485 = vmatpush1.xpose.msra.mxu0 0.0
    %3486 = vmatprep.subr.mxu0 0.0
    %3487 = vmatpush1.xpose.msra.mxu0 0.0
    %3488 = vmatprep.subr.mxu0 0.0
    %3489 = vmatpush1.xpose.msra.mxu0 0.0
    %3490 = vmatprep.subr.mxu0 0.0
    %3491 = vmatpush1.xpose.msra.mxu0 0.0
    %3492 = vmatprep.subr.mxu0 0.0
    %3493 = vmatpush1.xpose.msra.mxu0 0.0
    %3494 = vmatprep.subr.mxu0 0.0
    %3495 = vmatpush1.xpose.msra.mxu0 0.0
    %3496 = vmatprep.subr.mxu0 0.0
    %3497 = vmatpush1.xpose.msra.mxu0 0.0
    %3498 = vmatprep.subr.mxu0 0.0
    %3499 = vmatpush1.xpose.msra.mxu0 0.0
    %3500 = vmatprep.subr.mxu0 0.0
    %3501 = vmatpush1.xpose.msra.mxu0 0.0
    %3502 = vmatprep.subr.mxu0 0.0
    %3503 = vmatpush1.xpose.msra.mxu0 0.0
    %3504 = vmatprep.mubr.f32.mxu0 0.0
    %3505 = vmatmul.mubr.f32.gmra.mrb[0].mxu0 %v3436
    %v3506 = vpop.f32.mrb[0].mxu0
    %v3507 = vadd.f32 %v380, %v3506
    %v3508 = vpop.f32.mrb[0].mxu0
    %3509 = vdwg.mxu0
    %v3510 = vsel %vm383, %v3429, -inf
    %3511 = vmax.xlane.f32.xlu0 %v3510
    %v3512 = vpop.xlane.xlu0 %3511
    %v3513 = vsel %vm383, %v3507, -inf
    %3514 = vmax.xlane.f32.xlu0 %v3513
    %v3515 = vpop.xlane.xlu0 %3514
    %v3516 = vsub.f32 %v3429, %v3512
    %v3517 = vsub.f32 %v3507, %v3515
    %v3518 = vmul.f32 %v3516, 1.442695
    %v3519 = vpow.pop %v3518
    %v3520 = vmul.f32 %v3517, 1.442695
    %v3521 = vpow.pop %v3520
    %v3522 = vsel %vm383, %v3519, 0.0
    %3523 = vadd.xlane.f32.xlu0 %v3522
    %v3524 = vpop.xlane.xlu0 %3523
    %v3525 = vsel %vm383, %v3521, 0.0
    %3526 = vadd.xlane.f32.xlu0 %v3525
    %v3527 = vpop.xlane.xlu0 %3526
    %v3528 = vrcp.pop %v3524
    %v3529 = vrcp.pop %v3527
    %v3530 = vmul.f32 %v3519, %v3528
    %v3531 = vmul.f32 %v3521, %v3529
    %3532 = vrot.lane.b32.xlu0 %v2532, 112
    %v3533 = vpop.permute.xlu0 %3532
    %v3536 = vsel %vm383, %v3530, 0
    %3538 = vmatprep.subr.mxu0 0.0
    %3539 = vmatpush1.msra.mxu0 %v3533
    %3540 = vmatprep.subr.mxu0 0.0
    %3541 = vmatpush1.msra.mxu0 0.0
    %3542 = vmatprep.subr.mxu0 0.0
    %3543 = vmatpush1.msra.mxu0 0.0
    %3544 = vmatprep.subr.mxu0 0.0
    %3545 = vmatpush1.msra.mxu0 0.0
    %3546 = vmatprep.subr.mxu0 0.0
    %3547 = vmatpush1.msra.mxu0 0.0
    %3548 = vmatprep.subr.mxu0 0.0
    %3549 = vmatpush1.msra.mxu0 0.0
    %3550 = vmatprep.subr.mxu0 0.0
    %3551 = vmatpush1.msra.mxu0 0.0
    %3552 = vmatprep.subr.mxu0 0.0
    %3553 = vmatpush1.msra.mxu0 0.0
    %3554 = vmatprep.subr.mxu0 0.0
    %3555 = vmatpush1.msra.mxu0 0.0
    %3556 = vmatprep.subr.mxu0 0.0
    %3557 = vmatpush1.msra.mxu0 0.0
    %3558 = vmatprep.subr.mxu0 0.0
    %3559 = vmatpush1.msra.mxu0 0.0
    %3560 = vmatprep.subr.mxu0 0.0
    %3561 = vmatpush1.msra.mxu0 0.0
    %3562 = vmatprep.subr.mxu0 0.0
    %3563 = vmatpush1.msra.mxu0 0.0
    %3564 = vmatprep.subr.mxu0 0.0
    %3565 = vmatpush1.msra.mxu0 0.0
    %3566 = vmatprep.subr.mxu0 0.0
    %3567 = vmatpush1.msra.mxu0 0.0
    %3568 = vmatprep.subr.mxu0 0.0
    %3569 = vmatpush1.msra.mxu0 0.0
    %3570 = vmatprep.subr.mxu0 0.0
    %3571 = vmatpush1.msra.mxu0 0.0
    %3572 = vmatprep.subr.mxu0 0.0
    %3573 = vmatpush1.msra.mxu0 0.0
    %3574 = vmatprep.subr.mxu0 0.0
    %3575 = vmatpush1.msra.mxu0 0.0
    %3576 = vmatprep.subr.mxu0 0.0
    %3577 = vmatpush1.msra.mxu0 0.0
    %3578 = vmatprep.subr.mxu0 0.0
    %3579 = vmatpush1.msra.mxu0 0.0
    %3580 = vmatprep.subr.mxu0 0.0
    %3581 = vmatpush1.msra.mxu0 0.0
    %3582 = vmatprep.subr.mxu0 0.0
    %3583 = vmatpush1.msra.mxu0 0.0
    %3584 = vmatprep.subr.mxu0 0.0
    %3585 = vmatpush1.msra.mxu0 0.0
    %3586 = vmatprep.subr.mxu0 0.0
    %3587 = vmatpush1.msra.mxu0 0.0
    %3588 = vmatprep.subr.mxu0 0.0
    %3589 = vmatpush1.msra.mxu0 0.0
    %3590 = vmatprep.subr.mxu0 0.0
    %3591 = vmatpush1.msra.mxu0 0.0
    %3592 = vmatprep.subr.mxu0 0.0
    %3593 = vmatpush1.msra.mxu0 0.0
    %3594 = vmatprep.subr.mxu0 0.0
    %3595 = vmatpush1.msra.mxu0 0.0
    %3596 = vmatprep.subr.mxu0 0.0
    %3597 = vmatpush1.msra.mxu0 0.0
    %3598 = vmatprep.subr.mxu0 0.0
    %3599 = vmatpush1.msra.mxu0 0.0
    %3600 = vmatprep.subr.mxu0 0.0
    %3601 = vmatpush1.msra.mxu0 0.0
    %3602 = vmatprep.mubr.f32.mxu0 0.0
    %3603 = vmatmul.mubr.f32.gmra.mrb[0].mxu0 %v3536
    %v3604 = vpop.f32.mrb[0].mxu0
    %v3605 = vadd.f32 0.0, %v3604
    %v3606 = vpop.f32.mrb[0].mxu0
    %3607 = vdwg.mxu0
    %3608 = vrot.lane.b32.xlu0 %v2537, 112
    %v3609 = vpop.permute.xlu0 %3608
    %v3612 = vsel %vm383, %v3531, 0
    %3614 = vmatprep.subr.mxu0 0.0
    %3615 = vmatpush1.msra.mxu0 %v3609
    %3616 = vmatprep.subr.mxu0 0.0
    %3617 = vmatpush1.msra.mxu0 0.0
    %3618 = vmatprep.subr.mxu0 0.0
    %3619 = vmatpush1.msra.mxu0 0.0
    %3620 = vmatprep.subr.mxu0 0.0
    %3621 = vmatpush1.msra.mxu0 0.0
    %3622 = vmatprep.subr.mxu0 0.0
    %3623 = vmatpush1.msra.mxu0 0.0
    %3624 = vmatprep.subr.mxu0 0.0
    %3625 = vmatpush1.msra.mxu0 0.0
    %3626 = vmatprep.subr.mxu0 0.0
    %3627 = vmatpush1.msra.mxu0 0.0
    %3628 = vmatprep.subr.mxu0 0.0
    %3629 = vmatpush1.msra.mxu0 0.0
    %3630 = vmatprep.subr.mxu0 0.0
    %3631 = vmatpush1.msra.mxu0 0.0
    %3632 = vmatprep.subr.mxu0 0.0
    %3633 = vmatpush1.msra.mxu0 0.0
    %3634 = vmatprep.subr.mxu0 0.0
    %3635 = vmatpush1.msra.mxu0 0.0
    %3636 = vmatprep.subr.mxu0 0.0
    %3637 = vmatpush1.msra.mxu0 0.0
    %3638 = vmatprep.subr.mxu0 0.0
    %3639 = vmatpush1.msra.mxu0 0.0
    %3640 = vmatprep.subr.mxu0 0.0
    %3641 = vmatpush1.msra.mxu0 0.0
    %3642 = vmatprep.subr.mxu0 0.0
    %3643 = vmatpush1.msra.mxu0 0.0
    %3644 = vmatprep.subr.mxu0 0.0
    %3645 = vmatpush1.msra.mxu0 0.0
    %3646 = vmatprep.subr.mxu0 0.0
    %3647 = vmatpush1.msra.mxu0 0.0
    %3648 = vmatprep.subr.mxu0 0.0
    %3649 = vmatpush1.msra.mxu0 0.0
    %3650 = vmatprep.subr.mxu0 0.0
    %3651 = vmatpush1.msra.mxu0 0.0
    %3652 = vmatprep.subr.mxu0 0.0
    %3653 = vmatpush1.msra.mxu0 0.0
    %3654 = vmatprep.subr.mxu0 0.0
    %3655 = vmatpush1.msra.mxu0 0.0
    %3656 = vmatprep.subr.mxu0 0.0
    %3657 = vmatpush1.msra.mxu0 0.0
    %3658 = vmatprep.subr.mxu0 0.0
    %3659 = vmatpush1.msra.mxu0 0.0
    %3660 = vmatprep.subr.mxu0 0.0
    %3661 = vmatpush1.msra.mxu0 0.0
    %3662 = vmatprep.subr.mxu0 0.0
    %3663 = vmatpush1.msra.mxu0 0.0
    %3664 = vmatprep.subr.mxu0 0.0
    %3665 = vmatpush1.msra.mxu0 0.0
    %3666 = vmatprep.subr.mxu0 0.0
    %3667 = vmatpush1.msra.mxu0 0.0
    %3668 = vmatprep.subr.mxu0 0.0
    %3669 = vmatpush1.msra.mxu0 0.0
    %3670 = vmatprep.subr.mxu0 0.0
    %3671 = vmatpush1.msra.mxu0 0.0
    %3672 = vmatprep.subr.mxu0 0.0
    %3673 = vmatpush1.msra.mxu0 0.0
    %3674 = vmatprep.subr.mxu0 0.0
    %3675 = vmatpush1.msra.mxu0 0.0
    %3676 = vmatprep.subr.mxu0 0.0
    %3677 = vmatpush1.msra.mxu0 0.0
    %3678 = vmatprep.mubr.f32.mxu0 0.0
    %3679 = vmatmul.mubr.f32.gmra.mrb[0].mxu0 %v3612
    %v3680 = vpop.f32.mrb[0].mxu0
    %v3681 = vadd.f32 0.0, %v3680
    %v3682 = vpop.f32.mrb[0].mxu0
    %3683 = vdwg.mxu0
    %v3685 = vsel %vm383, %v3605, 0
    %v3688 = vsel %vm383, %v3681, 0
    %3690 = vmatprep.subr.mxu0 0.0
    %3691 = vmatpush1.msra.mxu0 %v2251
    %3692 = vmatprep.subr.mxu0 0.0
    %3693 = vmatpush1.msra.mxu0 0.0
    %3694 = vmatprep.subr.mxu0 0.0
    %3695 = vmatpush1.msra.mxu0 0.0
    %3696 = vmatprep.subr.mxu0 0.0
    %3697 = vmatpush1.msra.mxu0 0.0
    %3698 = vmatprep.subr.mxu0 0.0
    %3699 = vmatpush1.msra.mxu0 0.0
    %3700 = vmatprep.subr.mxu0 0.0
    %3701 = vmatpush1.msra.mxu0 0.0
    %3702 = vmatprep.subr.mxu0 0.0
    %3703 = vmatpush1.msra.mxu0 0.0
    %3704 = vmatprep.subr.mxu0 0.0
    %3705 = vmatpush1.msra.mxu0 0.0
    %3706 = vmatprep.subr.mxu0 0.0
    %3707 = vmatpush1.msra.mxu0 0.0
    %3708 = vmatprep.subr.mxu0 0.0
    %3709 = vmatpush1.msra.mxu0 0.0
    %3710 = vmatprep.subr.mxu0 0.0
    %3711 = vmatpush1.msra.mxu0 0.0
    %3712 = vmatprep.subr.mxu0 0.0
    %3713 = vmatpush1.msra.mxu0 0.0
    %3714 = vmatprep.subr.mxu0 0.0
    %3715 = vmatpush1.msra.mxu0 0.0
    %3716 = vmatprep.subr.mxu0 0.0
    %3717 = vmatpush1.msra.mxu0 0.0
    %3718 = vmatprep.subr.mxu0 0.0
    %3719 = vmatpush1.msra.mxu0 0.0
    %3720 = vmatprep.subr.mxu0 0.0
    %3721 = vmatpush1.msra.mxu0 0.0
    %3722 = vmatprep.subr.mxu0 0.0
    %3723 = vmatpush1.msra.mxu0 0.0
    %3724 = vmatprep.subr.mxu0 0.0
    %3725 = vmatpush1.msra.mxu0 0.0
    %3726 = vmatprep.subr.mxu0 0.0
    %3727 = vmatpush1.msra.mxu0 0.0
    %3728 = vmatprep.subr.mxu0 0.0
    %3729 = vmatpush1.msra.mxu0 0.0
    %3730 = vmatprep.subr.mxu0 0.0
    %3731 = vmatpush1.msra.mxu0 0.0
    %3732 = vmatprep.subr.mxu0 0.0
    %3733 = vmatpush1.msra.mxu0 0.0
    %3734 = vmatprep.subr.mxu0 0.0
    %3735 = vmatpush1.msra.mxu0 0.0
    %3736 = vmatprep.subr.mxu0 0.0
    %3737 = vmatpush1.msra.mxu0 0.0
    %3738 = vmatprep.subr.mxu0 0.0
    %3739 = vmatpush1.msra.mxu0 0.0
    %3740 = vmatprep.subr.mxu0 0.0
    %3741 = vmatpush1.msra.mxu0 0.0
    %3742 = vmatprep.subr.mxu0 0.0
    %3743 = vmatpush1.msra.mxu0 0.0
    %3744 = vmatprep.subr.mxu0 0.0
    %3745 = vmatpush1.msra.mxu0 0.0
    %3746 = vmatprep.subr.mxu0 0.0
    %3747 = vmatpush1.msra.mxu0 0.0
    %3748 = vmatprep.subr.mxu0 0.0
    %3749 = vmatpush1.msra.mxu0 0.0
    %3750 = vmatprep.subr.mxu0 0.0
    %3751 = vmatpush1.msra.mxu0 0.0
    %3752 = vmatprep.subr.mxu0 0.0
    %3753 = vmatpush1.msra.mxu0 0.0
    %3754 = vmatprep.mubr.f32.mxu0 0.0
    %3755 = vmatmul.mubr.f32.gmra.mrb[0].mxu0 %v3685
    %v3756 = vpop.f32.mrb[0].mxu0
    %v3757 = vadd.f32 0.0, %v3756
    %v3758 = vpop.f32.mrb[0].mxu0
    %3759 = vmatprep.mubr.f32.mxu0 0.0
    %3760 = vmatmul.mubr.f32.gmra.mrb[0].mxu0 %v3688
    %v3761 = vpop.f32.mrb[0].mxu0
    %v3762 = vadd.f32 0.0, %v3761
    %v3763 = vpop.f32.mrb[0].mxu0
    %3764 = vdwg.mxu0
    %v3765 = vadd.f32 %v3346, %v3757
    %v3766 = vadd.f32 %v3351, %v3762
    %3767 = vrot.lane.b32.xlu0 %v2388, 104
    %v3768 = vpop.permute.xlu0 %3767
    %3769 = vrot.lane.b32.xlu0 %v2457, 104
    %v3770 = vpop.permute.xlu0 %3769
    %v3771 = vsel %vm383, %v3768, 0
    %v3773 = vsel %vm383, %v3770, 0
    %3775 = vmatprep.subr.mxu0 0.0
    %3776 = vmatpush1.xpose.msra.mxu0 %v3773
    %3777 = vmatprep.subr.mxu0 0.0
    %3778 = vmatpush1.xpose.msra.mxu0 0.0
    %3779 = vmatprep.subr.mxu0 0.0
    %3780 = vmatpush1.xpose.msra.mxu0 0.0
    %3781 = vmatprep.subr.mxu0 0.0
    %3782 = vmatpush1.xpose.msra.mxu0 0.0
    %3783 = vmatprep.subr.mxu0 0.0
    %3784 = vmatpush1.xpose.msra.mxu0 0.0
    %3785 = vmatprep.subr.mxu0 0.0
    %3786 = vmatpush1.xpose.msra.mxu0 0.0
    %3787 = vmatprep.subr.mxu0 0.0
    %3788 = vmatpush1.xpose.msra.mxu0 0.0
    %3789 = vmatprep.subr.mxu0 0.0
    %3790 = vmatpush1.xpose.msra.mxu0 0.0
    %3791 = vmatprep.subr.mxu0 0.0
    %3792 = vmatpush1.xpose.msra.mxu0 0.0
    %3793 = vmatprep.subr.mxu0 0.0
    %3794 = vmatpush1.xpose.msra.mxu0 0.0
    %3795 = vmatprep.subr.mxu0 0.0
    %3796 = vmatpush1.xpose.msra.mxu0 0.0
    %3797 = vmatprep.subr.mxu0 0.0
    %3798 = vmatpush1.xpose.msra.mxu0 0.0
    %3799 = vmatprep.subr.mxu0 0.0
    %3800 = vmatpush1.xpose.msra.mxu0 0.0
    %3801 = vmatprep.subr.mxu0 0.0
    %3802 = vmatpush1.xpose.msra.mxu0 0.0
    %3803 = vmatprep.subr.mxu0 0.0
    %3804 = vmatpush1.xpose.msra.mxu0 0.0
    %3805 = vmatprep.subr.mxu0 0.0
    %3806 = vmatpush1.xpose.msra.mxu0 0.0
    %3807 = vmatprep.subr.mxu0 0.0
    %3808 = vmatpush1.xpose.msra.mxu0 0.0
    %3809 = vmatprep.subr.mxu0 0.0
    %3810 = vmatpush1.xpose.msra.mxu0 0.0
    %3811 = vmatprep.subr.mxu0 0.0
    %3812 = vmatpush1.xpose.msra.mxu0 0.0
    %3813 = vmatprep.subr.mxu0 0.0
    %3814 = vmatpush1.xpose.msra.mxu0 0.0
    %3815 = vmatprep.subr.mxu0 0.0
    %3816 = vmatpush1.xpose.msra.mxu0 0.0
    %3817 = vmatprep.subr.mxu0 0.0
    %3818 = vmatpush1.xpose.msra.mxu0 0.0
    %3819 = vmatprep.subr.mxu0 0.0
    %3820 = vmatpush1.xpose.msra.mxu0 0.0
    %3821 = vmatprep.subr.mxu0 0.0
    %3822 = vmatpush1.xpose.msra.mxu0 0.0
    %3823 = vmatprep.subr.mxu0 0.0
    %3824 = vmatpush1.xpose.msra.mxu0 0.0
    %3825 = vmatprep.subr.mxu0 0.0
    %3826 = vmatpush1.xpose.msra.mxu0 0.0
    %3827 = vmatprep.subr.mxu0 0.0
    %3828 = vmatpush1.xpose.msra.mxu0 0.0
    %3829 = vmatprep.subr.mxu0 0.0
    %3830 = vmatpush1.xpose.msra.mxu0 0.0
    %3831 = vmatprep.subr.mxu0 0.0
    %3832 = vmatpush1.xpose.msra.mxu0 0.0
    %3833 = vmatprep.subr.mxu0 0.0
    %3834 = vmatpush1.xpose.msra.mxu0 0.0
    %3835 = vmatprep.subr.mxu0 0.0
    %3836 = vmatpush1.xpose.msra.mxu0 0.0
    %3837 = vmatprep.subr.mxu0 0.0
    %3838 = vmatpush1.xpose.msra.mxu0 0.0
    %3839 = vmatprep.mubr.f32.mxu0 0.0
    %3840 = vmatmul.mubr.f32.gmra.mrb[0].mxu0 %v3771
    %v3841 = vpop.f32.mrb[0].mxu0
    %v3842 = vadd.f32 %v376, %v3841
    %v3843 = vpop.f32.mrb[0].mxu0
    %3844 = vdwg.mxu0
    %3845 = vrot.lane.b32.xlu0 %v2389, 104
    %v3846 = vpop.permute.xlu0 %3845
    %3847 = vrot.lane.b32.xlu0 %v2462, 104
    %v3848 = vpop.permute.xlu0 %3847
    %v3849 = vsel %vm383, %v3846, 0
    %v3851 = vsel %vm383, %v3848, 0
    %3853 = vmatprep.subr.mxu0 0.0
    %3854 = vmatpush1.xpose.msra.mxu0 %v3851
    %3855 = vmatprep.subr.mxu0 0.0
    %3856 = vmatpush1.xpose.msra.mxu0 0.0
    %3857 = vmatprep.subr.mxu0 0.0
    %3858 = vmatpush1.xpose.msra.mxu0 0.0
    %3859 = vmatprep.subr.mxu0 0.0
    %3860 = vmatpush1.xpose.msra.mxu0 0.0
    %3861 = vmatprep.subr.mxu0 0.0
    %3862 = vmatpush1.xpose.msra.mxu0 0.0
    %3863 = vmatprep.subr.mxu0 0.0
    %3864 = vmatpush1.xpose.msra.mxu0 0.0
    %3865 = vmatprep.subr.mxu0 0.0
    %3866 = vmatpush1.xpose.msra.mxu0 0.0
    %3867 = vmatprep.subr.mxu0 0.0
    %3868 = vmatpush1.xpose.msra.mxu0 0.0
    %3869 = vmatprep.subr.mxu0 0.0
    %3870 = vmatpush1.xpose.msra.mxu0 0.0
    %3871 = vmatprep.subr.mxu0 0.0
    %3872 = vmatpush1.xpose.msra.mxu0 0.0
    %3873 = vmatprep.subr.mxu0 0.0
    %3874 = vmatpush1.xpose.msra.mxu0 0.0
    %3875 = vmatprep.subr.mxu0 0.0
    %3876 = vmatpush1.xpose.msra.mxu0 0.0
    %3877 = vmatprep.subr.mxu0 0.0
    %3878 = vmatpush1.xpose.msra.mxu0 0.0
    %3879 = vmatprep.subr.mxu0 0.0
    %3880 = vmatpush1.xpose.msra.mxu0 0.0
    %3881 = vmatprep.subr.mxu0 0.0
    %3882 = vmatpush1.xpose.msra.mxu0 0.0
    %3883 = vmatprep.subr.mxu0 0.0
    %3884 = vmatpush1.xpose.msra.mxu0 0.0
    %3885 = vmatprep.subr.mxu0 0.0
    %3886 = vmatpush1.xpose.msra.mxu0 0.0
    %3887 = vmatprep.subr.mxu0 0.0
    %3888 = vmatpush1.xpose.msra.mxu0 0.0
    %3889 = vmatprep.subr.mxu0 0.0
    %3890 = vmatpush1.xpose.msra.mxu0 0.0
    %3891 = vmatprep.subr.mxu0 0.0
    %3892 = vmatpush1.xpose.msra.mxu0 0.0
    %3893 = vmatprep.subr.mxu0 0.0
    %3894 = vmatpush1.xpose.msra.mxu0 0.0
    %3895 = vmatprep.subr.mxu0 0.0
    %3896 = vmatpush1.xpose.msra.mxu0 0.0
    %3897 = vmatprep.subr.mxu0 0.0
    %3898 = vmatpush1.xpose.msra.mxu0 0.0
    %3899 = vmatprep.subr.mxu0 0.0
    %3900 = vmatpush1.xpose.msra.mxu0 0.0
    %3901 = vmatprep.subr.mxu0 0.0
    %3902 = vmatpush1.xpose.msra.mxu0 0.0
    %3903 = vmatprep.subr.mxu0 0.0
    %3904 = vmatpush1.xpose.msra.mxu0 0.0
    %3905 = vmatprep.subr.mxu0 0.0
    %3906 = vmatpush1.xpose.msra.mxu0 0.0
    %3907 = vmatprep.subr.mxu0 0.0
    %3908 = vmatpush1.xpose.msra.mxu0 0.0
    %3909 = vmatprep.subr.mxu0 0.0
    %3910 = vmatpush1.xpose.msra.mxu0 0.0
    %3911 = vmatprep.subr.mxu0 0.0
    %3912 = vmatpush1.xpose.msra.mxu0 0.0
    %3913 = vmatprep.subr.mxu0 0.0
    %3914 = vmatpush1.xpose.msra.mxu0 0.0
    %3915 = vmatprep.subr.mxu0 0.0
    %3916 = vmatpush1.xpose.msra.mxu0 0.0
    %3917 = vmatprep.mubr.f32.mxu0 0.0
    %3918 = vmatmul.mubr.f32.gmra.mrb[0].mxu0 %v3849
    %v3919 = vpop.f32.mrb[0].mxu0
    %v3920 = vadd.f32 %v380, %v3919
    %v3921 = vpop.f32.mrb[0].mxu0
    %3922 = vdwg.mxu0
    %v3923 = vsel %vm383, %v3842, -inf
    %3924 = vmax.xlane.f32.xlu0 %v3923
    %v3925 = vpop.xlane.xlu0 %3924
    %v3926 = vsel %vm383, %v3920, -inf
    %3927 = vmax.xlane.f32.xlu0 %v3926
    %v3928 = vpop.xlane.xlu0 %3927
    %v3929 = vsub.f32 %v3842, %v3925
    %v3930 = vsub.f32 %v3920, %v3928
    %v3931 = vmul.f32 %v3929, 1.442695
    %v3932 = vpow.pop %v3931
    %v3933 = vmul.f32 %v3930, 1.442695
    %v3934 = vpow.pop %v3933
    %v3935 = vsel %vm383, %v3932, 0.0
    %3936 = vadd.xlane.f32.xlu0 %v3935
    %v3937 = vpop.xlane.xlu0 %3936
    %v3938 = vsel %vm383, %v3934, 0.0
    %3939 = vadd.xlane.f32.xlu0 %v3938
    %v3940 = vpop.xlane.xlu0 %3939
    %v3941 = vrcp.pop %v3937
    %v3942 = vrcp.pop %v3940
    %v3943 = vmul.f32 %v3932, %v3941
    %v3944 = vmul.f32 %v3934, %v3942
    %3945 = vrot.lane.b32.xlu0 %v2532, 104
    %v3946 = vpop.permute.xlu0 %3945
    %v3949 = vsel %vm383, %v3943, 0
    %3951 = vmatprep.subr.mxu0 0.0
    %3952 = vmatpush1.msra.mxu0 %v3946
    %3953 = vmatprep.subr.mxu0 0.0
    %3954 = vmatpush1.msra.mxu0 0.0
    %3955 = vmatprep.subr.mxu0 0.0
    %3956 = vmatpush1.msra.mxu0 0.0
    %3957 = vmatprep.subr.mxu0 0.0
    %3958 = vmatpush1.msra.mxu0 0.0
    %3959 = vmatprep.subr.mxu0 0.0
    %3960 = vmatpush1.msra.mxu0 0.0
    %3961 = vmatprep.subr.mxu0 0.0
    %3962 = vmatpush1.msra.mxu0 0.0
    %3963 = vmatprep.subr.mxu0 0.0
    %3964 = vmatpush1.msra.mxu0 0.0
    %3965 = vmatprep.subr.mxu0 0.0
    %3966 = vmatpush1.msra.mxu0 0.0
    %3967 = vmatprep.subr.mxu0 0.0
    %3968 = vmatpush1.msra.mxu0 0.0
    %3969 = vmatprep.subr.mxu0 0.0
    %3970 = vmatpush1.msra.mxu0 0.0
    %3971 = vmatprep.subr.mxu0 0.0
    %3972 = vmatpush1.msra.mxu0 0.0
    %3973 = vmatprep.subr.mxu0 0.0
    %3974 = vmatpush1.msra.mxu0 0.0
    %3975 = vmatprep.subr.mxu0 0.0
    %3976 = vmatpush1.msra.mxu0 0.0
    %3977 = vmatprep.subr.mxu0 0.0
    %3978 = vmatpush1.msra.mxu0 0.0
    %3979 = vmatprep.subr.mxu0 0.0
    %3980 = vmatpush1.msra.mxu0 0.0
    %3981 = vmatprep.subr.mxu0 0.0
    %3982 = vmatpush1.msra.mxu0 0.0
    %3983 = vmatprep.subr.mxu0 0.0
    %3984 = vmatpush1.msra.mxu0 0.0
    %3985 = vmatprep.subr.mxu0 0.0
    %3986 = vmatpush1.msra.mxu0 0.0
    %3987 = vmatprep.subr.mxu0 0.0
    %3988 = vmatpush1.msra.mxu0 0.0
    %3989 = vmatprep.subr.mxu0 0.0
    %3990 = vmatpush1.msra.mxu0 0.0
    %3991 = vmatprep.subr.mxu0 0.0
    %3992 = vmatpush1.msra.mxu0 0.0
    %3993 = vmatprep.subr.mxu0 0.0
    %3994 = vmatpush1.msra.mxu0 0.0
    %3995 = vmatprep.subr.mxu0 0.0
    %3996 = vmatpush1.msra.mxu0 0.0
    %3997 = vmatprep.subr.mxu0 0.0
    %3998 = vmatpush1.msra.mxu0 0.0
    %3999 = vmatprep.subr.mxu0 0.0
    %4000 = vmatpush1.msra.mxu0 0.0
    %4001 = vmatprep.subr.mxu0 0.0
    %4002 = vmatpush1.msra.mxu0 0.0
    %4003 = vmatprep.subr.mxu0 0.0
    %4004 = vmatpush1.msra.mxu0 0.0
    %4005 = vmatprep.subr.mxu0 0.0
    %4006 = vmatpush1.msra.mxu0 0.0
    %4007 = vmatprep.subr.mxu0 0.0
    %4008 = vmatpush1.msra.mxu0 0.0
    %4009 = vmatprep.subr.mxu0 0.0
    %4010 = vmatpush1.msra.mxu0 0.0
    %4011 = vmatprep.subr.mxu0 0.0
    %4012 = vmatpush1.msra.mxu0 0.0
    %4013 = vmatprep.subr.mxu0 0.0
    %4014 = vmatpush1.msra.mxu0 0.0
    %4015 = vmatprep.mubr.f32.mxu0 0.0
    %4016 = vmatmul.mubr.f32.gmra.mrb[0].mxu0 %v3949
    %v4017 = vpop.f32.mrb[0].mxu0
    %v4018 = vadd.f32 0.0, %v4017
    %v4019 = vpop.f32.mrb[0].mxu0
    %4020 = vdwg.mxu0
    %4021 = vrot.lane.b32.xlu0 %v2537, 104
    %v4022 = vpop.permute.xlu0 %4021
    %v4025 = vsel %vm383, %v3944, 0
    %4027 = vmatprep.subr.mxu0 0.0
    %4028 = vmatpush1.msra.mxu0 %v4022
    %4029 = vmatprep.subr.mxu0 0.0
    %4030 = vmatpush1.msra.mxu0 0.0
    %4031 = vmatprep.subr.mxu0 0.0
    %4032 = vmatpush1.msra.mxu0 0.0
    %4033 = vmatprep.subr.mxu0 0.0
    %4034 = vmatpush1.msra.mxu0 0.0
    %4035 = vmatprep.subr.mxu0 0.0
    %4036 = vmatpush1.msra.mxu0 0.0
    %4037 = vmatprep.subr.mxu0 0.0
    %4038 = vmatpush1.msra.mxu0 0.0
    %4039 = vmatprep.subr.mxu0 0.0
    %4040 = vmatpush1.msra.mxu0 0.0
    %4041 = vmatprep.subr.mxu0 0.0
    %4042 = vmatpush1.msra.mxu0 0.0
    %4043 = vmatprep.subr.mxu0 0.0
    %4044 = vmatpush1.msra.mxu0 0.0
    %4045 = vmatprep.subr.mxu0 0.0
    %4046 = vmatpush1.msra.mxu0 0.0
    %4047 = vmatprep.subr.mxu0 0.0
    %4048 = vmatpush1.msra.mxu0 0.0
    %4049 = vmatprep.subr.mxu0 0.0
    %4050 = vmatpush1.msra.mxu0 0.0
    %4051 = vmatprep.subr.mxu0 0.0
    %4052 = vmatpush1.msra.mxu0 0.0
    %4053 = vmatprep.subr.mxu0 0.0
    %4054 = vmatpush1.msra.mxu0 0.0
    %4055 = vmatprep.subr.mxu0 0.0
    %4056 = vmatpush1.msra.mxu0 0.0
    %4057 = vmatprep.subr.mxu0 0.0
    %4058 = vmatpush1.msra.mxu0 0.0
    %4059 = vmatprep.subr.mxu0 0.0
    %4060 = vmatpush1.msra.mxu0 0.0
    %4061 = vmatprep.subr.mxu0 0.0
    %4062 = vmatpush1.msra.mxu0 0.0
    %4063 = vmatprep.subr.mxu0 0.0
    %4064 = vmatpush1.msra.mxu0 0.0
    %4065 = vmatprep.subr.mxu0 0.0
    %4066 = vmatpush1.msra.mxu0 0.0
    %4067 = vmatprep.subr.mxu0 0.0
    %4068 = vmatpush1.msra.mxu0 0.0
    %4069 = vmatprep.subr.mxu0 0.0
    %4070 = vmatpush1.msra.mxu0 0.0
    %4071 = vmatprep.subr.mxu0 0.0
    %4072 = vmatpush1.msra.mxu0 0.0
    %4073 = vmatprep.subr.mxu0 0.0
    %4074 = vmatpush1.msra.mxu0 0.0
    %4075 = vmatprep.subr.mxu0 0.0
    %4076 = vmatpush1.msra.mxu0 0.0
    %4077 = vmatprep.subr.mxu0 0.0
    %4078 = vmatpush1.msra.mxu0 0.0
    %4079 = vmatprep.subr.mxu0 0.0
    %4080 = vmatpush1.msra.mxu0 0.0
    %4081 = vmatprep.subr.mxu0 0.0
    %4082 = vmatpush1.msra.mxu0 0.0
    %4083 = vmatprep.subr.mxu0 0.0
    %4084 = vmatpush1.msra.mxu0 0.0
    %4085 = vmatprep.subr.mxu0 0.0
    %4086 = vmatpush1.msra.mxu0 0.0
    %4087 = vmatprep.subr.mxu0 0.0
    %4088 = vmatpush1.msra.mxu0 0.0
    %4089 = vmatprep.subr.mxu0 0.0
    %4090 = vmatpush1.msra.mxu0 0.0
    %4091 = vmatprep.mubr.f32.mxu0 0.0
    %4092 = vmatmul.mubr.f32.gmra.mrb[0].mxu0 %v4025
    %v4093 = vpop.f32.mrb[0].mxu0
    %v4094 = vadd.f32 0.0, %v4093
    %v4095 = vpop.f32.mrb[0].mxu0
    %4096 = vdwg.mxu0
    %v4098 = vsel %vm383, %v4018, 0
    %v4101 = vsel %vm383, %v4094, 0
    %4103 = vmatprep.subr.mxu0 0.0
    %4104 = vmatpush1.msra.mxu0 %v2252
    %4105 = vmatprep.subr.mxu0 0.0
    %4106 = vmatpush1.msra.mxu0 0.0
    %4107 = vmatprep.subr.mxu0 0.0
    %4108 = vmatpush1.msra.mxu0 0.0
    %4109 = vmatprep.subr.mxu0 0.0
    %4110 = vmatpush1.msra.mxu0 0.0
    %4111 = vmatprep.subr.mxu0 0.0
    %4112 = vmatpush1.msra.mxu0 0.0
    %4113 = vmatprep.subr.mxu0 0.0
    %4114 = vmatpush1.msra.mxu0 0.0
    %4115 = vmatprep.subr.mxu0 0.0
    %4116 = vmatpush1.msra.mxu0 0.0
    %4117 = vmatprep.subr.mxu0 0.0
    %4118 = vmatpush1.msra.mxu0 0.0
    %4119 = vmatprep.subr.mxu0 0.0
    %4120 = vmatpush1.msra.mxu0 0.0
    %4121 = vmatprep.subr.mxu0 0.0
    %4122 = vmatpush1.msra.mxu0 0.0
    %4123 = vmatprep.subr.mxu0 0.0
    %4124 = vmatpush1.msra.mxu0 0.0
    %4125 = vmatprep.subr.mxu0 0.0
    %4126 = vmatpush1.msra.mxu0 0.0
    %4127 = vmatprep.subr.mxu0 0.0
    %4128 = vmatpush1.msra.mxu0 0.0
    %4129 = vmatprep.subr.mxu0 0.0
    %4130 = vmatpush1.msra.mxu0 0.0
    %4131 = vmatprep.subr.mxu0 0.0
    %4132 = vmatpush1.msra.mxu0 0.0
    %4133 = vmatprep.subr.mxu0 0.0
    %4134 = vmatpush1.msra.mxu0 0.0
    %4135 = vmatprep.subr.mxu0 0.0
    %4136 = vmatpush1.msra.mxu0 0.0
    %4137 = vmatprep.subr.mxu0 0.0
    %4138 = vmatpush1.msra.mxu0 0.0
    %4139 = vmatprep.subr.mxu0 0.0
    %4140 = vmatpush1.msra.mxu0 0.0
    %4141 = vmatprep.subr.mxu0 0.0
    %4142 = vmatpush1.msra.mxu0 0.0
    %4143 = vmatprep.subr.mxu0 0.0
    %4144 = vmatpush1.msra.mxu0 0.0
    %4145 = vmatprep.subr.mxu0 0.0
    %4146 = vmatpush1.msra.mxu0 0.0
    %4147 = vmatprep.subr.mxu0 0.0
    %4148 = vmatpush1.msra.mxu0 0.0
    %4149 = vmatprep.subr.mxu0 0.0
    %4150 = vmatpush1.msra.mxu0 0.0
    %4151 = vmatprep.subr.mxu0 0.0
    %4152 = vmatpush1.msra.mxu0 0.0
    %4153 = vmatprep.subr.mxu0 0.0
    %4154 = vmatpush1.msra.mxu0 0.0
    %4155 = vmatprep.subr.mxu0 0.0
    %4156 = vmatpush1.msra.mxu0 0.0
    %4157 = vmatprep.subr.mxu0 0.0
    %4158 = vmatpush1.msra.mxu0 0.0
    %4159 = vmatprep.subr.mxu0 0.0
    %4160 = vmatpush1.msra.mxu0 0.0
    %4161 = vmatprep.subr.mxu0 0.0
    %4162 = vmatpush1.msra.mxu0 0.0
    %4163 = vmatprep.subr.mxu0 0.0
    %4164 = vmatpush1.msra.mxu0 0.0
    %4165 = vmatprep.subr.mxu0 0.0
    %4166 = vmatpush1.msra.mxu0 0.0
    %4167 = vmatprep.mubr.f32.mxu0 0.0
    %4168 = vmatmul.mubr.f32.gmra.mrb[0].mxu0 %v4098
    %v4169 = vpop.f32.mrb[0].mxu0
    %v4170 = vadd.f32 0.0, %v4169
    %v4171 = vpop.f32.mrb[0].mxu0
    %4172 = vmatprep.mubr.f32.mxu0 0.0
    %4173 = vmatmul.mubr.f32.gmra.mrb[0].mxu0 %v4101
    %v4174 = vpop.f32.mrb[0].mxu0
    %v4175 = vadd.f32 0.0, %v4174
    %v4176 = vpop.f32.mrb[0].mxu0
    %4177 = vdwg.mxu0
    %v4178 = vadd.f32 %v3765, %v4170
    %v4179 = vadd.f32 %v3766, %v4175
    %v4180 = vadd.f32 %v2229, %v4178
    %v4181 = vadd.f32 %v2230, %v4179
    %v4182 = vsel %vm100, %v4180, 0.0
    %4183 = vadd.xlane.f32.xlu0 %v4182
    %v4184 = vpop.xlane.xlu0 %4183
    %v4185 = vsel %vm100, %v4181, 0.0
    %4186 = vadd.xlane.f32.xlu0 %v4185
    %v4187 = vpop.xlane.xlu0 %4186
    %v4188 = vmul.f32 %v4184, %v107
    %v4189 = vmul.f32 %v4187, %v107
    %v4190 = vsub.f32 %v4180, %v4188
    %v4191 = vsub.f32 %v4181, %v4189
    %v4192 = vmul.f32 %v4190, %v4190
    %v4193 = vmul.f32 %v4191, %v4191
    %v4194 = vsel %vm100, %v4192, 0.0
    %4195 = vadd.xlane.f32.xlu0 %v4194
    %v4196 = vpop.xlane.xlu0 %4195
    %v4197 = vsel %vm100, %v4193, 0.0
    %4198 = vadd.xlane.f32.xlu0 %v4197
    %v4199 = vpop.xlane.xlu0 %4198
    %v4200 = vmul.f32 %v4196, %v107
    %v4201 = vmul.f32 %v4199, %v107
    %v4202 = vadd.f32 %v4200, 1e-06
    %v4203 = vadd.f32 %v4201, 1e-06
    %v4204 = vrsqrt.pop %v4202
    %v4205 = vrsqrt.pop %v4203
    %v4206 = vmul.f32 %v4190, %v4204
    %v4207 = vmul.f32 %v4191, %v4205
    %v4208 = vmul.f32 %v4206, %v2298
    %v4209 = vmul.f32 %v4207, %v2298
    %v4210 = vadd.f32 %v4208, %v2304
    %v4211 = vadd.f32 %v4209, %v2304
    %v4212 = vlaneseq
    %v4213 = vshrl.u32 %v4212, 7
    %v4214 = vsub.s32 0, %v4213
    %v4215 = vrot.slane %v2258, %v4214
    %v4217 = vsel %vm100, %v4210, 0
    %v4220 = vsel %vm100, %v4211, 0
    %4222 = vmatprep.subr.mxu0 0.0
    %4223 = vmatpush1.msra.mxu0 %v2254
    %4224 = vmatprep.subr.mxu0 0.0
    %4225 = vmatpush1.msra.mxu0 %v2255
    %4226 = vmatprep.subr.mxu0 0.0
    %4227 = vmatpush1.msra.mxu0 %v2256
    %4228 = vmatprep.subr.mxu0 0.0
    %4229 = vmatpush1.msra.mxu0 %v2257
    %4230 = vmatprep.subr.mxu0 0.0
    %4231 = vmatpush1.msra.mxu0 0.0
    %4232 = vmatprep.subr.mxu0 0.0
    %4233 = vmatpush1.msra.mxu0 0.0
    %4234 = vmatprep.subr.mxu0 0.0
    %4235 = vmatpush1.msra.mxu0 0.0
    %4236 = vmatprep.subr.mxu0 0.0
    %4237 = vmatpush1.msra.mxu0 0.0
    %4238 = vmatprep.subr.mxu0 0.0
    %4239 = vmatpush1.msra.mxu0 0.0
    %4240 = vmatprep.subr.mxu0 0.0
    %4241 = vmatpush1.msra.mxu0 0.0
    %4242 = vmatprep.subr.mxu0 0.0
    %4243 = vmatpush1.msra.mxu0 0.0
    %4244 = vmatprep.subr.mxu0 0.0
    %4245 = vmatpush1.msra.mxu0 0.0
    %4246 = vmatprep.subr.mxu0 0.0
    %4247 = vmatpush1.msra.mxu0 0.0
    %4248 = vmatprep.subr.mxu0 0.0
    %4249 = vmatpush1.msra.mxu0 0.0
    %4250 = vmatprep.subr.mxu0 0.0
    %4251 = vmatpush1.msra.mxu0 0.0
    %4252 = vmatprep.subr.mxu0 0.0
    %4253 = vmatpush1.msra.mxu0 0.0
    %4254 = vmatprep.subr.mxu0 0.0
    %4255 = vmatpush1.msra.mxu0 0.0
    %4256 = vmatprep.subr.mxu0 0.0
    %4257 = vmatpush1.msra.mxu0 0.0
    %4258 = vmatprep.subr.mxu0 0.0
    %4259 = vmatpush1.msra.mxu0 0.0
    %4260 = vmatprep.subr.mxu0 0.0
    %4261 = vmatpush1.msra.mxu0 0.0
    %4262 = vmatprep.subr.mxu0 0.0
    %4263 = vmatpush1.msra.mxu0 0.0
    %4264 = vmatprep.subr.mxu0 0.0
    %4265 = vmatpush1.msra.mxu0 0.0
    %4266 = vmatprep.subr.mxu0 0.0
    %4267 = vmatpush1.msra.mxu0 0.0
    %4268 = vmatprep.subr.mxu0 0.0
    %4269 = vmatpush1.msra.mxu0 0.0
    %4270 = vmatprep.subr.mxu0 0.0
    %4271 = vmatpush1.msra.mxu0 0.0
    %4272 = vmatprep.subr.mxu0 0.0
    %4273 = vmatpush1.msra.mxu0 0.0
    %4274 = vmatprep.subr.mxu0 0.0
    %4275 = vmatpush1.msra.mxu0 0.0
    %4276 = vmatprep.subr.mxu0 0.0
    %4277 = vmatpush1.msra.mxu0 0.0
    %4278 = vmatprep.subr.mxu0 0.0
    %4279 = vmatpush1.msra.mxu0 0.0
    %4280 = vmatprep.subr.mxu0 0.0
    %4281 = vmatpush1.msra.mxu0 0.0
    %4282 = vmatprep.subr.mxu0 0.0
    %4283 = vmatpush1.msra.mxu0 0.0
    %4284 = vmatprep.subr.mxu0 0.0
    %4285 = vmatpush1.msra.mxu0 0.0
    %4286 = vmatprep.mubr.f32.mxu0 0.0
    %4287 = vmatmul.mubr.f32.gmra.mrb[0].mxu0 %v4217
    %v4288 = vpop.f32.mrb[0].mxu0
    %v4289 = vadd.f32 %v4215, %v4288
    %v4290 = vpop.f32.mrb[0].mxu0
    %4291 = vmatprep.mubr.f32.mxu0 0.0
    %4292 = vmatmul.mubr.f32.gmra.mrb[0].mxu0 %v4220
    %v4293 = vpop.f32.mrb[0].mxu0
    %v4294 = vadd.f32 %v4215, %v4293
    %v4295 = vpop.f32.mrb[0].mxu0
    %4296 = vdwg.mxu0
    %v4297 = vmax.f32 %v4289, 0.0
    %v4298 = vmax.f32 %v4294, 0.0
    %v4299 = vlaneseq
    %v4300 = vshrl.u32 %v4299, 7
    %v4301 = vsub.s32 0, %v4300
    %v4302 = vrot.slane %v2268, %v4301
    %v4304 = vsel %vm2147, %v4297, 0
    %v4307 = vsel %vm2147, %v4298, 0
    %4309 = vmatprep.subr.mxu0 0.0
    %4310 = vmatpush1.msra.mxu0 %v2260
    %4311 = vmatprep.subr.mxu0 0.0
    %4312 = vmatpush1.msra.mxu0 %v2261
    %4313 = vmatprep.subr.mxu0 0.0
    %4314 = vmatpush1.msra.mxu0 %v2262
    %4315 = vmatprep.subr.mxu0 0.0
    %4316 = vmatpush1.msra.mxu0 %v2263
    %4317 = vmatprep.subr.mxu0 0.0
    %4318 = vmatpush1.msra.mxu0 %v2264
    %4319 = vmatprep.subr.mxu0 0.0
    %4320 = vmatpush1.msra.mxu0 %v2265
    %4321 = vmatprep.subr.mxu0 0.0
    %4322 = vmatpush1.msra.mxu0 %v2266
    %4323 = vmatprep.subr.mxu0 0.0
    %4324 = vmatpush1.msra.mxu0 %v2267
    %4325 = vmatprep.subr.mxu0 0.0
    %4326 = vmatpush1.msra.mxu0 0.0
    %4327 = vmatprep.subr.mxu0 0.0
    %4328 = vmatpush1.msra.mxu0 0.0
    %4329 = vmatprep.subr.mxu0 0.0
    %4330 = vmatpush1.msra.mxu0 0.0
    %4331 = vmatprep.subr.mxu0 0.0
    %4332 = vmatpush1.msra.mxu0 0.0
    %4333 = vmatprep.subr.mxu0 0.0
    %4334 = vmatpush1.msra.mxu0 0.0
    %4335 = vmatprep.subr.mxu0 0.0
    %4336 = vmatpush1.msra.mxu0 0.0
    %4337 = vmatprep.subr.mxu0 0.0
    %4338 = vmatpush1.msra.mxu0 0.0
    %4339 = vmatprep.subr.mxu0 0.0
    %4340 = vmatpush1.msra.mxu0 0.0
    %4341 = vmatprep.subr.mxu0 0.0
    %4342 = vmatpush1.msra.mxu0 0.0
    %4343 = vmatprep.subr.mxu0 0.0
    %4344 = vmatpush1.msra.mxu0 0.0
    %4345 = vmatprep.subr.mxu0 0.0
    %4346 = vmatpush1.msra.mxu0 0.0
    %4347 = vmatprep.subr.mxu0 0.0
    %4348 = vmatpush1.msra.mxu0 0.0
    %4349 = vmatprep.subr.mxu0 0.0
    %4350 = vmatpush1.msra.mxu0 0.0
    %4351 = vmatprep.subr.mxu0 0.0
    %4352 = vmatpush1.msra.mxu0 0.0
    %4353 = vmatprep.subr.mxu0 0.0
    %4354 = vmatpush1.msra.mxu0 0.0
    %4355 = vmatprep.subr.mxu0 0.0
    %4356 = vmatpush1.msra.mxu0 0.0
    %4357 = vmatprep.subr.mxu0 0.0
    %4358 = vmatpush1.msra.mxu0 0.0
    %4359 = vmatprep.subr.mxu0 0.0
    %4360 = vmatpush1.msra.mxu0 0.0
    %4361 = vmatprep.subr.mxu0 0.0
    %4362 = vmatpush1.msra.mxu0 0.0
    %4363 = vmatprep.subr.mxu0 0.0
    %4364 = vmatpush1.msra.mxu0 0.0
    %4365 = vmatprep.subr.mxu0 0.0
    %4366 = vmatpush1.msra.mxu0 0.0
    %4367 = vmatprep.subr.mxu0 0.0
    %4368 = vmatpush1.msra.mxu0 0.0
    %4369 = vmatprep.subr.mxu0 0.0
    %4370 = vmatpush1.msra.mxu0 0.0
    %4371 = vmatprep.subr.mxu0 0.0
    %4372 = vmatpush1.msra.mxu0 0.0
    %4373 = vmatprep.mubr.f32.mxu0 0.0
    %4374 = vmatmul.mubr.f32.gmra.mrb[0].mxu0 %v4304
    %v4375 = vpop.f32.mrb[0].mxu0
    %v4376 = vadd.f32 %v4302, %v4375
    %v4377 = vpop.f32.mrb[0].mxu0
    %4378 = vmatprep.mubr.f32.mxu0 0.0
    %4379 = vmatmul.mubr.f32.gmra.mrb[0].mxu0 %v4307
    %v4380 = vpop.f32.mrb[0].mxu0
    %v4381 = vadd.f32 %v4302, %v4380
    %v4382 = vpop.f32.mrb[0].mxu0
    %4383 = vdwg.mxu0
    %v4384 = vadd.f32 %v4180, %v4376
    %v4385 = vadd.f32 %v4181, %v4381
    %v4386 = vld [vmem:[%s2 + $0x2] sm:$0x1]
    %v4387 = vld [vmem:[%s3 + $0x2] sm:$0x1]
    %v4388 = vsel %vm100, %v4384, 0.0
    %4389 = vadd.xlane.f32.xlu0 %v4388
    %v4390 = vpop.xlane.xlu0 %4389
    %v4391 = vsel %vm100, %v4385, 0.0
    %4392 = vadd.xlane.f32.xlu0 %v4391
    %v4393 = vpop.xlane.xlu0 %4392
    %v4394 = vmul.f32 %v4390, %v107
    %v4395 = vmul.f32 %v4393, %v107
    %v4396 = vsub.f32 %v4384, %v4394
    %v4397 = vsub.f32 %v4385, %v4395
    %v4398 = vmul.f32 %v4396, %v4396
    %v4399 = vmul.f32 %v4397, %v4397
    %v4400 = vsel %vm100, %v4398, 0.0
    %4401 = vadd.xlane.f32.xlu0 %v4400
    %v4402 = vpop.xlane.xlu0 %4401
    %v4403 = vsel %vm100, %v4399, 0.0
    %4404 = vadd.xlane.f32.xlu0 %v4403
    %v4405 = vpop.xlane.xlu0 %4404
    %v4406 = vmul.f32 %v4402, %v107
    %v4407 = vmul.f32 %v4405, %v107
    %v4408 = vadd.f32 %v4406, 1e-06
    %v4409 = vadd.f32 %v4407, 1e-06
    %v4410 = vrsqrt.pop %v4408
    %v4411 = vrsqrt.pop %v4409
    %v4412 = vmul.f32 %v4396, %v4410
    %v4413 = vmul.f32 %v4397, %v4411
    %v4414 = vlaneseq
    %v4415 = vshrl.u32 %v4414, 7
    %v4416 = vsub.s32 0, %v4415
    %v4417 = vrot.slane %v4386, %v4416
    %v4418 = vmul.f32 %v4412, %v4417
    %v4419 = vmul.f32 %v4413, %v4417
    %v4420 = vlaneseq
    %v4421 = vshrl.u32 %v4420, 7
    %v4422 = vsub.s32 0, %v4421
    %v4423 = vrot.slane %v4387, %v4422
    %v4424 = vadd.f32 %v4418, %v4423
    %v4425 = vadd.f32 %v4419, %v4423
    %4426 = vst.msk [vmem:[#allocation2] sm:$0xff] %vm100, %v4424
    %4427 = vst.msk [vmem:[#allocation2 + $0x8] sm:$0xff] %vm100, %v4425
    // Predicated region
    $region50: #{encoder_forward.1} parent=1 // pred_check
      _
    $region51: #{encoder_forward.1} parent=1 // pred_check_branch
      %4429 = sbr.rel (0) target = $region53
    $region52: #{encoder_forward.1} parent=1 // pred_region
      %s4431 = ssub.s32 256, 256
      %4432 = vsyncadd [#allocation3], %s4431
      %s4433 = sshll.u32 [#allocation2], 4
      %s4434 = int_to_ptr.vmem [resolvable:$true] %s4433
      %4439 = dma.vmem_to_hbm [thread:$0]  %s4434, 256, %s12, [#allocation3], 128, 128, 8
    $region53: #{encoder_forward.1} parent=1 // pred_fallthru
      _
    // Predicated region
    $region54: #{encoder_forward.1} parent=1 // pred_check
      _
    $region55: #{encoder_forward.1} parent=1 // pred_check_branch
      %4441 = sbr.rel (0) target = $region57
    $region56: #{encoder_forward.1} parent=1 // pred_region
      %4442 = dma.done [#allocation3], 256
    $region57: #{encoder_forward.1} parent=1 // pred_fallthru
      _
    %4443 = vsyncpa [#allocation3], 1

</llo_original>
